<compile_context>
chip_gen: v6e
topology: v6e:2x2x1
jax: 0.10.0
libtpu: 0.0.40
codegen_flags: <defaults>
</compile_context>

<pallas_src>
import jax
import jax.numpy as jnp
from jax.experimental import pallas as pl
from jax.experimental.pallas import tpu as pltpu

HIDDEN = 1200        # hidden width of the reference GenNet module
HIDDEN_PAD = 1280    # zero-padded to a multiple of 256 for MXU / lane alignment
LANE = 128
SUBLANE_BF16 = 16    # bf16 packs 16 rows per sublane group


def _round_up(x, m):
    return ((x + m - 1) // m) * m


def _cdiv(a, b):
    return (a + b - 1) // b


def _vmem_limit_bytes():
    # v5e / v6e have 128 MiB physical VMEM; v7x only 64 MiB -> stay conservative there.
    try:
        kind = jax.devices()[0].device_kind.lower()
    except Exception:
        kind = ""
    if "v5" in kind or "v6" in kind:
        return 96 << 20
    return 48 << 20


def gennet_kernel(x_ref, w1_ref, b1_ref, w2_ref, b2_ref, w3_ref, b3_ref, o_ref):
    # One batch tile per grid step; all three Linear+ReLU layers fused in VMEM.
    # bf16 matmul inputs, f32 accumulation on the MXU, f32 bias add + ReLU.
    x = x_ref[...]                                                       # (TB, DinP)  bf16
    h1 = jnp.dot(x, w1_ref[...], preferred_element_type=jnp.float32)     # (TB, HP)    f32
    h1 = jnp.maximum(h1 + b1_ref[...], 0.0).astype(jnp.bfloat16)
    h2 = jnp.dot(h1, w2_ref[...], preferred_element_type=jnp.float32)    # (TB, HP)    f32
    h2 = jnp.maximum(h2 + b2_ref[...], 0.0).astype(jnp.bfloat16)
    h3 = jnp.dot(h2, w3_ref[...], preferred_element_type=jnp.float32)    # (TB, DoutP) f32
    o_ref[...] = jnp.maximum(h3 + b3_ref[...], 0.0).astype(o_ref.dtype)


def prepare_params(params):
    """Pad widths + cast weights to bf16 ONCE (hoisted out of the per-call forward).

    params: (w1, b1, w2, b2, w3, b3) f32, weights laid out (fan_in, fan_out).
    Returns a dict of padded device arrays + shape metadata.
    """
    w1, b1, w2, b2, w3, b3 = params
    dim_in, _ = w1.shape
    dim_out = w3.shape[1]
    dim_in_pad = _round_up(dim_in, LANE)
    dim_out_pad = _round_up(dim_out, LANE)

    w1p = (jnp.zeros((dim_in_pad, HIDDEN_PAD), jnp.bfloat16)
           .at[:dim_in, :HIDDEN].set(w1.astype(jnp.bfloat16)))
    b1p = jnp.zeros((1, HIDDEN_PAD), jnp.float32).at[:, :HIDDEN].set(b1.reshape(1, -1))
    w2p = (jnp.zeros((HIDDEN_PAD, HIDDEN_PAD), jnp.bfloat16)
           .at[:HIDDEN, :HIDDEN].set(w2.astype(jnp.bfloat16)))
    b2p = jnp.zeros((1, HIDDEN_PAD), jnp.float32).at[:, :HIDDEN].set(b2.reshape(1, -1))
    w3p = (jnp.zeros((HIDDEN_PAD, dim_out_pad), jnp.bfloat16)
           .at[:HIDDEN, :dim_out].set(w3.astype(jnp.bfloat16)))
    b3p = jnp.zeros((1, dim_out_pad), jnp.float32).at[:, :dim_out].set(b3.reshape(1, -1))

    return dict(
        w1=w1p, b1=b1p, w2=w2p, b2=b2p, w3=w3p, b3=b3p,
        dim_in=dim_in, dim_in_pad=dim_in_pad,
        dim_out=dim_out, dim_out_pad=dim_out_pad,
    )


def gennet_forward(x, prepared, *, tile_b=512):
    """x: (B, dim_in) f32; prepared: output of prepare_params()."""
    B, dim_in = x.shape
    assert dim_in == prepared["dim_in"], "dim_in mismatch with prepared params"
    dim_in_pad = prepared["dim_in_pad"]
    dim_out = prepared["dim_out"]
    dim_out_pad = prepared["dim_out_pad"]

    # --- balanced batch tiling -------------------------------------------------------
    # >= 2 grid steps whenever the batch allows (keeps both v7x TensorCores busy);
    # balance the tile to B so padding waste is capped at one 16-row sublane group.
    n = max(_cdiv(B, tile_b), 2 if B >= 2 * SUBLANE_BF16 else 1)
    tb = _round_up(_cdiv(B, n), SUBLANE_BF16)
    B_pad = n * tb
    grid = (n,)

    # Pad batch rows and dim_in lanes (exact: zero rows/cols contribute nothing).
    xb = (jnp.zeros((B_pad, dim_in_pad), jnp.bfloat16)
          .at[:B, :dim_in].set(x.astype(jnp.bfloat16)))

    # Weights/biases: constant index_map -> fetched once; single-buffer to save VMEM.
    const_buf = dict(pipeline_mode=pl.Buffered(1))
    in_specs = [
        pl.BlockSpec((tb, dim_in_pad), lambda i: (i, 0)),                        # x tile
        pl.BlockSpec((dim_in_pad, HIDDEN_PAD), lambda i: (0, 0), **const_buf),   # w1
        pl.BlockSpec((1, HIDDEN_PAD), lambda i: (0, 0), **const_buf),            # b1
        pl.BlockSpec((HIDDEN_PAD, HIDDEN_PAD), lambda i: (0, 0), **const_buf),   # w2
        pl.BlockSpec((1, HIDDEN_PAD), lambda i: (0, 0), **const_buf),            # b2
        pl.BlockSpec((HIDDEN_PAD, dim_out_pad), lambda i: (0, 0), **const_buf),  # w3
        pl.BlockSpec((1, dim_out_pad), lambda i: (0, 0), **const_buf),           # b3
    ]
    out_spec = pl.BlockSpec((tb, dim_out_pad), lambda i: (i, 0))

    w1p, b1p = prepared["w1"], prepared["b1"]
    w2p, b2p = prepared["w2"], prepared["b2"]
    w3p, b3p = prepared["w3"], prepared["b3"]

    flops = 2 * B_pad * (dim_in_pad * HIDDEN_PAD + HIDDEN_PAD * HIDDEN_PAD
                         + HIDDEN_PAD * dim_out_pad)
    bytes_accessed = (
        xb.size * 2
        + (w1p.size + w2p.size + w3p.size) * 2
        + (b1p.size + b2p.size + b3p.size) * 4
        + B_pad * dim_out_pad * 4
    )
    cost = pl.CostEstimate(flops=flops, transcendentals=0, bytes_accessed=bytes_accessed)

    out = pl.pallas_call(
        gennet_kernel,
        out_shape=jax.ShapeDtypeStruct((B_pad, dim_out_pad), jnp.float32),
        grid_spec=pltpu.PrefetchScalarGridSpec(
            num_scalar_prefetch=0,
            grid=grid,
            in_specs=in_specs,
            out_specs=out_spec,
        ),
        compiler_params=pltpu.CompilerParams(
            dimension_semantics=("parallel",),
            vmem_limit_bytes=_vmem_limit_bytes(),
        ),
        cost_estimate=cost,
    )(xb, w1p, b1p, w2p, b2p, w3p, b3p)

    return out[:B, :dim_out]


def init_params(key, dim_in, dim_out):
    # Mimic PyTorch nn.Linear default init: U(-1/sqrt(fan_in), 1/sqrt(fan_in)).
    ks = jax.random.split(key, 6)

    def lin(kw, kb, fan_in, fan_out):
        bound = 1.0 / jnp.sqrt(jnp.float32(fan_in))
        w = jax.random.uniform(kw, (fan_in, fan_out), jnp.float32, -bound, bound)
        b = jax.random.uniform(kb, (1, fan_out), jnp.float32, -bound, bound)
        return w, b

    w1, b1 = lin(ks[0], ks[1], dim_in, HIDDEN)
    w2, b2 = lin(ks[2], ks[3], HIDDEN, HIDDEN)
    w3, b3 = lin(ks[4], ks[5], HIDDEN, dim_out)
    return (w1, b1, w2, b2, w3, b3)


def gennet_reference(x, params):
    # Same math as the kernel (bf16 matmul inputs, f32 accumulate, f32 bias + ReLU).
    # NB: the PyTorch GenNet applies ReLU after the final Linear too.
    w1, b1, w2, b2, w3, b3 = params

    def lin_relu(h, w, b):
        y = jnp.dot(h.astype(jnp.bfloat16), w.astype(jnp.bfloat16),
                    preferred_element_type=jnp.float32) + b
        return jnp.maximum(y, 0.0)

    h = lin_relu(x, w1, b1)
    h = lin_relu(h, w2, b2)
    return lin_relu(h, w3, b3)


if __name__ == "__main__":
    dim_in, dim_out = 64, 32
    key = jax.random.PRNGKey(0)
    kx, kx2, kp = jax.random.split(key, 3)

    params = init_params(kp, dim_in, dim_out)
    prepared = prepare_params(params)   # padding / bf16 cast done ONCE, outside forward

    # Small batch: single-tile path (tile auto-shrinks to 16 rows).
    x = jax.random.normal(kx, (16, dim_in), jnp.float32)
    out = jax.block_until_ready(gennet_forward(x, prepared))
    ref = gennet_reference(x, params)
    assert out.shape == (16, dim_out)
    assert jnp.allclose(out, ref, atol=1e-2, rtol=1e-2), "mismatch vs reference (B=16)"

    # Slightly larger batch: exercises the balanced, >=2-step (megacore-parallel) path.
    x2 = jax.random.normal(kx2, (40, dim_in), jnp.float32)
    out2 = jax.block_until_ready(gennet_forward(x2, prepared))
    ref2 = gennet_reference(x2, params)
    assert out2.shape == (40, dim_out)
    assert jnp.allclose(out2, ref2, atol=1e-2, rtol=1e-2), "mismatch vs reference (B=40)"

    print("KERNEL_OK")
</pallas_src>

<mosaic_0001>
module attributes {stable_mosaic.version = 11 : i64} {
  func.func @gennet_kernel(%arg0: i32, %arg1: memref<16x128xbf16, #tpu.memory_space<vmem>>, %arg2: memref<128x1280xbf16, #tpu.memory_space<vmem>>, %arg3: memref<1x1280xf32, #tpu.memory_space<vmem>>, %arg4: memref<1280x1280xbf16, #tpu.memory_space<vmem>>, %arg5: memref<1x1280xf32, #tpu.memory_space<vmem>>, %arg6: memref<1280x128xbf16, #tpu.memory_space<vmem>>, %arg7: memref<1x128xf32, #tpu.memory_space<vmem>>, %arg8: memref<16x128xf32, #tpu.memory_space<vmem>>) attributes {dimension_semantics = [#tpu.dimension_semantics<parallel>], iteration_bounds = array<i64: 1>, scalar_prefetch = 0 : i64, scratch_operands = 0 : i64, tpu.core_type = #tpu.core_type<tc>, window_params = [{transform_indices = @transform_0, window_bounds = array<i64: 16, 128>}, {pipeline_mode = #tpu.pipeline_mode<synchronous>, transform_indices = @transform_1, window_bounds = array<i64: 128, 1280>}, {pipeline_mode = #tpu.pipeline_mode<synchronous>, transform_indices = @transform_2, window_bounds = array<i64: 1, 1280>}, {pipeline_mode = #tpu.pipeline_mode<synchronous>, transform_indices = @transform_3, window_bounds = array<i64: 1280, 1280>}, {pipeline_mode = #tpu.pipeline_mode<synchronous>, transform_indices = @transform_4, window_bounds = array<i64: 1, 1280>}, {pipeline_mode = #tpu.pipeline_mode<synchronous>, transform_indices = @transform_5, window_bounds = array<i64: 1280, 128>}, {pipeline_mode = #tpu.pipeline_mode<synchronous>, transform_indices = @transform_6, window_bounds = array<i64: 1, 128>}, {transform_indices = @transform_7, window_bounds = array<i64: 16, 128>}]} {
    %c0 = arith.constant 0 : index
    %c0_0 = arith.constant 0 : index
    %0 = vector.load %arg1[%c0, %c0_0] : memref<16x128xbf16, #tpu.memory_space<vmem>>, vector<16x128xbf16>
    %c0_1 = arith.constant 0 : index
    %c0_2 = arith.constant 0 : index
    %1 = vector.load %arg2[%c0_1, %c0_2] : memref<128x1280xbf16, #tpu.memory_space<vmem>>, vector<128x1280xbf16>
    %cst = arith.constant dense<0.000000e+00> : vector<16x1280xf32>
    %2 = tpu.matmul %0, %1, %cst {dimension_numbers = #tpu.dot_dimension_numbers<[1], [0], [0], [1], [0, 0, 1, 1], [], []>} : vector<16x128xbf16>, vector<128x1280xbf16>, vector<16x1280xf32> -> vector<16x1280xf32>
    %c0_3 = arith.constant 0 : index
    %c0_4 = arith.constant 0 : index
    %3 = vector.load %arg3[%c0_3, %c0_4] : memref<1x1280xf32, #tpu.memory_space<vmem>>, vector<1x1280xf32>
    %4 = vector.broadcast %3 : vector<1x1280xf32> to vector<16x1280xf32>
    %5 = arith.addf %2, %4 : vector<16x1280xf32>
    %cst_5 = arith.constant 0.000000e+00 : f32
    %6 = vector.broadcast %cst_5 : f32 to vector<16x1280xf32>
    %7 = arith.maximumf %5, %6 : vector<16x1280xf32>
    %8 = arith.truncf %7 : vector<16x1280xf32> to vector<16x1280xbf16>
    %c0_6 = arith.constant 0 : index
    %c0_7 = arith.constant 0 : index
    %9 = vector.load %arg4[%c0_6, %c0_7] : memref<1280x1280xbf16, #tpu.memory_space<vmem>>, vector<1280x1280xbf16>
    %cst_8 = arith.constant dense<0.000000e+00> : vector<16x1280xf32>
    %10 = tpu.matmul %8, %9, %cst_8 {dimension_numbers = #tpu.dot_dimension_numbers<[1], [0], [0], [1], [0, 0, 1, 1], [], []>} : vector<16x1280xbf16>, vector<1280x1280xbf16>, vector<16x1280xf32> -> vector<16x1280xf32>
    %c0_9 = arith.constant 0 : index
    %c0_10 = arith.constant 0 : index
    %11 = vector.load %arg5[%c0_9, %c0_10] : memref<1x1280xf32, #tpu.memory_space<vmem>>, vector<1x1280xf32>
    %12 = vector.broadcast %11 : vector<1x1280xf32> to vector<16x1280xf32>
    %13 = arith.addf %10, %12 : vector<16x1280xf32>
    %cst_11 = arith.constant 0.000000e+00 : f32
    %14 = vector.broadcast %cst_11 : f32 to vector<16x1280xf32>
    %15 = arith.maximumf %13, %14 : vector<16x1280xf32>
    %16 = arith.truncf %15 : vector<16x1280xf32> to vector<16x1280xbf16>
    %c0_12 = arith.constant 0 : index
    %c0_13 = arith.constant 0 : index
    %17 = vector.load %arg6[%c0_12, %c0_13] : memref<1280x128xbf16, #tpu.memory_space<vmem>>, vector<1280x128xbf16>
    %cst_14 = arith.constant dense<0.000000e+00> : vector<16x128xf32>
    %18 = tpu.matmul %16, %17, %cst_14 {dimension_numbers = #tpu.dot_dimension_numbers<[1], [0], [0], [1], [0, 0, 1, 1], [], []>} : vector<16x1280xbf16>, vector<1280x128xbf16>, vector<16x128xf32> -> vector<16x128xf32>
    %c0_15 = arith.constant 0 : index
    %c0_16 = arith.constant 0 : index
    %19 = vector.load %arg7[%c0_15, %c0_16] : memref<1x128xf32, #tpu.memory_space<vmem>>, vector<1x128xf32>
    %20 = vector.broadcast %19 : vector<1x128xf32> to vector<16x128xf32>
    %21 = arith.addf %18, %20 : vector<16x128xf32>
    %cst_17 = arith.constant 0.000000e+00 : f32
    %22 = vector.broadcast %cst_17 : f32 to vector<16x128xf32>
    %23 = arith.maximumf %21, %22 : vector<16x128xf32>
    %c0_18 = arith.constant 0 : index
    %c0_19 = arith.constant 0 : index
    %24 = vector.load %arg8[%c0_18, %c0_19] : memref<16x128xf32, #tpu.memory_space<vmem>>, vector<16x128xf32>
    tpu.vector_store %arg8[%c0_18, %c0_19], %23 {strides = array<i32>} : memref<16x128xf32, #tpu.memory_space<vmem>>, vector<16x128xf32>,
    return
  }
  func.func @transform_0(%arg0: i32) -> (i32, i32) {
    %c0_i32 = arith.constant 0 : i32
    %c0_i32_0 = arith.constant 0 : i32
    return %arg0, %c0_i32 : i32, i32
  }
  func.func @transform_1(%arg0: i32) -> (i32, i32) {
    %c0_i32 = arith.constant 0 : i32
    %c0_i32_0 = arith.constant 0 : i32
    %c0_i32_1 = arith.constant 0 : i32
    return %c0_i32, %c0_i32_0 : i32, i32
  }
  func.func @transform_2(%arg0: i32) -> (i32, i32) {
    %c0_i32 = arith.constant 0 : i32
    %c0_i32_0 = arith.constant 0 : i32
    %c0_i32_1 = arith.constant 0 : i32
    return %c0_i32, %c0_i32_0 : i32, i32
  }
  func.func @transform_3(%arg0: i32) -> (i32, i32) {
    %c0_i32 = arith.constant 0 : i32
    %c0_i32_0 = arith.constant 0 : i32
    %c0_i32_1 = arith.constant 0 : i32
    return %c0_i32, %c0_i32_0 : i32, i32
  }
  func.func @transform_4(%arg0: i32) -> (i32, i32) {
    %c0_i32 = arith.constant 0 : i32
    %c0_i32_0 = arith.constant 0 : i32
    %c0_i32_1 = arith.constant 0 : i32
    return %c0_i32, %c0_i32_0 : i32, i32
  }
  func.func @transform_5(%arg0: i32) -> (i32, i32) {
    %c0_i32 = arith.constant 0 : i32
    %c0_i32_0 = arith.constant 0 : i32
    %c0_i32_1 = arith.constant 0 : i32
    return %c0_i32, %c0_i32_0 : i32, i32
  }
  func.func @transform_6(%arg0: i32) -> (i32, i32) {
    %c0_i32 = arith.constant 0 : i32
    %c0_i32_0 = arith.constant 0 : i32
    %c0_i32_1 = arith.constant 0 : i32
    return %c0_i32, %c0_i32_0 : i32, i32
  }
  func.func @transform_7(%arg0: i32) -> (i32, i32) {
    %c0_i32 = arith.constant 0 : i32
    %c0_i32_0 = arith.constant 0 : i32
    return %arg0, %c0_i32 : i32, i32
  }
}

</mosaic_0001>

<llo_original>
// kernel: tpu_custom_call.1
$region0: #{tpu_custom_call.1}
  #allocation0 [shape = 'u32[]', space=smem, size = 0x4, offset = 0x4, fixed_abs, tag = 'smem constant byte address 0x4 - core index']
  #allocation1 [shape = 'u32[144,128]{1,0:T(1,128)}', space=vmem, size = 0x12000, scoped, tag = 'internal scratch']
  %s0 = inlined_call_operand.hbm [shape: bf16[16,128], index: 0, kind: input, shape index: {}]
  %s1 = inlined_call_operand.hbm [shape: bf16[128,1280], index: 1, kind: input, shape index: {}]
  %s2 = inlined_call_operand.hbm [shape: f32[1,1280], index: 2, kind: input, shape index: {}]
  %s3 = inlined_call_operand.hbm [shape: bf16[1280,1280], index: 3, kind: input, shape index: {}]
  %s4 = inlined_call_operand.hbm [shape: f32[1,1280], index: 4, kind: input, shape index: {}]
  %s5 = inlined_call_operand.hbm [shape: bf16[1280,128], index: 5, kind: input, shape index: {}]
  %s6 = inlined_call_operand.hbm [shape: f32[1,128], index: 6, kind: input, shape index: {}]
  %s7 = inlined_call_operand.hbm [shape: f32[16,128], index: 7, kind: output, shape index: {}]
  %s8 = sld [smem:[#allocation0]]
  $region66: #{tpu_custom_call.1} parent=0
    _
  %s10 = ssub.s32 1, %s8
  %s11 = scalar_select 0, %s10, %s8
  $region1: #{tpu_custom_call.1} parent=0
    #allocation2 [shape = 'u8[4096]{0}', space=vmem, size = 0x1000, scoped, tag = 'input window, operand 0, single buffered']
    #allocation3 [shape = 's32[1]{0}', space=sflag, size = 0x4, scoped, tag = 'scoped memory for tpu_custom_call.1']
    #allocation4 [shape = 's32[1]{0}', space=sflag, size = 0x4, scoped, tag = 'scoped memory for tpu_custom_call.1']
    #allocation5 [shape = 'u8[327680]{0}', space=vmem, size = 0x50000, scoped, tag = 'input window, operand 1, single buffered']
    #allocation6 [shape = 's32[1]{0}', space=sflag, size = 0x4, scoped, tag = 'scoped memory for tpu_custom_call.1']
    #allocation7 [shape = 'u8[5120]{0}', space=vmem, size = 0x1400, scoped, tag = 'input window, operand 2, single buffered']
    #allocation8 [shape = 'u8[3276800]{0}', space=vmem, size = 0x320000, scoped, tag = 'input window, operand 3, single buffered']
    #allocation9 [shape = 's32[1]{0}', space=sflag, size = 0x4, scoped, tag = 'scoped memory for tpu_custom_call.1']
    #allocation10 [shape = 'u8[5120]{0}', space=vmem, size = 0x1400, scoped, tag = 'input window, operand 4, single buffered']
    #allocation11 [shape = 'u8[327680]{0}', space=vmem, size = 0x50000, scoped, tag = 'input window, operand 5, single buffered']
    #allocation12 [shape = 's32[1]{0}', space=sflag, size = 0x4, scoped, tag = 'scoped memory for tpu_custom_call.1']
    #allocation13 [shape = 'u8[512]{0}', space=vmem, size = 0x400, scoped, tag = 'input window, operand 6, single buffered']
    #allocation14 [shape = 'u8[8192]{0}', space=vmem, size = 0x2000, scoped, tag = 'output window, operand 0, single buffered']
    %12 = vsyncpa [#allocation3], 0
    %13 = vsyncpa [#allocation6], 0
    %14 = vsyncpa [#allocation9], 0
    %15 = vsyncpa [#allocation12], 0
    %16 = vsyncpa [#allocation4], 0
    // Predicated region
    $region2: #{tpu_custom_call.1} parent=1 // pred_check
      _
    $region3: #{tpu_custom_call.1} parent=1 // pred_check_branch
      %18 = sbr.rel (0) target = $region5
    $region4: #{tpu_custom_call.1} parent=1 // pred_region
      %s20 = ssub.s32 128, 128
      %21 = vsyncadd [#allocation3], %s20
      %s22 = sshll.u32 [#allocation2], 4
      %s23 = int_to_ptr.vmem [resolvable:$true] %s22
      %28 = dma.hbm_to_vmem [thread:$0]  %s0, 128, %s23, [#allocation3], 64, 64, 4
    $region5: #{tpu_custom_call.1} parent=1 // pred_fallthru
      _
    // Predicated region
    $region6: #{tpu_custom_call.1} parent=1 // pred_check
      _
    $region7: #{tpu_custom_call.1} parent=1 // pred_check_branch
      %30 = sbr.rel (0) target = $region9
    $region8: #{tpu_custom_call.1} parent=1 // pred_region
      %s32 = ssub.s32 10240, 10240
      %33 = vsyncadd [#allocation6], %s32
      %s34 = sshll.u32 [#allocation5], 4
      %s35 = int_to_ptr.vmem [resolvable:$true] %s34
      %40 = dma.hbm_to_vmem [thread:$0]  %s1, 10240, %s35, [#allocation6], 640, 640, 40
    $region9: #{tpu_custom_call.1} parent=1 // pred_fallthru
      _
    // Predicated region
    $region10: #{tpu_custom_call.1} parent=1 // pred_check
      _
    $region11: #{tpu_custom_call.1} parent=1 // pred_check_branch
      %42 = sbr.rel (0) target = $region13
    $region12: #{tpu_custom_call.1} parent=1 // pred_region
      %s44 = ssub.s32 160, 160
      %45 = vsyncadd [#allocation6], %s44
      %s47 = sshll.u32 [#allocation7], 4
      %s48 = int_to_ptr.vmem [resolvable:$true] %s47
      %50 = dma.hbm_to_vmem [thread:$0]  %s2, 160, %s48, [#allocation6]
    $region13: #{tpu_custom_call.1} parent=1 // pred_fallthru
      _
    // Predicated region
    $region14: #{tpu_custom_call.1} parent=1 // pred_check
      _
    $region15: #{tpu_custom_call.1} parent=1 // pred_check_branch
      %52 = sbr.rel (0) target = $region17
    $region16: #{tpu_custom_call.1} parent=1 // pred_region
      %s54 = ssub.s32 102400, 102400
      %55 = vsyncadd [#allocation9], %s54
      %s56 = sshll.u32 [#allocation8], 4
      %s57 = int_to_ptr.vmem [resolvable:$true] %s56
      %62 = dma.hbm_to_vmem [thread:$0]  %s3, 102400, %s57, [#allocation9], 640, 640, 40
    $region17: #{tpu_custom_call.1} parent=1 // pred_fallthru
      _
    // Predicated region
    $region18: #{tpu_custom_call.1} parent=1 // pred_check
      _
    $region19: #{tpu_custom_call.1} parent=1 // pred_check_branch
      %64 = sbr.rel (0) target = $region21
    $region20: #{tpu_custom_call.1} parent=1 // pred_region
      %s66 = ssub.s32 160, 160
      %67 = vsyncadd [#allocation9], %s66
      %s69 = sshll.u32 [#allocation10], 4
      %s70 = int_to_ptr.vmem [resolvable:$true] %s69
      %72 = dma.hbm_to_vmem [thread:$0]  %s4, 160, %s70, [#allocation9]
    $region21: #{tpu_custom_call.1} parent=1 // pred_fallthru
      _
    // Predicated region
    $region22: #{tpu_custom_call.1} parent=1 // pred_check
      _
    $region23: #{tpu_custom_call.1} parent=1 // pred_check_branch
      %74 = sbr.rel (0) target = $region25
    $region24: #{tpu_custom_call.1} parent=1 // pred_region
      %s76 = ssub.s32 10240, 10240
      %77 = vsyncadd [#allocation12], %s76
      %s78 = sshll.u32 [#allocation11], 4
      %s79 = int_to_ptr.vmem [resolvable:$true] %s78
      %84 = dma.hbm_to_vmem [thread:$0]  %s5, 10240, %s79, [#allocation12], 64, 64, 4
    $region25: #{tpu_custom_call.1} parent=1 // pred_fallthru
      _
    // Predicated region
    $region26: #{tpu_custom_call.1} parent=1 // pred_check
      _
    $region27: #{tpu_custom_call.1} parent=1 // pred_check_branch
      %86 = sbr.rel (0) target = $region29
    $region28: #{tpu_custom_call.1} parent=1 // pred_region
      %s88 = ssub.s32 16, 16
      %89 = vsyncadd [#allocation12], %s88
      %s91 = sshll.u32 [#allocation13], 4
      %s92 = int_to_ptr.vmem [resolvable:$true] %s91
      %94 = dma.hbm_to_vmem [thread:$0]  %s6, 16, %s92, [#allocation12]
    $region29: #{tpu_custom_call.1} parent=1 // pred_fallthru
      _
    // Predicated region
    $region30: #{tpu_custom_call.1} parent=1 // pred_check
      _
    $region31: #{tpu_custom_call.1} parent=1 // pred_check_branch
      %96 = sbr.rel (0) target = $region33
    $region32: #{tpu_custom_call.1} parent=1 // pred_region
      %97 = dma.done [#allocation3], 128
    $region33: #{tpu_custom_call.1} parent=1 // pred_fallthru
      _
    // Predicated region
    $region34: #{tpu_custom_call.1} parent=1 // pred_check
      _
    $region35: #{tpu_custom_call.1} parent=1 // pred_check_branch
      %99 = sbr.rel (0) target = $region37
    $region36: #{tpu_custom_call.1} parent=1 // pred_region
      %100 = dma.done [#allocation6], 10240
    $region37: #{tpu_custom_call.1} parent=1 // pred_fallthru
      _
    // Predicated region
    $region38: #{tpu_custom_call.1} parent=1 // pred_check
      _
    $region39: #{tpu_custom_call.1} parent=1 // pred_check_branch
      %102 = sbr.rel (0) target = $region41
    $region40: #{tpu_custom_call.1} parent=1 // pred_region
      %103 = dma.done [#allocation6], 160
    $region41: #{tpu_custom_call.1} parent=1 // pred_fallthru
      _
    // Predicated region
    $region42: #{tpu_custom_call.1} parent=1 // pred_check
      _
    $region43: #{tpu_custom_call.1} parent=1 // pred_check_branch
      %105 = sbr.rel (0) target = $region45
    $region44: #{tpu_custom_call.1} parent=1 // pred_region
      %106 = dma.done [#allocation9], 102400
    $region45: #{tpu_custom_call.1} parent=1 // pred_fallthru
      _
    // Predicated region
    $region46: #{tpu_custom_call.1} parent=1 // pred_check
      _
    $region47: #{tpu_custom_call.1} parent=1 // pred_check_branch
      %108 = sbr.rel (0) target = $region49
    $region48: #{tpu_custom_call.1} parent=1 // pred_region
      %109 = dma.done [#allocation9], 160
    $region49: #{tpu_custom_call.1} parent=1 // pred_fallthru
      _
    // Predicated region
    $region50: #{tpu_custom_call.1} parent=1 // pred_check
      _
    $region51: #{tpu_custom_call.1} parent=1 // pred_check_branch
      %111 = sbr.rel (0) target = $region53
    $region52: #{tpu_custom_call.1} parent=1 // pred_region
      %112 = dma.done [#allocation12], 10240
    $region53: #{tpu_custom_call.1} parent=1 // pred_fallthru
      _
    // Predicated region
    $region54: #{tpu_custom_call.1} parent=1 // pred_check
      _
    $region55: #{tpu_custom_call.1} parent=1 // pred_check_branch
      %114 = sbr.rel (0) target = $region57
    $region56: #{tpu_custom_call.1} parent=1 // pred_region
      %115 = dma.done [#allocation12], 16
    $region57: #{tpu_custom_call.1} parent=1 // pred_fallthru
      _
    %v117 = vld [vmem:[#allocation2] sm:$0xf]
    %v118 = vld [vmem:[#allocation2 + $0x4] sm:$0xf]
    %v119 = vld [vmem:[#allocation5] sm:$0xff]
    %v120 = vld [vmem:[#allocation5 + $0x8] sm:$0xff]
    %v121 = vld [vmem:[#allocation5 + $0x10] sm:$0xff]
    %v122 = vld [vmem:[#allocation5 + $0x18] sm:$0xff]
    %v123 = vld [vmem:[#allocation5 + $0x20] sm:$0xff]
    %v124 = vld [vmem:[#allocation5 + $0x28] sm:$0xff]
    %v125 = vld [vmem:[#allocation5 + $0x30] sm:$0xff]
    %v126 = vld [vmem:[#allocation5 + $0x38] sm:$0xff]
    %v127 = vld [vmem:[#allocation5 + $0x40] sm:$0xff]
    %v128 = vld [vmem:[#allocation5 + $0x48] sm:$0xff]
    %v129 = vld [vmem:[#allocation5 + $0x50] sm:$0xff]
    %v130 = vld [vmem:[#allocation5 + $0x58] sm:$0xff]
    %v131 = vld [vmem:[#allocation5 + $0x60] sm:$0xff]
    %v132 = vld [vmem:[#allocation5 + $0x68] sm:$0xff]
    %v133 = vld [vmem:[#allocation5 + $0x70] sm:$0xff]
    %v134 = vld [vmem:[#allocation5 + $0x78] sm:$0xff]
    %v135 = vld [vmem:[#allocation5 + $0x80] sm:$0xff]
    %v136 = vld [vmem:[#allocation5 + $0x88] sm:$0xff]
    %v137 = vld [vmem:[#allocation5 + $0x90] sm:$0xff]
    %v138 = vld [vmem:[#allocation5 + $0x98] sm:$0xff]
    %v139 = vld [vmem:[#allocation5 + $0xa0] sm:$0xff]
    %v140 = vld [vmem:[#allocation5 + $0xa8] sm:$0xff]
    %v141 = vld [vmem:[#allocation5 + $0xb0] sm:$0xff]
    %v142 = vld [vmem:[#allocation5 + $0xb8] sm:$0xff]
    %v143 = vld [vmem:[#allocation5 + $0xc0] sm:$0xff]
    %v144 = vld [vmem:[#allocation5 + $0xc8] sm:$0xff]
    %v145 = vld [vmem:[#allocation5 + $0xd0] sm:$0xff]
    %v146 = vld [vmem:[#allocation5 + $0xd8] sm:$0xff]
    %v147 = vld [vmem:[#allocation5 + $0xe0] sm:$0xff]
    %v148 = vld [vmem:[#allocation5 + $0xe8] sm:$0xff]
    %v149 = vld [vmem:[#allocation5 + $0xf0] sm:$0xff]
    %v150 = vld [vmem:[#allocation5 + $0xf8] sm:$0xff]
    %v151 = vld [vmem:[#allocation5 + $0x100] sm:$0xff]
    %v152 = vld [vmem:[#allocation5 + $0x108] sm:$0xff]
    %v153 = vld [vmem:[#allocation5 + $0x110] sm:$0xff]
    %v154 = vld [vmem:[#allocation5 + $0x118] sm:$0xff]
    %v155 = vld [vmem:[#allocation5 + $0x120] sm:$0xff]
    %v156 = vld [vmem:[#allocation5 + $0x128] sm:$0xff]
    %v157 = vld [vmem:[#allocation5 + $0x130] sm:$0xff]
    %v158 = vld [vmem:[#allocation5 + $0x138] sm:$0xff]
    %v159 = vld [vmem:[#allocation5 + $0x140] sm:$0xff]
    %v160 = vld [vmem:[#allocation5 + $0x148] sm:$0xff]
    %v161 = vld [vmem:[#allocation5 + $0x150] sm:$0xff]
    %v162 = vld [vmem:[#allocation5 + $0x158] sm:$0xff]
    %v163 = vld [vmem:[#allocation5 + $0x160] sm:$0xff]
    %v164 = vld [vmem:[#allocation5 + $0x168] sm:$0xff]
    %v165 = vld [vmem:[#allocation5 + $0x170] sm:$0xff]
    %v166 = vld [vmem:[#allocation5 + $0x178] sm:$0xff]
    %v167 = vld [vmem:[#allocation5 + $0x180] sm:$0xff]
    %v168 = vld [vmem:[#allocation5 + $0x188] sm:$0xff]
    %v169 = vld [vmem:[#allocation5 + $0x190] sm:$0xff]
    %v170 = vld [vmem:[#allocation5 + $0x198] sm:$0xff]
    %v171 = vld [vmem:[#allocation5 + $0x1a0] sm:$0xff]
    %v172 = vld [vmem:[#allocation5 + $0x1a8] sm:$0xff]
    %v173 = vld [vmem:[#allocation5 + $0x1b0] sm:$0xff]
    %v174 = vld [vmem:[#allocation5 + $0x1b8] sm:$0xff]
    %v175 = vld [vmem:[#allocation5 + $0x1c0] sm:$0xff]
    %v176 = vld [vmem:[#allocation5 + $0x1c8] sm:$0xff]
    %v177 = vld [vmem:[#allocation5 + $0x1d0] sm:$0xff]
    %v178 = vld [vmem:[#allocation5 + $0x1d8] sm:$0xff]
    %v179 = vld [vmem:[#allocation5 + $0x1e0] sm:$0xff]
    %v180 = vld [vmem:[#allocation5 + $0x1e8] sm:$0xff]
    %v181 = vld [vmem:[#allocation5 + $0x1f0] sm:$0xff]
    %v182 = vld [vmem:[#allocation5 + $0x1f8] sm:$0xff]
    %v183 = vld [vmem:[#allocation5 + $0x200] sm:$0xff]
    %v184 = vld [vmem:[#allocation5 + $0x208] sm:$0xff]
    %v185 = vld [vmem:[#allocation5 + $0x210] sm:$0xff]
    %v186 = vld [vmem:[#allocation5 + $0x218] sm:$0xff]
    %v187 = vld [vmem:[#allocation5 + $0x220] sm:$0xff]
    %v188 = vld [vmem:[#allocation5 + $0x228] sm:$0xff]
    %v189 = vld [vmem:[#allocation5 + $0x230] sm:$0xff]
    %v190 = vld [vmem:[#allocation5 + $0x238] sm:$0xff]
    %v191 = vld [vmem:[#allocation5 + $0x240] sm:$0xff]
    %v192 = vld [vmem:[#allocation5 + $0x248] sm:$0xff]
    %v193 = vld [vmem:[#allocation5 + $0x250] sm:$0xff]
    %v194 = vld [vmem:[#allocation5 + $0x258] sm:$0xff]
    %v195 = vld [vmem:[#allocation5 + $0x260] sm:$0xff]
    %v196 = vld [vmem:[#allocation5 + $0x268] sm:$0xff]
    %v197 = vld [vmem:[#allocation5 + $0x270] sm:$0xff]
    %v198 = vld [vmem:[#allocation5 + $0x278] sm:$0xff]
    %v199 = vld [vmem:[#allocation7] sm:$0xff]
    %v200 = vld [vmem:[#allocation7 + $0x8] sm:$0x3]
    %v203 = vlaneseq
    %v204 = vshrl.u32 %v203, 7
    %v205 = vsub.s32 0, %v204
    %v206 = vrot.slane %v199, %v205
    %v207 = vlaneseq
    %v208 = vshrl.u32 %v207, 7
    %v209 = vsub.s32 1, %v208
    %v210 = vrot.slane %v199, %v209
    %v211 = vlaneseq
    %v212 = vshrl.u32 %v211, 7
    %v213 = vsub.s32 2, %v212
    %v214 = vrot.slane %v199, %v213
    %v215 = vlaneseq
    %v216 = vshrl.u32 %v215, 7
    %v217 = vsub.s32 3, %v216
    %v218 = vrot.slane %v199, %v217
    %v219 = vlaneseq
    %v220 = vshrl.u32 %v219, 7
    %v221 = vsub.s32 4, %v220
    %v222 = vrot.slane %v199, %v221
    %v223 = vlaneseq
    %v224 = vshrl.u32 %v223, 7
    %v225 = vsub.s32 5, %v224
    %v226 = vrot.slane %v199, %v225
    %v227 = vlaneseq
    %v228 = vshrl.u32 %v227, 7
    %v229 = vsub.s32 6, %v228
    %v230 = vrot.slane %v199, %v229
    %v231 = vlaneseq
    %v232 = vshrl.u32 %v231, 7
    %v233 = vsub.s32 7, %v232
    %v234 = vrot.slane %v199, %v233
    %v235 = vlaneseq
    %v236 = vshrl.u32 %v235, 7
    %v237 = vsub.s32 0, %v236
    %v238 = vrot.slane %v200, %v237
    %v239 = vlaneseq
    %v240 = vshrl.u32 %v239, 7
    %v241 = vsub.s32 1, %v240
    %v242 = vrot.slane %v200, %v241
    %v255 = vunpack.c.l.b16 %v117
    %v256 = vunpack.c.l.b16 %v118
    %v257 = vpack.c.b16 %v256, %v255
    %v339 = vunpack.c.l.b16 %v119
    %v340 = vunpack.c.h.b16 %v119
    %v341 = vunpack.c.l.b16 %v120
    %v342 = vunpack.c.h.b16 %v120
    %v343 = vunpack.c.l.b16 %v121
    %v344 = vunpack.c.h.b16 %v121
    %v345 = vunpack.c.l.b16 %v122
    %v346 = vunpack.c.h.b16 %v122
    %v347 = vunpack.c.l.b16 %v123
    %v348 = vunpack.c.h.b16 %v123
    %v349 = vunpack.c.l.b16 %v124
    %v350 = vunpack.c.h.b16 %v124
    %v351 = vunpack.c.l.b16 %v125
    %v352 = vunpack.c.h.b16 %v125
    %v353 = vunpack.c.l.b16 %v126
    %v354 = vunpack.c.h.b16 %v126
    %v355 = vunpack.c.l.b16 %v127
    %v356 = vunpack.c.h.b16 %v127
    %v357 = vunpack.c.l.b16 %v128
    %v358 = vunpack.c.h.b16 %v128
    %v359 = vunpack.c.l.b16 %v129
    %v360 = vunpack.c.h.b16 %v129
    %v361 = vunpack.c.l.b16 %v130
    %v362 = vunpack.c.h.b16 %v130
    %v363 = vunpack.c.l.b16 %v131
    %v364 = vunpack.c.h.b16 %v131
    %v365 = vunpack.c.l.b16 %v132
    %v366 = vunpack.c.h.b16 %v132
    %v367 = vunpack.c.l.b16 %v133
    %v368 = vunpack.c.h.b16 %v133
    %v369 = vunpack.c.l.b16 %v134
    %v370 = vunpack.c.h.b16 %v134
    %v371 = vunpack.c.l.b16 %v135
    %v372 = vunpack.c.h.b16 %v135
    %v373 = vunpack.c.l.b16 %v136
    %v374 = vunpack.c.h.b16 %v136
    %v375 = vunpack.c.l.b16 %v137
    %v376 = vunpack.c.h.b16 %v137
    %v377 = vunpack.c.l.b16 %v138
    %v378 = vunpack.c.h.b16 %v138
    %v379 = vunpack.c.l.b16 %v139
    %v380 = vunpack.c.h.b16 %v139
    %v381 = vunpack.c.l.b16 %v140
    %v382 = vunpack.c.h.b16 %v140
    %v383 = vunpack.c.l.b16 %v141
    %v384 = vunpack.c.h.b16 %v141
    %v385 = vunpack.c.l.b16 %v142
    %v386 = vunpack.c.h.b16 %v142
    %v387 = vunpack.c.l.b16 %v143
    %v388 = vunpack.c.h.b16 %v143
    %v389 = vunpack.c.l.b16 %v144
    %v390 = vunpack.c.h.b16 %v144
    %v391 = vunpack.c.l.b16 %v145
    %v392 = vunpack.c.h.b16 %v145
    %v393 = vunpack.c.l.b16 %v146
    %v394 = vunpack.c.h.b16 %v146
    %v395 = vunpack.c.l.b16 %v147
    %v396 = vunpack.c.h.b16 %v147
    %v397 = vunpack.c.l.b16 %v148
    %v398 = vunpack.c.h.b16 %v148
    %v399 = vunpack.c.l.b16 %v149
    %v400 = vunpack.c.h.b16 %v149
    %v401 = vunpack.c.l.b16 %v150
    %v402 = vunpack.c.h.b16 %v150
    %v403 = vunpack.c.l.b16 %v151
    %v404 = vunpack.c.h.b16 %v151
    %v405 = vunpack.c.l.b16 %v152
    %v406 = vunpack.c.h.b16 %v152
    %v407 = vunpack.c.l.b16 %v153
    %v408 = vunpack.c.h.b16 %v153
    %v409 = vunpack.c.l.b16 %v154
    %v410 = vunpack.c.h.b16 %v154
    %v411 = vunpack.c.l.b16 %v155
    %v412 = vunpack.c.h.b16 %v155
    %v413 = vunpack.c.l.b16 %v156
    %v414 = vunpack.c.h.b16 %v156
    %v415 = vunpack.c.l.b16 %v157
    %v416 = vunpack.c.h.b16 %v157
    %v417 = vunpack.c.l.b16 %v158
    %v418 = vunpack.c.h.b16 %v158
    %v419 = vunpack.c.l.b16 %v159
    %v420 = vunpack.c.h.b16 %v159
    %v421 = vunpack.c.l.b16 %v160
    %v422 = vunpack.c.h.b16 %v160
    %v423 = vunpack.c.l.b16 %v161
    %v424 = vunpack.c.h.b16 %v161
    %v425 = vunpack.c.l.b16 %v162
    %v426 = vunpack.c.h.b16 %v162
    %v427 = vunpack.c.l.b16 %v163
    %v428 = vunpack.c.h.b16 %v163
    %v429 = vunpack.c.l.b16 %v164
    %v430 = vunpack.c.h.b16 %v164
    %v431 = vunpack.c.l.b16 %v165
    %v432 = vunpack.c.h.b16 %v165
    %v433 = vunpack.c.l.b16 %v166
    %v434 = vunpack.c.h.b16 %v166
    %v435 = vunpack.c.l.b16 %v167
    %v436 = vunpack.c.h.b16 %v167
    %v437 = vunpack.c.l.b16 %v168
    %v438 = vunpack.c.h.b16 %v168
    %v439 = vunpack.c.l.b16 %v169
    %v440 = vunpack.c.h.b16 %v169
    %v441 = vunpack.c.l.b16 %v170
    %v442 = vunpack.c.h.b16 %v170
    %v443 = vunpack.c.l.b16 %v171
    %v444 = vunpack.c.h.b16 %v171
    %v445 = vunpack.c.l.b16 %v172
    %v446 = vunpack.c.h.b16 %v172
    %v447 = vunpack.c.l.b16 %v173
    %v448 = vunpack.c.h.b16 %v173
    %v449 = vunpack.c.l.b16 %v174
    %v450 = vunpack.c.h.b16 %v174
    %v451 = vunpack.c.l.b16 %v175
    %v452 = vunpack.c.h.b16 %v175
    %v453 = vunpack.c.l.b16 %v176
    %v454 = vunpack.c.h.b16 %v176
    %v455 = vunpack.c.l.b16 %v177
    %v456 = vunpack.c.h.b16 %v177
    %v457 = vunpack.c.l.b16 %v178
    %v458 = vunpack.c.h.b16 %v178
    %v459 = vunpack.c.l.b16 %v179
    %v460 = vunpack.c.h.b16 %v179
    %v461 = vunpack.c.l.b16 %v180
    %v462 = vunpack.c.h.b16 %v180
    %v463 = vunpack.c.l.b16 %v181
    %v464 = vunpack.c.h.b16 %v181
    %v465 = vunpack.c.l.b16 %v182
    %v466 = vunpack.c.h.b16 %v182
    %v467 = vunpack.c.l.b16 %v183
    %v468 = vunpack.c.h.b16 %v183
    %v469 = vunpack.c.l.b16 %v184
    %v470 = vunpack.c.h.b16 %v184
    %v471 = vunpack.c.l.b16 %v185
    %v472 = vunpack.c.h.b16 %v185
    %v473 = vunpack.c.l.b16 %v186
    %v474 = vunpack.c.h.b16 %v186
    %v475 = vunpack.c.l.b16 %v187
    %v476 = vunpack.c.h.b16 %v187
    %v477 = vunpack.c.l.b16 %v188
    %v478 = vunpack.c.h.b16 %v188
    %v479 = vunpack.c.l.b16 %v189
    %v480 = vunpack.c.h.b16 %v189
    %v481 = vunpack.c.l.b16 %v190
    %v482 = vunpack.c.h.b16 %v190
    %v483 = vunpack.c.l.b16 %v191
    %v484 = vunpack.c.h.b16 %v191
    %v485 = vunpack.c.l.b16 %v192
    %v486 = vunpack.c.h.b16 %v192
    %v487 = vunpack.c.l.b16 %v193
    %v488 = vunpack.c.h.b16 %v193
    %v489 = vunpack.c.l.b16 %v194
    %v490 = vunpack.c.h.b16 %v194
    %v491 = vunpack.c.l.b16 %v195
    %v492 = vunpack.c.h.b16 %v195
    %v493 = vunpack.c.l.b16 %v196
    %v494 = vunpack.c.h.b16 %v196
    %v495 = vunpack.c.l.b16 %v197
    %v496 = vunpack.c.h.b16 %v197
    %v497 = vunpack.c.l.b16 %v198
    %v498 = vunpack.c.h.b16 %v198
    %v499 = vpack.c.b16 %v349, %v339
    %v500 = vpack.c.b16 %v350, %v340
    %v501 = vpack.c.b16 %v351, %v341
    %v502 = vpack.c.b16 %v352, %v342
    %v503 = vpack.c.b16 %v353, %v343
    %v504 = vpack.c.b16 %v354, %v344
    %v505 = vpack.c.b16 %v355, %v345
    %v506 = vpack.c.b16 %v356, %v346
    %v507 = vpack.c.b16 %v357, %v347
    %v508 = vpack.c.b16 %v358, %v348
    %v509 = vpack.c.b16 %v369, %v359
    %v510 = vpack.c.b16 %v370, %v360
    %v511 = vpack.c.b16 %v371, %v361
    %v512 = vpack.c.b16 %v372, %v362
    %v513 = vpack.c.b16 %v373, %v363
    %v514 = vpack.c.b16 %v374, %v364
    %v515 = vpack.c.b16 %v375, %v365
    %v516 = vpack.c.b16 %v376, %v366
    %v517 = vpack.c.b16 %v377, %v367
    %v518 = vpack.c.b16 %v378, %v368
    %v519 = vpack.c.b16 %v389, %v379
    %v520 = vpack.c.b16 %v390, %v380
    %v521 = vpack.c.b16 %v391, %v381
    %v522 = vpack.c.b16 %v392, %v382
    %v523 = vpack.c.b16 %v393, %v383
    %v524 = vpack.c.b16 %v394, %v384
    %v525 = vpack.c.b16 %v395, %v385
    %v526 = vpack.c.b16 %v396, %v386
    %v527 = vpack.c.b16 %v397, %v387
    %v528 = vpack.c.b16 %v398, %v388
    %v529 = vpack.c.b16 %v409, %v399
    %v530 = vpack.c.b16 %v410, %v400
    %v531 = vpack.c.b16 %v411, %v401
    %v532 = vpack.c.b16 %v412, %v402
    %v533 = vpack.c.b16 %v413, %v403
    %v534 = vpack.c.b16 %v414, %v404
    %v535 = vpack.c.b16 %v415, %v405
    %v536 = vpack.c.b16 %v416, %v406
    %v537 = vpack.c.b16 %v417, %v407
    %v538 = vpack.c.b16 %v418, %v408
    %v539 = vpack.c.b16 %v429, %v419
    %v540 = vpack.c.b16 %v430, %v420
    %v541 = vpack.c.b16 %v431, %v421
    %v542 = vpack.c.b16 %v432, %v422
    %v543 = vpack.c.b16 %v433, %v423
    %v544 = vpack.c.b16 %v434, %v424
    %v545 = vpack.c.b16 %v435, %v425
    %v546 = vpack.c.b16 %v436, %v426
    %v547 = vpack.c.b16 %v437, %v427
    %v548 = vpack.c.b16 %v438, %v428
    %v549 = vpack.c.b16 %v449, %v439
    %v550 = vpack.c.b16 %v450, %v440
    %v551 = vpack.c.b16 %v451, %v441
    %v552 = vpack.c.b16 %v452, %v442
    %v553 = vpack.c.b16 %v453, %v443
    %v554 = vpack.c.b16 %v454, %v444
    %v555 = vpack.c.b16 %v455, %v445
    %v556 = vpack.c.b16 %v456, %v446
    %v557 = vpack.c.b16 %v457, %v447
    %v558 = vpack.c.b16 %v458, %v448
    %v559 = vpack.c.b16 %v469, %v459
    %v560 = vpack.c.b16 %v470, %v460
    %v561 = vpack.c.b16 %v471, %v461
    %v562 = vpack.c.b16 %v472, %v462
    %v563 = vpack.c.b16 %v473, %v463
    %v564 = vpack.c.b16 %v474, %v464
    %v565 = vpack.c.b16 %v475, %v465
    %v566 = vpack.c.b16 %v476, %v466
    %v567 = vpack.c.b16 %v477, %v467
    %v568 = vpack.c.b16 %v478, %v468
    %v569 = vpack.c.b16 %v489, %v479
    %v570 = vpack.c.b16 %v490, %v480
    %v571 = vpack.c.b16 %v491, %v481
    %v572 = vpack.c.b16 %v492, %v482
    %v573 = vpack.c.b16 %v493, %v483
    %v574 = vpack.c.b16 %v494, %v484
    %v575 = vpack.c.b16 %v495, %v485
    %v576 = vpack.c.b16 %v496, %v486
    %v577 = vpack.c.b16 %v497, %v487
    %v578 = vpack.c.b16 %v498, %v488
    %659 = vmatprep.subr.bf16.mxu0 %v570
    %660 = vmatpush1.bf16.msra.mxu0 %v569
    %661 = vmatprep.subr.bf16.mxu0 %v560
    %662 = vmatpush1.bf16.msra.mxu0 %v559
    %663 = vmatprep.subr.bf16.mxu0 %v550
    %664 = vmatpush1.bf16.msra.mxu0 %v549
    %665 = vmatprep.subr.bf16.mxu0 %v540
    %666 = vmatpush1.bf16.msra.mxu0 %v539
    %667 = vmatprep.subr.bf16.mxu0 %v530
    %668 = vmatpush1.bf16.msra.mxu0 %v529
    %669 = vmatprep.subr.bf16.mxu0 %v520
    %670 = vmatpush1.bf16.msra.mxu0 %v519
    %671 = vmatprep.subr.bf16.mxu0 %v510
    %672 = vmatpush1.bf16.msra.mxu0 %v509
    %673 = vmatprep.subr.bf16.mxu0 %v500
    %674 = vmatpush1.bf16.msra.mxu0 %v499
    %675 = vmatprep.subr.bf16.mxu0 0
    %676 = vmatpush2.bf16.msra.mxu0 0
    %677 = vmatprep.subr.bf16.mxu0 0
    %678 = vmatpush2.bf16.msra.mxu0 0
    %679 = vmatprep.subr.bf16.mxu0 0
    %680 = vmatpush2.bf16.msra.mxu0 0
    %681 = vmatprep.subr.bf16.mxu0 0
    %682 = vmatpush2.bf16.msra.mxu0 0
    %683 = vmatprep.subr.bf16.mxu0 0
    %684 = vmatpush2.bf16.msra.mxu0 0
    %685 = vmatprep.subr.bf16.mxu0 0
    %686 = vmatpush2.bf16.msra.mxu0 0
    %687 = vmatprep.subr.bf16.mxu0 0
    %688 = vmatpush2.bf16.msra.mxu0 0
    %689 = vmatprep.subr.bf16.mxu0 0
    %690 = vmatpush2.bf16.msra.mxu0 0
    %691 = vmatprep.mubr.bf16.mxu0 0
    %692 = vmatmul.mubr.bf16.gmra.mxu0 %v257
    %v693 = vpop.f32.mrf.mxu0
    %v694 = vadd.f32 %v206, %v693
    %v695 = vpop.f32.mrf.mxu0
    %v696 = vadd.f32 %v210, %v695
    %v697 = vpop.f32.mrf.mxu0
    %v698 = vadd.f32 %v206, %v697
    %v699 = vpop.f32.mrf.mxu0
    %v700 = vadd.f32 %v210, %v699
    %701 = vdwg.mxu0
    %702 = vmatprep.subr.bf16.mxu0 %v572
    %703 = vmatpush1.bf16.msra.mxu0 %v571
    %704 = vmatprep.subr.bf16.mxu0 %v562
    %705 = vmatpush1.bf16.msra.mxu0 %v561
    %706 = vmatprep.subr.bf16.mxu0 %v552
    %707 = vmatpush1.bf16.msra.mxu0 %v551
    %708 = vmatprep.subr.bf16.mxu0 %v542
    %709 = vmatpush1.bf16.msra.mxu0 %v541
    %710 = vmatprep.subr.bf16.mxu0 %v532
    %711 = vmatpush1.bf16.msra.mxu0 %v531
    %712 = vmatprep.subr.bf16.mxu0 %v522
    %713 = vmatpush1.bf16.msra.mxu0 %v521
    %714 = vmatprep.subr.bf16.mxu0 %v512
    %715 = vmatpush1.bf16.msra.mxu0 %v511
    %716 = vmatprep.subr.bf16.mxu0 %v502
    %717 = vmatpush1.bf16.msra.mxu0 %v501
    %718 = vmatprep.subr.bf16.mxu0 0
    %719 = vmatpush2.bf16.msra.mxu0 0
    %720 = vmatprep.subr.bf16.mxu0 0
    %721 = vmatpush2.bf16.msra.mxu0 0
    %722 = vmatprep.subr.bf16.mxu0 0
    %723 = vmatpush2.bf16.msra.mxu0 0
    %724 = vmatprep.subr.bf16.mxu0 0
    %725 = vmatpush2.bf16.msra.mxu0 0
    %726 = vmatprep.subr.bf16.mxu0 0
    %727 = vmatpush2.bf16.msra.mxu0 0
    %728 = vmatprep.subr.bf16.mxu0 0
    %729 = vmatpush2.bf16.msra.mxu0 0
    %730 = vmatprep.subr.bf16.mxu0 0
    %731 = vmatpush2.bf16.msra.mxu0 0
    %732 = vmatprep.subr.bf16.mxu0 0
    %733 = vmatpush2.bf16.msra.mxu0 0
    %734 = vmatprep.mubr.bf16.mxu0 0
    %735 = vmatmul.mubr.bf16.gmra.mxu0 %v257
    %v736 = vpop.f32.mrf.mxu0
    %v737 = vadd.f32 %v214, %v736
    %v738 = vpop.f32.mrf.mxu0
    %v739 = vadd.f32 %v218, %v738
    %v740 = vpop.f32.mrf.mxu0
    %v741 = vadd.f32 %v214, %v740
    %v742 = vpop.f32.mrf.mxu0
    %v743 = vadd.f32 %v218, %v742
    %744 = vdwg.mxu0
    %745 = vmatprep.subr.bf16.mxu0 %v574
    %746 = vmatpush1.bf16.msra.mxu0 %v573
    %747 = vmatprep.subr.bf16.mxu0 %v564
    %748 = vmatpush1.bf16.msra.mxu0 %v563
    %749 = vmatprep.subr.bf16.mxu0 %v554
    %750 = vmatpush1.bf16.msra.mxu0 %v553
    %751 = vmatprep.subr.bf16.mxu0 %v544
    %752 = vmatpush1.bf16.msra.mxu0 %v543
    %753 = vmatprep.subr.bf16.mxu0 %v534
    %754 = vmatpush1.bf16.msra.mxu0 %v533
    %755 = vmatprep.subr.bf16.mxu0 %v524
    %756 = vmatpush1.bf16.msra.mxu0 %v523
    %757 = vmatprep.subr.bf16.mxu0 %v514
    %758 = vmatpush1.bf16.msra.mxu0 %v513
    %759 = vmatprep.subr.bf16.mxu0 %v504
    %760 = vmatpush1.bf16.msra.mxu0 %v503
    %761 = vmatprep.subr.bf16.mxu0 0
    %762 = vmatpush2.bf16.msra.mxu0 0
    %763 = vmatprep.subr.bf16.mxu0 0
    %764 = vmatpush2.bf16.msra.mxu0 0
    %765 = vmatprep.subr.bf16.mxu0 0
    %766 = vmatpush2.bf16.msra.mxu0 0
    %767 = vmatprep.subr.bf16.mxu0 0
    %768 = vmatpush2.bf16.msra.mxu0 0
    %769 = vmatprep.subr.bf16.mxu0 0
    %770 = vmatpush2.bf16.msra.mxu0 0
    %771 = vmatprep.subr.bf16.mxu0 0
    %772 = vmatpush2.bf16.msra.mxu0 0
    %773 = vmatprep.subr.bf16.mxu0 0
    %774 = vmatpush2.bf16.msra.mxu0 0
    %775 = vmatprep.subr.bf16.mxu0 0
    %776 = vmatpush2.bf16.msra.mxu0 0
    %777 = vmatprep.mubr.bf16.mxu0 0
    %778 = vmatmul.mubr.bf16.gmra.mxu0 %v257
    %v779 = vpop.f32.mrf.mxu0
    %v780 = vadd.f32 %v222, %v779
    %v781 = vpop.f32.mrf.mxu0
    %v782 = vadd.f32 %v226, %v781
    %v783 = vpop.f32.mrf.mxu0
    %v784 = vadd.f32 %v222, %v783
    %v785 = vpop.f32.mrf.mxu0
    %v786 = vadd.f32 %v226, %v785
    %787 = vdwg.mxu0
    %788 = vmatprep.subr.bf16.mxu0 %v576
    %789 = vmatpush1.bf16.msra.mxu0 %v575
    %790 = vmatprep.subr.bf16.mxu0 %v566
    %791 = vmatpush1.bf16.msra.mxu0 %v565
    %792 = vmatprep.subr.bf16.mxu0 %v556
    %793 = vmatpush1.bf16.msra.mxu0 %v555
    %794 = vmatprep.subr.bf16.mxu0 %v546
    %795 = vmatpush1.bf16.msra.mxu0 %v545
    %796 = vmatprep.subr.bf16.mxu0 %v536
    %797 = vmatpush1.bf16.msra.mxu0 %v535
    %798 = vmatprep.subr.bf16.mxu0 %v526
    %799 = vmatpush1.bf16.msra.mxu0 %v525
    %800 = vmatprep.subr.bf16.mxu0 %v516
    %801 = vmatpush1.bf16.msra.mxu0 %v515
    %802 = vmatprep.subr.bf16.mxu0 %v506
    %803 = vmatpush1.bf16.msra.mxu0 %v505
    %804 = vmatprep.subr.bf16.mxu0 0
    %805 = vmatpush2.bf16.msra.mxu0 0
    %806 = vmatprep.subr.bf16.mxu0 0
    %807 = vmatpush2.bf16.msra.mxu0 0
    %808 = vmatprep.subr.bf16.mxu0 0
    %809 = vmatpush2.bf16.msra.mxu0 0
    %810 = vmatprep.subr.bf16.mxu0 0
    %811 = vmatpush2.bf16.msra.mxu0 0
    %812 = vmatprep.subr.bf16.mxu0 0
    %813 = vmatpush2.bf16.msra.mxu0 0
    %814 = vmatprep.subr.bf16.mxu0 0
    %815 = vmatpush2.bf16.msra.mxu0 0
    %816 = vmatprep.subr.bf16.mxu0 0
    %817 = vmatpush2.bf16.msra.mxu0 0
    %818 = vmatprep.subr.bf16.mxu0 0
    %819 = vmatpush2.bf16.msra.mxu0 0
    %820 = vmatprep.mubr.bf16.mxu0 0
    %821 = vmatmul.mubr.bf16.gmra.mxu0 %v257
    %v822 = vpop.f32.mrf.mxu0
    %v823 = vadd.f32 %v230, %v822
    %v824 = vpop.f32.mrf.mxu0
    %v825 = vadd.f32 %v234, %v824
    %v826 = vpop.f32.mrf.mxu0
    %v827 = vadd.f32 %v230, %v826
    %v828 = vpop.f32.mrf.mxu0
    %v829 = vadd.f32 %v234, %v828
    %830 = vdwg.mxu0
    %831 = vmatprep.subr.bf16.mxu0 %v578
    %832 = vmatpush1.bf16.msra.mxu0 %v577
    %833 = vmatprep.subr.bf16.mxu0 %v568
    %834 = vmatpush1.bf16.msra.mxu0 %v567
    %835 = vmatprep.subr.bf16.mxu0 %v558
    %836 = vmatpush1.bf16.msra.mxu0 %v557
    %837 = vmatprep.subr.bf16.mxu0 %v548
    %838 = vmatpush1.bf16.msra.mxu0 %v547
    %839 = vmatprep.subr.bf16.mxu0 %v538
    %840 = vmatpush1.bf16.msra.mxu0 %v537
    %841 = vmatprep.subr.bf16.mxu0 %v528
    %842 = vmatpush1.bf16.msra.mxu0 %v527
    %843 = vmatprep.subr.bf16.mxu0 %v518
    %844 = vmatpush1.bf16.msra.mxu0 %v517
    %845 = vmatprep.subr.bf16.mxu0 %v508
    %846 = vmatpush1.bf16.msra.mxu0 %v507
    %847 = vmatprep.subr.bf16.mxu0 0
    %848 = vmatpush2.bf16.msra.mxu0 0
    %849 = vmatprep.subr.bf16.mxu0 0
    %850 = vmatpush2.bf16.msra.mxu0 0
    %851 = vmatprep.subr.bf16.mxu0 0
    %852 = vmatpush2.bf16.msra.mxu0 0
    %853 = vmatprep.subr.bf16.mxu0 0
    %854 = vmatpush2.bf16.msra.mxu0 0
    %855 = vmatprep.subr.bf16.mxu0 0
    %856 = vmatpush2.bf16.msra.mxu0 0
    %857 = vmatprep.subr.bf16.mxu0 0
    %858 = vmatpush2.bf16.msra.mxu0 0
    %859 = vmatprep.subr.bf16.mxu0 0
    %860 = vmatpush2.bf16.msra.mxu0 0
    %861 = vmatprep.subr.bf16.mxu0 0
    %862 = vmatpush2.bf16.msra.mxu0 0
    %863 = vmatprep.mubr.bf16.mxu0 0
    %864 = vmatmul.mubr.bf16.gmra.mxu0 %v257
    %v865 = vpop.f32.mrf.mxu0
    %v866 = vadd.f32 %v238, %v865
    %v867 = vpop.f32.mrf.mxu0
    %v868 = vadd.f32 %v242, %v867
    %v869 = vpop.f32.mrf.mxu0
    %v870 = vadd.f32 %v238, %v869
    %v871 = vpop.f32.mrf.mxu0
    %v872 = vadd.f32 %v242, %v871
    %873 = vdwg.mxu0
    %v874 = vmax.f32 %v694, 0.0
    %v875 = vmax.f32 %v696, 0.0
    %v876 = vmax.f32 %v737, 0.0
    %v877 = vmax.f32 %v739, 0.0
    %v878 = vmax.f32 %v780, 0.0
    %v879 = vmax.f32 %v782, 0.0
    %v880 = vmax.f32 %v823, 0.0
    %v881 = vmax.f32 %v825, 0.0
    %v882 = vmax.f32 %v866, 0.0
    %v883 = vmax.f32 %v868, 0.0
    %v884 = vmax.f32 %v698, 0.0
    %v885 = vmax.f32 %v700, 0.0
    %v886 = vmax.f32 %v741, 0.0
    %v887 = vmax.f32 %v743, 0.0
    %v888 = vmax.f32 %v784, 0.0
    %v889 = vmax.f32 %v786, 0.0
    %v890 = vmax.f32 %v827, 0.0
    %v891 = vmax.f32 %v829, 0.0
    %v892 = vmax.f32 %v870, 0.0
    %v893 = vmax.f32 %v872, 0.0
    %v894 = vpack.c.bf16 %v884, %v874
    %v895 = vpack.c.bf16 %v885, %v875
    %v896 = vpack.c.bf16 %v886, %v876
    %v897 = vpack.c.bf16 %v887, %v877
    %v898 = vpack.c.bf16 %v888, %v878
    %v899 = vpack.c.bf16 %v889, %v879
    %v900 = vpack.c.bf16 %v890, %v880
    %v901 = vpack.c.bf16 %v891, %v881
    %v902 = vpack.c.bf16 %v892, %v882
    %v903 = vpack.c.bf16 %v893, %v883
    %v904 = vld [vmem:[#allocation8] sm:$0xff]
    %v905 = vld [vmem:[#allocation8 + $0x8] sm:$0xff]
    %v906 = vld [vmem:[#allocation8 + $0x10] sm:$0xff]
    %v907 = vld [vmem:[#allocation8 + $0x18] sm:$0xff]
    %v908 = vld [vmem:[#allocation8 + $0x20] sm:$0xff]
    %v909 = vld [vmem:[#allocation8 + $0x28] sm:$0xff]
    %v910 = vld [vmem:[#allocation8 + $0x30] sm:$0xff]
    %v911 = vld [vmem:[#allocation8 + $0x38] sm:$0xff]
    %v912 = vld [vmem:[#allocation8 + $0x40] sm:$0xff]
    %v913 = vld [vmem:[#allocation8 + $0x48] sm:$0xff]
    %v914 = vld [vmem:[#allocation8 + $0x50] sm:$0xff]
    %v915 = vld [vmem:[#allocation8 + $0x58] sm:$0xff]
    %v916 = vld [vmem:[#allocation8 + $0x60] sm:$0xff]
    %v917 = vld [vmem:[#allocation8 + $0x68] sm:$0xff]
    %v918 = vld [vmem:[#allocation8 + $0x70] sm:$0xff]
    %v919 = vld [vmem:[#allocation8 + $0x78] sm:$0xff]
    %v920 = vld [vmem:[#allocation8 + $0x80] sm:$0xff]
    %v921 = vld [vmem:[#allocation8 + $0x88] sm:$0xff]
    %v922 = vld [vmem:[#allocation8 + $0x90] sm:$0xff]
    %v923 = vld [vmem:[#allocation8 + $0x98] sm:$0xff]
    %v924 = vld [vmem:[#allocation8 + $0xa0] sm:$0xff]
    %v925 = vld [vmem:[#allocation8 + $0xa8] sm:$0xff]
    %v926 = vld [vmem:[#allocation8 + $0xb0] sm:$0xff]
    %v927 = vld [vmem:[#allocation8 + $0xb8] sm:$0xff]
    %v928 = vld [vmem:[#allocation8 + $0xc0] sm:$0xff]
    %v929 = vld [vmem:[#allocation8 + $0xc8] sm:$0xff]
    %v930 = vld [vmem:[#allocation8 + $0xd0] sm:$0xff]
    %v931 = vld [vmem:[#allocation8 + $0xd8] sm:$0xff]
    %v932 = vld [vmem:[#allocation8 + $0xe0] sm:$0xff]
    %v933 = vld [vmem:[#allocation8 + $0xe8] sm:$0xff]
    %v934 = vld [vmem:[#allocation8 + $0xf0] sm:$0xff]
    %v935 = vld [vmem:[#allocation8 + $0xf8] sm:$0xff]
    %v936 = vld [vmem:[#allocation8 + $0x100] sm:$0xff]
    %v937 = vld [vmem:[#allocation8 + $0x108] sm:$0xff]
    %v938 = vld [vmem:[#allocation8 + $0x110] sm:$0xff]
    %v939 = vld [vmem:[#allocation8 + $0x118] sm:$0xff]
    %v940 = vld [vmem:[#allocation8 + $0x120] sm:$0xff]
    %v941 = vld [vmem:[#allocation8 + $0x128] sm:$0xff]
    %v942 = vld [vmem:[#allocation8 + $0x130] sm:$0xff]
    %v943 = vld [vmem:[#allocation8 + $0x138] sm:$0xff]
    %v944 = vld [vmem:[#allocation8 + $0x140] sm:$0xff]
    %v945 = vld [vmem:[#allocation8 + $0x148] sm:$0xff]
    %v946 = vld [vmem:[#allocation8 + $0x150] sm:$0xff]
    %v947 = vld [vmem:[#allocation8 + $0x158] sm:$0xff]
    %v948 = vld [vmem:[#allocation8 + $0x160] sm:$0xff]
    %v949 = vld [vmem:[#allocation8 + $0x168] sm:$0xff]
    %v950 = vld [vmem:[#allocation8 + $0x170] sm:$0xff]
    %v951 = vld [vmem:[#allocation8 + $0x178] sm:$0xff]
    %v952 = vld [vmem:[#allocation8 + $0x180] sm:$0xff]
    %v953 = vld [vmem:[#allocation8 + $0x188] sm:$0xff]
    %v954 = vld [vmem:[#allocation8 + $0x190] sm:$0xff]
    %v955 = vld [vmem:[#allocation8 + $0x198] sm:$0xff]
    %v956 = vld [vmem:[#allocation8 + $0x1a0] sm:$0xff]
    %v957 = vld [vmem:[#allocation8 + $0x1a8] sm:$0xff]
    %v958 = vld [vmem:[#allocation8 + $0x1b0] sm:$0xff]
    %v959 = vld [vmem:[#allocation8 + $0x1b8] sm:$0xff]
    %v960 = vld [vmem:[#allocation8 + $0x1c0] sm:$0xff]
    %v961 = vld [vmem:[#allocation8 + $0x1c8] sm:$0xff]
    %v962 = vld [vmem:[#allocation8 + $0x1d0] sm:$0xff]
    %v963 = vld [vmem:[#allocation8 + $0x1d8] sm:$0xff]
    %v964 = vld [vmem:[#allocation8 + $0x1e0] sm:$0xff]
    %v965 = vld [vmem:[#allocation8 + $0x1e8] sm:$0xff]
    %v966 = vld [vmem:[#allocation8 + $0x1f0] sm:$0xff]
    %v967 = vld [vmem:[#allocation8 + $0x1f8] sm:$0xff]
    %v968 = vld [vmem:[#allocation8 + $0x200] sm:$0xff]
    %v969 = vld [vmem:[#allocation8 + $0x208] sm:$0xff]
    %v970 = vld [vmem:[#allocation8 + $0x210] sm:$0xff]
    %v971 = vld [vmem:[#allocation8 + $0x218] sm:$0xff]
    %v972 = vld [vmem:[#allocation8 + $0x220] sm:$0xff]
    %v973 = vld [vmem:[#allocation8 + $0x228] sm:$0xff]
    %v974 = vld [vmem:[#allocation8 + $0x230] sm:$0xff]
    %v975 = vld [vmem:[#allocation8 + $0x238] sm:$0xff]
    %v976 = vld [vmem:[#allocation8 + $0x240] sm:$0xff]
    %v977 = vld [vmem:[#allocation8 + $0x248] sm:$0xff]
    %v978 = vld [vmem:[#allocation8 + $0x250] sm:$0xff]
    %v979 = vld [vmem:[#allocation8 + $0x258] sm:$0xff]
    %v980 = vld [vmem:[#allocation8 + $0x260] sm:$0xff]
    %v981 = vld [vmem:[#allocation8 + $0x268] sm:$0xff]
    %v982 = vld [vmem:[#allocation8 + $0x270] sm:$0xff]
    %v983 = vld [vmem:[#allocation8 + $0x278] sm:$0xff]
    %v984 = vld [vmem:[#allocation8 + $0x280] sm:$0xff]
    %v985 = vld [vmem:[#allocation8 + $0x288] sm:$0xff]
    %v986 = vld [vmem:[#allocation8 + $0x290] sm:$0xff]
    %v987 = vld [vmem:[#allocation8 + $0x298] sm:$0xff]
    %v988 = vld [vmem:[#allocation8 + $0x2a0] sm:$0xff]
    %v989 = vld [vmem:[#allocation8 + $0x2a8] sm:$0xff]
    %v990 = vld [vmem:[#allocation8 + $0x2b0] sm:$0xff]
    %v991 = vld [vmem:[#allocation8 + $0x2b8] sm:$0xff]
    %v992 = vld [vmem:[#allocation8 + $0x2c0] sm:$0xff]
    %v993 = vld [vmem:[#allocation8 + $0x2c8] sm:$0xff]
    %v994 = vld [vmem:[#allocation8 + $0x2d0] sm:$0xff]
    %v995 = vld [vmem:[#allocation8 + $0x2d8] sm:$0xff]
    %v996 = vld [vmem:[#allocation8 + $0x2e0] sm:$0xff]
    %v997 = vld [vmem:[#allocation8 + $0x2e8] sm:$0xff]
    %v998 = vld [vmem:[#allocation8 + $0x2f0] sm:$0xff]
    %v999 = vld [vmem:[#allocation8 + $0x2f8] sm:$0xff]
    %v1000 = vld [vmem:[#allocation8 + $0x300] sm:$0xff]
    %v1001 = vld [vmem:[#allocation8 + $0x308] sm:$0xff]
    %v1002 = vld [vmem:[#allocation8 + $0x310] sm:$0xff]
    %v1003 = vld [vmem:[#allocation8 + $0x318] sm:$0xff]
    %v1004 = vld [vmem:[#allocation8 + $0x320] sm:$0xff]
    %v1005 = vld [vmem:[#allocation8 + $0x328] sm:$0xff]
    %v1006 = vld [vmem:[#allocation8 + $0x330] sm:$0xff]
    %v1007 = vld [vmem:[#allocation8 + $0x338] sm:$0xff]
    %v1008 = vld [vmem:[#allocation8 + $0x340] sm:$0xff]
    %v1009 = vld [vmem:[#allocation8 + $0x348] sm:$0xff]
    %v1010 = vld [vmem:[#allocation8 + $0x350] sm:$0xff]
    %v1011 = vld [vmem:[#allocation8 + $0x358] sm:$0xff]
    %v1012 = vld [vmem:[#allocation8 + $0x360] sm:$0xff]
    %v1013 = vld [vmem:[#allocation8 + $0x368] sm:$0xff]
    %v1014 = vld [vmem:[#allocation8 + $0x370] sm:$0xff]
    %v1015 = vld [vmem:[#allocation8 + $0x378] sm:$0xff]
    %v1016 = vld [vmem:[#allocation8 + $0x380] sm:$0xff]
    %v1017 = vld [vmem:[#allocation8 + $0x388] sm:$0xff]
    %v1018 = vld [vmem:[#allocation8 + $0x390] sm:$0xff]
    %v1019 = vld [vmem:[#allocation8 + $0x398] sm:$0xff]
    %v1020 = vld [vmem:[#allocation8 + $0x3a0] sm:$0xff]
    %v1021 = vld [vmem:[#allocation8 + $0x3a8] sm:$0xff]
    %v1022 = vld [vmem:[#allocation8 + $0x3b0] sm:$0xff]
    %v1023 = vld [vmem:[#allocation8 + $0x3b8] sm:$0xff]
    %v1024 = vld [vmem:[#allocation8 + $0x3c0] sm:$0xff]
    %v1025 = vld [vmem:[#allocation8 + $0x3c8] sm:$0xff]
    %v1026 = vld [vmem:[#allocation8 + $0x3d0] sm:$0xff]
    %v1027 = vld [vmem:[#allocation8 + $0x3d8] sm:$0xff]
    %v1028 = vld [vmem:[#allocation8 + $0x3e0] sm:$0xff]
    %v1029 = vld [vmem:[#allocation8 + $0x3e8] sm:$0xff]
    %v1030 = vld [vmem:[#allocation8 + $0x3f0] sm:$0xff]
    %v1031 = vld [vmem:[#allocation8 + $0x3f8] sm:$0xff]
    %v1032 = vld [vmem:[#allocation8 + $0x400] sm:$0xff]
    %v1033 = vld [vmem:[#allocation8 + $0x408] sm:$0xff]
    %v1034 = vld [vmem:[#allocation8 + $0x410] sm:$0xff]
    %v1035 = vld [vmem:[#allocation8 + $0x418] sm:$0xff]
    %v1036 = vld [vmem:[#allocation8 + $0x420] sm:$0xff]
    %v1037 = vld [vmem:[#allocation8 + $0x428] sm:$0xff]
    %v1038 = vld [vmem:[#allocation8 + $0x430] sm:$0xff]
    %v1039 = vld [vmem:[#allocation8 + $0x438] sm:$0xff]
    %v1040 = vld [vmem:[#allocation8 + $0x440] sm:$0xff]
    %v1041 = vld [vmem:[#allocation8 + $0x448] sm:$0xff]
    %v1042 = vld [vmem:[#allocation8 + $0x450] sm:$0xff]
    %v1043 = vld [vmem:[#allocation8 + $0x458] sm:$0xff]
    %v1044 = vld [vmem:[#allocation8 + $0x460] sm:$0xff]
    %v1045 = vld [vmem:[#allocation8 + $0x468] sm:$0xff]
    %v1046 = vld [vmem:[#allocation8 + $0x470] sm:$0xff]
    %v1047 = vld [vmem:[#allocation8 + $0x478] sm:$0xff]
    %v1048 = vld [vmem:[#allocation8 + $0x480] sm:$0xff]
    %v1049 = vld [vmem:[#allocation8 + $0x488] sm:$0xff]
    %v1050 = vld [vmem:[#allocation8 + $0x490] sm:$0xff]
    %v1051 = vld [vmem:[#allocation8 + $0x498] sm:$0xff]
    %v1052 = vld [vmem:[#allocation8 + $0x4a0] sm:$0xff]
    %v1053 = vld [vmem:[#allocation8 + $0x4a8] sm:$0xff]
    %v1054 = vld [vmem:[#allocation8 + $0x4b0] sm:$0xff]
    %v1055 = vld [vmem:[#allocation8 + $0x4b8] sm:$0xff]
    %v1056 = vld [vmem:[#allocation8 + $0x4c0] sm:$0xff]
    %v1057 = vld [vmem:[#allocation8 + $0x4c8] sm:$0xff]
    %v1058 = vld [vmem:[#allocation8 + $0x4d0] sm:$0xff]
    %v1059 = vld [vmem:[#allocation8 + $0x4d8] sm:$0xff]
    %v1060 = vld [vmem:[#allocation8 + $0x4e0] sm:$0xff]
    %v1061 = vld [vmem:[#allocation8 + $0x4e8] sm:$0xff]
    %v1062 = vld [vmem:[#allocation8 + $0x4f0] sm:$0xff]
    %v1063 = vld [vmem:[#allocation8 + $0x4f8] sm:$0xff]
    %v1064 = vld [vmem:[#allocation8 + $0x500] sm:$0xff]
    %v1065 = vld [vmem:[#allocation8 + $0x508] sm:$0xff]
    %v1066 = vld [vmem:[#allocation8 + $0x510] sm:$0xff]
    %v1067 = vld [vmem:[#allocation8 + $0x518] sm:$0xff]
    %v1068 = vld [vmem:[#allocation8 + $0x520] sm:$0xff]
    %v1069 = vld [vmem:[#allocation8 + $0x528] sm:$0xff]
    %v1070 = vld [vmem:[#allocation8 + $0x530] sm:$0xff]
    %v1071 = vld [vmem:[#allocation8 + $0x538] sm:$0xff]
    %v1072 = vld [vmem:[#allocation8 + $0x540] sm:$0xff]
    %v1073 = vld [vmem:[#allocation8 + $0x548] sm:$0xff]
    %v1074 = vld [vmem:[#allocation8 + $0x550] sm:$0xff]
    %v1075 = vld [vmem:[#allocation8 + $0x558] sm:$0xff]
    %v1076 = vld [vmem:[#allocation8 + $0x560] sm:$0xff]
    %v1077 = vld [vmem:[#allocation8 + $0x568] sm:$0xff]
    %v1078 = vld [vmem:[#allocation8 + $0x570] sm:$0xff]
    %v1079 = vld [vmem:[#allocation8 + $0x578] sm:$0xff]
    %v1080 = vld [vmem:[#allocation8 + $0x580] sm:$0xff]
    %v1081 = vld [vmem:[#allocation8 + $0x588] sm:$0xff]
    %v1082 = vld [vmem:[#allocation8 + $0x590] sm:$0xff]
    %v1083 = vld [vmem:[#allocation8 + $0x598] sm:$0xff]
    %v1084 = vld [vmem:[#allocation8 + $0x5a0] sm:$0xff]
    %v1085 = vld [vmem:[#allocation8 + $0x5a8] sm:$0xff]
    %v1086 = vld [vmem:[#allocation8 + $0x5b0] sm:$0xff]
    %v1087 = vld [vmem:[#allocation8 + $0x5b8] sm:$0xff]
    %v1088 = vld [vmem:[#allocation8 + $0x5c0] sm:$0xff]
    %v1089 = vld [vmem:[#allocation8 + $0x5c8] sm:$0xff]
    %v1090 = vld [vmem:[#allocation8 + $0x5d0] sm:$0xff]
    %v1091 = vld [vmem:[#allocation8 + $0x5d8] sm:$0xff]
    %v1092 = vld [vmem:[#allocation8 + $0x5e0] sm:$0xff]
    %v1093 = vld [vmem:[#allocation8 + $0x5e8] sm:$0xff]
    %v1094 = vld [vmem:[#allocation8 + $0x5f0] sm:$0xff]
    %v1095 = vld [vmem:[#allocation8 + $0x5f8] sm:$0xff]
    %v1096 = vld [vmem:[#allocation8 + $0x600] sm:$0xff]
    %v1097 = vld [vmem:[#allocation8 + $0x608] sm:$0xff]
    %v1098 = vld [vmem:[#allocation8 + $0x610] sm:$0xff]
    %v1099 = vld [vmem:[#allocation8 + $0x618] sm:$0xff]
    %v1100 = vld [vmem:[#allocation8 + $0x620] sm:$0xff]
    %v1101 = vld [vmem:[#allocation8 + $0x628] sm:$0xff]
    %v1102 = vld [vmem:[#allocation8 + $0x630] sm:$0xff]
    %v1103 = vld [vmem:[#allocation8 + $0x638] sm:$0xff]
    %v1104 = vld [vmem:[#allocation8 + $0x640] sm:$0xff]
    %v1105 = vld [vmem:[#allocation8 + $0x648] sm:$0xff]
    %v1106 = vld [vmem:[#allocation8 + $0x650] sm:$0xff]
    %v1107 = vld [vmem:[#allocation8 + $0x658] sm:$0xff]
    %v1108 = vld [vmem:[#allocation8 + $0x660] sm:$0xff]
    %v1109 = vld [vmem:[#allocation8 + $0x668] sm:$0xff]
    %v1110 = vld [vmem:[#allocation8 + $0x670] sm:$0xff]
    %v1111 = vld [vmem:[#allocation8 + $0x678] sm:$0xff]
    %v1112 = vld [vmem:[#allocation8 + $0x680] sm:$0xff]
    %v1113 = vld [vmem:[#allocation8 + $0x688] sm:$0xff]
    %v1114 = vld [vmem:[#allocation8 + $0x690] sm:$0xff]
    %v1115 = vld [vmem:[#allocation8 + $0x698] sm:$0xff]
    %v1116 = vld [vmem:[#allocation8 + $0x6a0] sm:$0xff]
    %v1117 = vld [vmem:[#allocation8 + $0x6a8] sm:$0xff]
    %v1118 = vld [vmem:[#allocation8 + $0x6b0] sm:$0xff]
    %v1119 = vld [vmem:[#allocation8 + $0x6b8] sm:$0xff]
    %v1120 = vld [vmem:[#allocation8 + $0x6c0] sm:$0xff]
    %v1121 = vld [vmem:[#allocation8 + $0x6c8] sm:$0xff]
    %v1122 = vld [vmem:[#allocation8 + $0x6d0] sm:$0xff]
    %v1123 = vld [vmem:[#allocation8 + $0x6d8] sm:$0xff]
    %v1124 = vld [vmem:[#allocation8 + $0x6e0] sm:$0xff]
    %v1125 = vld [vmem:[#allocation8 + $0x6e8] sm:$0xff]
    %v1126 = vld [vmem:[#allocation8 + $0x6f0] sm:$0xff]
    %v1127 = vld [vmem:[#allocation8 + $0x6f8] sm:$0xff]
    %v1128 = vld [vmem:[#allocation8 + $0x700] sm:$0xff]
    %v1129 = vld [vmem:[#allocation8 + $0x708] sm:$0xff]
    %v1130 = vld [vmem:[#allocation8 + $0x710] sm:$0xff]
    %v1131 = vld [vmem:[#allocation8 + $0x718] sm:$0xff]
    %v1132 = vld [vmem:[#allocation8 + $0x720] sm:$0xff]
    %v1133 = vld [vmem:[#allocation8 + $0x728] sm:$0xff]
    %v1134 = vld [vmem:[#allocation8 + $0x730] sm:$0xff]
    %v1135 = vld [vmem:[#allocation8 + $0x738] sm:$0xff]
    %v1136 = vld [vmem:[#allocation8 + $0x740] sm:$0xff]
    %v1137 = vld [vmem:[#allocation8 + $0x748] sm:$0xff]
    %v1138 = vld [vmem:[#allocation8 + $0x750] sm:$0xff]
    %v1139 = vld [vmem:[#allocation8 + $0x758] sm:$0xff]
    %v1140 = vld [vmem:[#allocation8 + $0x760] sm:$0xff]
    %v1141 = vld [vmem:[#allocation8 + $0x768] sm:$0xff]
    %v1142 = vld [vmem:[#allocation8 + $0x770] sm:$0xff]
    %v1143 = vld [vmem:[#allocation8 + $0x778] sm:$0xff]
    %v1144 = vld [vmem:[#allocation8 + $0x780] sm:$0xff]
    %v1145 = vld [vmem:[#allocation8 + $0x788] sm:$0xff]
    %v1146 = vld [vmem:[#allocation8 + $0x790] sm:$0xff]
    %v1147 = vld [vmem:[#allocation8 + $0x798] sm:$0xff]
    %v1148 = vld [vmem:[#allocation8 + $0x7a0] sm:$0xff]
    %v1149 = vld [vmem:[#allocation8 + $0x7a8] sm:$0xff]
    %v1150 = vld [vmem:[#allocation8 + $0x7b0] sm:$0xff]
    %v1151 = vld [vmem:[#allocation8 + $0x7b8] sm:$0xff]
    %v1152 = vld [vmem:[#allocation8 + $0x7c0] sm:$0xff]
    %v1153 = vld [vmem:[#allocation8 + $0x7c8] sm:$0xff]
    %v1154 = vld [vmem:[#allocation8 + $0x7d0] sm:$0xff]
    %v1155 = vld [vmem:[#allocation8 + $0x7d8] sm:$0xff]
    %v1156 = vld [vmem:[#allocation8 + $0x7e0] sm:$0xff]
    %v1157 = vld [vmem:[#allocation8 + $0x7e8] sm:$0xff]
    %v1158 = vld [vmem:[#allocation8 + $0x7f0] sm:$0xff]
    %v1159 = vld [vmem:[#allocation8 + $0x7f8] sm:$0xff]
    %v1160 = vld [vmem:[#allocation8 + $0x800] sm:$0xff]
    %v1161 = vld [vmem:[#allocation8 + $0x808] sm:$0xff]
    %v1162 = vld [vmem:[#allocation8 + $0x810] sm:$0xff]
    %v1163 = vld [vmem:[#allocation8 + $0x818] sm:$0xff]
    %v1164 = vld [vmem:[#allocation8 + $0x820] sm:$0xff]
    %v1165 = vld [vmem:[#allocation8 + $0x828] sm:$0xff]
    %v1166 = vld [vmem:[#allocation8 + $0x830] sm:$0xff]
    %v1167 = vld [vmem:[#allocation8 + $0x838] sm:$0xff]
    %v1168 = vld [vmem:[#allocation8 + $0x840] sm:$0xff]
    %v1169 = vld [vmem:[#allocation8 + $0x848] sm:$0xff]
    %v1170 = vld [vmem:[#allocation8 + $0x850] sm:$0xff]
    %v1171 = vld [vmem:[#allocation8 + $0x858] sm:$0xff]
    %v1172 = vld [vmem:[#allocation8 + $0x860] sm:$0xff]
    %v1173 = vld [vmem:[#allocation8 + $0x868] sm:$0xff]
    %v1174 = vld [vmem:[#allocation8 + $0x870] sm:$0xff]
    %v1175 = vld [vmem:[#allocation8 + $0x878] sm:$0xff]
    %v1176 = vld [vmem:[#allocation8 + $0x880] sm:$0xff]
    %v1177 = vld [vmem:[#allocation8 + $0x888] sm:$0xff]
    %v1178 = vld [vmem:[#allocation8 + $0x890] sm:$0xff]
    %v1179 = vld [vmem:[#allocation8 + $0x898] sm:$0xff]
    %v1180 = vld [vmem:[#allocation8 + $0x8a0] sm:$0xff]
    %v1181 = vld [vmem:[#allocation8 + $0x8a8] sm:$0xff]
    %v1182 = vld [vmem:[#allocation8 + $0x8b0] sm:$0xff]
    %v1183 = vld [vmem:[#allocation8 + $0x8b8] sm:$0xff]
    %v1184 = vld [vmem:[#allocation8 + $0x8c0] sm:$0xff]
    %v1185 = vld [vmem:[#allocation8 + $0x8c8] sm:$0xff]
    %v1186 = vld [vmem:[#allocation8 + $0x8d0] sm:$0xff]
    %v1187 = vld [vmem:[#allocation8 + $0x8d8] sm:$0xff]
    %v1188 = vld [vmem:[#allocation8 + $0x8e0] sm:$0xff]
    %v1189 = vld [vmem:[#allocation8 + $0x8e8] sm:$0xff]
    %v1190 = vld [vmem:[#allocation8 + $0x8f0] sm:$0xff]
    %v1191 = vld [vmem:[#allocation8 + $0x8f8] sm:$0xff]
    %v1192 = vld [vmem:[#allocation8 + $0x900] sm:$0xff]
    %v1193 = vld [vmem:[#allocation8 + $0x908] sm:$0xff]
    %v1194 = vld [vmem:[#allocation8 + $0x910] sm:$0xff]
    %v1195 = vld [vmem:[#allocation8 + $0x918] sm:$0xff]
    %v1196 = vld [vmem:[#allocation8 + $0x920] sm:$0xff]
    %v1197 = vld [vmem:[#allocation8 + $0x928] sm:$0xff]
    %v1198 = vld [vmem:[#allocation8 + $0x930] sm:$0xff]
    %v1199 = vld [vmem:[#allocation8 + $0x938] sm:$0xff]
    %v1200 = vld [vmem:[#allocation8 + $0x940] sm:$0xff]
    %v1201 = vld [vmem:[#allocation8 + $0x948] sm:$0xff]
    %v1202 = vld [vmem:[#allocation8 + $0x950] sm:$0xff]
    %v1203 = vld [vmem:[#allocation8 + $0x958] sm:$0xff]
    %v1204 = vld [vmem:[#allocation8 + $0x960] sm:$0xff]
    %v1205 = vld [vmem:[#allocation8 + $0x968] sm:$0xff]
    %v1206 = vld [vmem:[#allocation8 + $0x970] sm:$0xff]
    %v1207 = vld [vmem:[#allocation8 + $0x978] sm:$0xff]
    %v1208 = vld [vmem:[#allocation8 + $0x980] sm:$0xff]
    %v1209 = vld [vmem:[#allocation8 + $0x988] sm:$0xff]
    %v1210 = vld [vmem:[#allocation8 + $0x990] sm:$0xff]
    %v1211 = vld [vmem:[#allocation8 + $0x998] sm:$0xff]
    %v1212 = vld [vmem:[#allocation8 + $0x9a0] sm:$0xff]
    %v1213 = vld [vmem:[#allocation8 + $0x9a8] sm:$0xff]
    %v1214 = vld [vmem:[#allocation8 + $0x9b0] sm:$0xff]
    %v1215 = vld [vmem:[#allocation8 + $0x9b8] sm:$0xff]
    %v1216 = vld [vmem:[#allocation8 + $0x9c0] sm:$0xff]
    %v1217 = vld [vmem:[#allocation8 + $0x9c8] sm:$0xff]
    %v1218 = vld [vmem:[#allocation8 + $0x9d0] sm:$0xff]
    %v1219 = vld [vmem:[#allocation8 + $0x9d8] sm:$0xff]
    %v1220 = vld [vmem:[#allocation8 + $0x9e0] sm:$0xff]
    %v1221 = vld [vmem:[#allocation8 + $0x9e8] sm:$0xff]
    %v1222 = vld [vmem:[#allocation8 + $0x9f0] sm:$0xff]
    %v1223 = vld [vmem:[#allocation8 + $0x9f8] sm:$0xff]
    %v1224 = vld [vmem:[#allocation8 + $0xa00] sm:$0xff]
    %v1225 = vld [vmem:[#allocation8 + $0xa08] sm:$0xff]
    %v1226 = vld [vmem:[#allocation8 + $0xa10] sm:$0xff]
    %v1227 = vld [vmem:[#allocation8 + $0xa18] sm:$0xff]
    %v1228 = vld [vmem:[#allocation8 + $0xa20] sm:$0xff]
    %v1229 = vld [vmem:[#allocation8 + $0xa28] sm:$0xff]
    %v1230 = vld [vmem:[#allocation8 + $0xa30] sm:$0xff]
    %v1231 = vld [vmem:[#allocation8 + $0xa38] sm:$0xff]
    %v1232 = vld [vmem:[#allocation8 + $0xa40] sm:$0xff]
    %v1233 = vld [vmem:[#allocation8 + $0xa48] sm:$0xff]
    %v1234 = vld [vmem:[#allocation8 + $0xa50] sm:$0xff]
    %v1235 = vld [vmem:[#allocation8 + $0xa58] sm:$0xff]
    %v1236 = vld [vmem:[#allocation8 + $0xa60] sm:$0xff]
    %v1237 = vld [vmem:[#allocation8 + $0xa68] sm:$0xff]
    %v1238 = vld [vmem:[#allocation8 + $0xa70] sm:$0xff]
    %v1239 = vld [vmem:[#allocation8 + $0xa78] sm:$0xff]
    %v1240 = vld [vmem:[#allocation8 + $0xa80] sm:$0xff]
    %v1241 = vld [vmem:[#allocation8 + $0xa88] sm:$0xff]
    %v1242 = vld [vmem:[#allocation8 + $0xa90] sm:$0xff]
    %v1243 = vld [vmem:[#allocation8 + $0xa98] sm:$0xff]
    %v1244 = vld [vmem:[#allocation8 + $0xaa0] sm:$0xff]
    %v1245 = vld [vmem:[#allocation8 + $0xaa8] sm:$0xff]
    %v1246 = vld [vmem:[#allocation8 + $0xab0] sm:$0xff]
    %v1247 = vld [vmem:[#allocation8 + $0xab8] sm:$0xff]
    %v1248 = vld [vmem:[#allocation8 + $0xac0] sm:$0xff]
    %v1249 = vld [vmem:[#allocation8 + $0xac8] sm:$0xff]
    %v1250 = vld [vmem:[#allocation8 + $0xad0] sm:$0xff]
    %v1251 = vld [vmem:[#allocation8 + $0xad8] sm:$0xff]
    %v1252 = vld [vmem:[#allocation8 + $0xae0] sm:$0xff]
    %v1253 = vld [vmem:[#allocation8 + $0xae8] sm:$0xff]
    %v1254 = vld [vmem:[#allocation8 + $0xaf0] sm:$0xff]
    %v1255 = vld [vmem:[#allocation8 + $0xaf8] sm:$0xff]
    %v1256 = vld [vmem:[#allocation8 + $0xb00] sm:$0xff]
    %v1257 = vld [vmem:[#allocation8 + $0xb08] sm:$0xff]
    %v1258 = vld [vmem:[#allocation8 + $0xb10] sm:$0xff]
    %v1259 = vld [vmem:[#allocation8 + $0xb18] sm:$0xff]
    %v1260 = vld [vmem:[#allocation8 + $0xb20] sm:$0xff]
    %v1261 = vld [vmem:[#allocation8 + $0xb28] sm:$0xff]
    %v1262 = vld [vmem:[#allocation8 + $0xb30] sm:$0xff]
    %v1263 = vld [vmem:[#allocation8 + $0xb38] sm:$0xff]
    %v1264 = vld [vmem:[#allocation8 + $0xb40] sm:$0xff]
    %v1265 = vld [vmem:[#allocation8 + $0xb48] sm:$0xff]
    %v1266 = vld [vmem:[#allocation8 + $0xb50] sm:$0xff]
    %v1267 = vld [vmem:[#allocation8 + $0xb58] sm:$0xff]
    %v1268 = vld [vmem:[#allocation8 + $0xb60] sm:$0xff]
    %v1269 = vld [vmem:[#allocation8 + $0xb68] sm:$0xff]
    %v1270 = vld [vmem:[#allocation8 + $0xb70] sm:$0xff]
    %v1271 = vld [vmem:[#allocation8 + $0xb78] sm:$0xff]
    %v1272 = vld [vmem:[#allocation8 + $0xb80] sm:$0xff]
    %v1273 = vld [vmem:[#allocation8 + $0xb88] sm:$0xff]
    %v1274 = vld [vmem:[#allocation8 + $0xb90] sm:$0xff]
    %v1275 = vld [vmem:[#allocation8 + $0xb98] sm:$0xff]
    %v1276 = vld [vmem:[#allocation8 + $0xba0] sm:$0xff]
    %v1277 = vld [vmem:[#allocation8 + $0xba8] sm:$0xff]
    %v1278 = vld [vmem:[#allocation8 + $0xbb0] sm:$0xff]
    %v1279 = vld [vmem:[#allocation8 + $0xbb8] sm:$0xff]
    %v1280 = vld [vmem:[#allocation8 + $0xbc0] sm:$0xff]
    %v1281 = vld [vmem:[#allocation8 + $0xbc8] sm:$0xff]
    %v1282 = vld [vmem:[#allocation8 + $0xbd0] sm:$0xff]
    %v1283 = vld [vmem:[#allocation8 + $0xbd8] sm:$0xff]
    %v1284 = vld [vmem:[#allocation8 + $0xbe0] sm:$0xff]
    %v1285 = vld [vmem:[#allocation8 + $0xbe8] sm:$0xff]
    %v1286 = vld [vmem:[#allocation8 + $0xbf0] sm:$0xff]
    %v1287 = vld [vmem:[#allocation8 + $0xbf8] sm:$0xff]
    %v1288 = vld [vmem:[#allocation8 + $0xc00] sm:$0xff]
    %v1289 = vld [vmem:[#allocation8 + $0xc08] sm:$0xff]
    %v1290 = vld [vmem:[#allocation8 + $0xc10] sm:$0xff]
    %v1291 = vld [vmem:[#allocation8 + $0xc18] sm:$0xff]
    %v1292 = vld [vmem:[#allocation8 + $0xc20] sm:$0xff]
    %v1293 = vld [vmem:[#allocation8 + $0xc28] sm:$0xff]
    %v1294 = vld [vmem:[#allocation8 + $0xc30] sm:$0xff]
    %v1295 = vld [vmem:[#allocation8 + $0xc38] sm:$0xff]
    %v1296 = vld [vmem:[#allocation8 + $0xc40] sm:$0xff]
    %v1297 = vld [vmem:[#allocation8 + $0xc48] sm:$0xff]
    %v1298 = vld [vmem:[#allocation8 + $0xc50] sm:$0xff]
    %v1299 = vld [vmem:[#allocation8 + $0xc58] sm:$0xff]
    %v1300 = vld [vmem:[#allocation8 + $0xc60] sm:$0xff]
    %v1301 = vld [vmem:[#allocation8 + $0xc68] sm:$0xff]
    %v1302 = vld [vmem:[#allocation8 + $0xc70] sm:$0xff]
    %v1303 = vld [vmem:[#allocation8 + $0xc78] sm:$0xff]
    %v1304 = vld [vmem:[#allocation8 + $0xc80] sm:$0xff]
    %v1305 = vld [vmem:[#allocation8 + $0xc88] sm:$0xff]
    %v1306 = vld [vmem:[#allocation8 + $0xc90] sm:$0xff]
    %v1307 = vld [vmem:[#allocation8 + $0xc98] sm:$0xff]
    %v1308 = vld [vmem:[#allocation8 + $0xca0] sm:$0xff]
    %v1309 = vld [vmem:[#allocation8 + $0xca8] sm:$0xff]
    %v1310 = vld [vmem:[#allocation8 + $0xcb0] sm:$0xff]
    %v1311 = vld [vmem:[#allocation8 + $0xcb8] sm:$0xff]
    %v1312 = vld [vmem:[#allocation8 + $0xcc0] sm:$0xff]
    %v1313 = vld [vmem:[#allocation8 + $0xcc8] sm:$0xff]
    %v1314 = vld [vmem:[#allocation8 + $0xcd0] sm:$0xff]
    %v1315 = vld [vmem:[#allocation8 + $0xcd8] sm:$0xff]
    %v1316 = vld [vmem:[#allocation8 + $0xce0] sm:$0xff]
    %v1317 = vld [vmem:[#allocation8 + $0xce8] sm:$0xff]
    %v1318 = vld [vmem:[#allocation8 + $0xcf0] sm:$0xff]
    %v1319 = vld [vmem:[#allocation8 + $0xcf8] sm:$0xff]
    %v1320 = vld [vmem:[#allocation8 + $0xd00] sm:$0xff]
    %v1321 = vld [vmem:[#allocation8 + $0xd08] sm:$0xff]
    %v1322 = vld [vmem:[#allocation8 + $0xd10] sm:$0xff]
    %v1323 = vld [vmem:[#allocation8 + $0xd18] sm:$0xff]
    %v1324 = vld [vmem:[#allocation8 + $0xd20] sm:$0xff]
    %v1325 = vld [vmem:[#allocation8 + $0xd28] sm:$0xff]
    %v1326 = vld [vmem:[#allocation8 + $0xd30] sm:$0xff]
    %v1327 = vld [vmem:[#allocation8 + $0xd38] sm:$0xff]
    %v1328 = vld [vmem:[#allocation8 + $0xd40] sm:$0xff]
    %v1329 = vld [vmem:[#allocation8 + $0xd48] sm:$0xff]
    %v1330 = vld [vmem:[#allocation8 + $0xd50] sm:$0xff]
    %v1331 = vld [vmem:[#allocation8 + $0xd58] sm:$0xff]
    %v1332 = vld [vmem:[#allocation8 + $0xd60] sm:$0xff]
    %v1333 = vld [vmem:[#allocation8 + $0xd68] sm:$0xff]
    %v1334 = vld [vmem:[#allocation8 + $0xd70] sm:$0xff]
    %v1335 = vld [vmem:[#allocation8 + $0xd78] sm:$0xff]
    %v1336 = vld [vmem:[#allocation8 + $0xd80] sm:$0xff]
    %v1337 = vld [vmem:[#allocation8 + $0xd88] sm:$0xff]
    %v1338 = vld [vmem:[#allocation8 + $0xd90] sm:$0xff]
    %v1339 = vld [vmem:[#allocation8 + $0xd98] sm:$0xff]
    %v1340 = vld [vmem:[#allocation8 + $0xda0] sm:$0xff]
    %v1341 = vld [vmem:[#allocation8 + $0xda8] sm:$0xff]
    %v1342 = vld [vmem:[#allocation8 + $0xdb0] sm:$0xff]
    %v1343 = vld [vmem:[#allocation8 + $0xdb8] sm:$0xff]
    %v1344 = vld [vmem:[#allocation8 + $0xdc0] sm:$0xff]
    %v1345 = vld [vmem:[#allocation8 + $0xdc8] sm:$0xff]
    %v1346 = vld [vmem:[#allocation8 + $0xdd0] sm:$0xff]
    %v1347 = vld [vmem:[#allocation8 + $0xdd8] sm:$0xff]
    %v1348 = vld [vmem:[#allocation8 + $0xde0] sm:$0xff]
    %v1349 = vld [vmem:[#allocation8 + $0xde8] sm:$0xff]
    %v1350 = vld [vmem:[#allocation8 + $0xdf0] sm:$0xff]
    %v1351 = vld [vmem:[#allocation8 + $0xdf8] sm:$0xff]
    %v1352 = vld [vmem:[#allocation8 + $0xe00] sm:$0xff]
    %v1353 = vld [vmem:[#allocation8 + $0xe08] sm:$0xff]
    %v1354 = vld [vmem:[#allocation8 + $0xe10] sm:$0xff]
    %v1355 = vld [vmem:[#allocation8 + $0xe18] sm:$0xff]
    %v1356 = vld [vmem:[#allocation8 + $0xe20] sm:$0xff]
    %v1357 = vld [vmem:[#allocation8 + $0xe28] sm:$0xff]
    %v1358 = vld [vmem:[#allocation8 + $0xe30] sm:$0xff]
    %v1359 = vld [vmem:[#allocation8 + $0xe38] sm:$0xff]
    %v1360 = vld [vmem:[#allocation8 + $0xe40] sm:$0xff]
    %v1361 = vld [vmem:[#allocation8 + $0xe48] sm:$0xff]
    %v1362 = vld [vmem:[#allocation8 + $0xe50] sm:$0xff]
    %v1363 = vld [vmem:[#allocation8 + $0xe58] sm:$0xff]
    %v1364 = vld [vmem:[#allocation8 + $0xe60] sm:$0xff]
    %v1365 = vld [vmem:[#allocation8 + $0xe68] sm:$0xff]
    %v1366 = vld [vmem:[#allocation8 + $0xe70] sm:$0xff]
    %v1367 = vld [vmem:[#allocation8 + $0xe78] sm:$0xff]
    %v1368 = vld [vmem:[#allocation8 + $0xe80] sm:$0xff]
    %v1369 = vld [vmem:[#allocation8 + $0xe88] sm:$0xff]
    %v1370 = vld [vmem:[#allocation8 + $0xe90] sm:$0xff]
    %v1371 = vld [vmem:[#allocation8 + $0xe98] sm:$0xff]
    %v1372 = vld [vmem:[#allocation8 + $0xea0] sm:$0xff]
    %v1373 = vld [vmem:[#allocation8 + $0xea8] sm:$0xff]
    %v1374 = vld [vmem:[#allocation8 + $0xeb0] sm:$0xff]
    %v1375 = vld [vmem:[#allocation8 + $0xeb8] sm:$0xff]
    %v1376 = vld [vmem:[#allocation8 + $0xec0] sm:$0xff]
    %v1377 = vld [vmem:[#allocation8 + $0xec8] sm:$0xff]
    %v1378 = vld [vmem:[#allocation8 + $0xed0] sm:$0xff]
    %v1379 = vld [vmem:[#allocation8 + $0xed8] sm:$0xff]
    %v1380 = vld [vmem:[#allocation8 + $0xee0] sm:$0xff]
    %v1381 = vld [vmem:[#allocation8 + $0xee8] sm:$0xff]
    %v1382 = vld [vmem:[#allocation8 + $0xef0] sm:$0xff]
    %v1383 = vld [vmem:[#allocation8 + $0xef8] sm:$0xff]
    %v1384 = vld [vmem:[#allocation8 + $0xf00] sm:$0xff]
    %v1385 = vld [vmem:[#allocation8 + $0xf08] sm:$0xff]
    %v1386 = vld [vmem:[#allocation8 + $0xf10] sm:$0xff]
    %v1387 = vld [vmem:[#allocation8 + $0xf18] sm:$0xff]
    %v1388 = vld [vmem:[#allocation8 + $0xf20] sm:$0xff]
    %v1389 = vld [vmem:[#allocation8 + $0xf28] sm:$0xff]
    %v1390 = vld [vmem:[#allocation8 + $0xf30] sm:$0xff]
    %v1391 = vld [vmem:[#allocation8 + $0xf38] sm:$0xff]
    %v1392 = vld [vmem:[#allocation8 + $0xf40] sm:$0xff]
    %v1393 = vld [vmem:[#allocation8 + $0xf48] sm:$0xff]
    %v1394 = vld [vmem:[#allocation8 + $0xf50] sm:$0xff]
    %v1395 = vld [vmem:[#allocation8 + $0xf58] sm:$0xff]
    %v1396 = vld [vmem:[#allocation8 + $0xf60] sm:$0xff]
    %v1397 = vld [vmem:[#allocation8 + $0xf68] sm:$0xff]
    %v1398 = vld [vmem:[#allocation8 + $0xf70] sm:$0xff]
    %v1399 = vld [vmem:[#allocation8 + $0xf78] sm:$0xff]
    %v1400 = vld [vmem:[#allocation8 + $0xf80] sm:$0xff]
    %v1401 = vld [vmem:[#allocation8 + $0xf88] sm:$0xff]
    %v1402 = vld [vmem:[#allocation8 + $0xf90] sm:$0xff]
    %v1403 = vld [vmem:[#allocation8 + $0xf98] sm:$0xff]
    %v1404 = vld [vmem:[#allocation8 + $0xfa0] sm:$0xff]
    %v1405 = vld [vmem:[#allocation8 + $0xfa8] sm:$0xff]
    %v1406 = vld [vmem:[#allocation8 + $0xfb0] sm:$0xff]
    %v1407 = vld [vmem:[#allocation8 + $0xfb8] sm:$0xff]
    %v1408 = vld [vmem:[#allocation8 + $0xfc0] sm:$0xff]
    %v1409 = vld [vmem:[#allocation8 + $0xfc8] sm:$0xff]
    %v1410 = vld [vmem:[#allocation8 + $0xfd0] sm:$0xff]
    %v1411 = vld [vmem:[#allocation8 + $0xfd8] sm:$0xff]
    %v1412 = vld [vmem:[#allocation8 + $0xfe0] sm:$0xff]
    %v1413 = vld [vmem:[#allocation8 + $0xfe8] sm:$0xff]
    %v1414 = vld [vmem:[#allocation8 + $0xff0] sm:$0xff]
    %v1415 = vld [vmem:[#allocation8 + $0xff8] sm:$0xff]
    %v1416 = vld [vmem:[#allocation8 + $0x1000] sm:$0xff]
    %v1417 = vld [vmem:[#allocation8 + $0x1008] sm:$0xff]
    %v1418 = vld [vmem:[#allocation8 + $0x1010] sm:$0xff]
    %v1419 = vld [vmem:[#allocation8 + $0x1018] sm:$0xff]
    %v1420 = vld [vmem:[#allocation8 + $0x1020] sm:$0xff]
    %v1421 = vld [vmem:[#allocation8 + $0x1028] sm:$0xff]
    %v1422 = vld [vmem:[#allocation8 + $0x1030] sm:$0xff]
    %v1423 = vld [vmem:[#allocation8 + $0x1038] sm:$0xff]
    %v1424 = vld [vmem:[#allocation8 + $0x1040] sm:$0xff]
    %v1425 = vld [vmem:[#allocation8 + $0x1048] sm:$0xff]
    %v1426 = vld [vmem:[#allocation8 + $0x1050] sm:$0xff]
    %v1427 = vld [vmem:[#allocation8 + $0x1058] sm:$0xff]
    %v1428 = vld [vmem:[#allocation8 + $0x1060] sm:$0xff]
    %v1429 = vld [vmem:[#allocation8 + $0x1068] sm:$0xff]
    %v1430 = vld [vmem:[#allocation8 + $0x1070] sm:$0xff]
    %v1431 = vld [vmem:[#allocation8 + $0x1078] sm:$0xff]
    %v1432 = vld [vmem:[#allocation8 + $0x1080] sm:$0xff]
    %v1433 = vld [vmem:[#allocation8 + $0x1088] sm:$0xff]
    %v1434 = vld [vmem:[#allocation8 + $0x1090] sm:$0xff]
    %v1435 = vld [vmem:[#allocation8 + $0x1098] sm:$0xff]
    %v1436 = vld [vmem:[#allocation8 + $0x10a0] sm:$0xff]
    %v1437 = vld [vmem:[#allocation8 + $0x10a8] sm:$0xff]
    %v1438 = vld [vmem:[#allocation8 + $0x10b0] sm:$0xff]
    %v1439 = vld [vmem:[#allocation8 + $0x10b8] sm:$0xff]
    %v1440 = vld [vmem:[#allocation8 + $0x10c0] sm:$0xff]
    %v1441 = vld [vmem:[#allocation8 + $0x10c8] sm:$0xff]
    %v1442 = vld [vmem:[#allocation8 + $0x10d0] sm:$0xff]
    %v1443 = vld [vmem:[#allocation8 + $0x10d8] sm:$0xff]
    %v1444 = vld [vmem:[#allocation8 + $0x10e0] sm:$0xff]
    %v1445 = vld [vmem:[#allocation8 + $0x10e8] sm:$0xff]
    %v1446 = vld [vmem:[#allocation8 + $0x10f0] sm:$0xff]
    %v1447 = vld [vmem:[#allocation8 + $0x10f8] sm:$0xff]
    %v1448 = vld [vmem:[#allocation8 + $0x1100] sm:$0xff]
    %v1449 = vld [vmem:[#allocation8 + $0x1108] sm:$0xff]
    %v1450 = vld [vmem:[#allocation8 + $0x1110] sm:$0xff]
    %v1451 = vld [vmem:[#allocation8 + $0x1118] sm:$0xff]
    %v1452 = vld [vmem:[#allocation8 + $0x1120] sm:$0xff]
    %v1453 = vld [vmem:[#allocation8 + $0x1128] sm:$0xff]
    %v1454 = vld [vmem:[#allocation8 + $0x1130] sm:$0xff]
    %v1455 = vld [vmem:[#allocation8 + $0x1138] sm:$0xff]
    %v1456 = vld [vmem:[#allocation8 + $0x1140] sm:$0xff]
    %v1457 = vld [vmem:[#allocation8 + $0x1148] sm:$0xff]
    %v1458 = vld [vmem:[#allocation8 + $0x1150] sm:$0xff]
    %v1459 = vld [vmem:[#allocation8 + $0x1158] sm:$0xff]
    %v1460 = vld [vmem:[#allocation8 + $0x1160] sm:$0xff]
    %v1461 = vld [vmem:[#allocation8 + $0x1168] sm:$0xff]
    %v1462 = vld [vmem:[#allocation8 + $0x1170] sm:$0xff]
    %v1463 = vld [vmem:[#allocation8 + $0x1178] sm:$0xff]
    %v1464 = vld [vmem:[#allocation8 + $0x1180] sm:$0xff]
    %v1465 = vld [vmem:[#allocation8 + $0x1188] sm:$0xff]
    %v1466 = vld [vmem:[#allocation8 + $0x1190] sm:$0xff]
    %v1467 = vld [vmem:[#allocation8 + $0x1198] sm:$0xff]
    %v1468 = vld [vmem:[#allocation8 + $0x11a0] sm:$0xff]
    %v1469 = vld [vmem:[#allocation8 + $0x11a8] sm:$0xff]
    %v1470 = vld [vmem:[#allocation8 + $0x11b0] sm:$0xff]
    %v1471 = vld [vmem:[#allocation8 + $0x11b8] sm:$0xff]
    %v1472 = vld [vmem:[#allocation8 + $0x11c0] sm:$0xff]
    %v1473 = vld [vmem:[#allocation8 + $0x11c8] sm:$0xff]
    %v1474 = vld [vmem:[#allocation8 + $0x11d0] sm:$0xff]
    %v1475 = vld [vmem:[#allocation8 + $0x11d8] sm:$0xff]
    %v1476 = vld [vmem:[#allocation8 + $0x11e0] sm:$0xff]
    %v1477 = vld [vmem:[#allocation8 + $0x11e8] sm:$0xff]
    %v1478 = vld [vmem:[#allocation8 + $0x11f0] sm:$0xff]
    %v1479 = vld [vmem:[#allocation8 + $0x11f8] sm:$0xff]
    %v1480 = vld [vmem:[#allocation8 + $0x1200] sm:$0xff]
    %v1481 = vld [vmem:[#allocation8 + $0x1208] sm:$0xff]
    %v1482 = vld [vmem:[#allocation8 + $0x1210] sm:$0xff]
    %v1483 = vld [vmem:[#allocation8 + $0x1218] sm:$0xff]
    %v1484 = vld [vmem:[#allocation8 + $0x1220] sm:$0xff]
    %v1485 = vld [vmem:[#allocation8 + $0x1228] sm:$0xff]
    %v1486 = vld [vmem:[#allocation8 + $0x1230] sm:$0xff]
    %v1487 = vld [vmem:[#allocation8 + $0x1238] sm:$0xff]
    %v1488 = vld [vmem:[#allocation8 + $0x1240] sm:$0xff]
    %v1489 = vld [vmem:[#allocation8 + $0x1248] sm:$0xff]
    %v1490 = vld [vmem:[#allocation8 + $0x1250] sm:$0xff]
    %v1491 = vld [vmem:[#allocation8 + $0x1258] sm:$0xff]
    %v1492 = vld [vmem:[#allocation8 + $0x1260] sm:$0xff]
    %v1493 = vld [vmem:[#allocation8 + $0x1268] sm:$0xff]
    %v1494 = vld [vmem:[#allocation8 + $0x1270] sm:$0xff]
    %v1495 = vld [vmem:[#allocation8 + $0x1278] sm:$0xff]
    %v1496 = vld [vmem:[#allocation8 + $0x1280] sm:$0xff]
    %v1497 = vld [vmem:[#allocation8 + $0x1288] sm:$0xff]
    %v1498 = vld [vmem:[#allocation8 + $0x1290] sm:$0xff]
    %v1499 = vld [vmem:[#allocation8 + $0x1298] sm:$0xff]
    %v1500 = vld [vmem:[#allocation8 + $0x12a0] sm:$0xff]
    %v1501 = vld [vmem:[#allocation8 + $0x12a8] sm:$0xff]
    %v1502 = vld [vmem:[#allocation8 + $0x12b0] sm:$0xff]
    %v1503 = vld [vmem:[#allocation8 + $0x12b8] sm:$0xff]
    %v1504 = vld [vmem:[#allocation8 + $0x12c0] sm:$0xff]
    %v1505 = vld [vmem:[#allocation8 + $0x12c8] sm:$0xff]
    %v1506 = vld [vmem:[#allocation8 + $0x12d0] sm:$0xff]
    %v1507 = vld [vmem:[#allocation8 + $0x12d8] sm:$0xff]
    %v1508 = vld [vmem:[#allocation8 + $0x12e0] sm:$0xff]
    %v1509 = vld [vmem:[#allocation8 + $0x12e8] sm:$0xff]
    %v1510 = vld [vmem:[#allocation8 + $0x12f0] sm:$0xff]
    %v1511 = vld [vmem:[#allocation8 + $0x12f8] sm:$0xff]
    %v1512 = vld [vmem:[#allocation8 + $0x1300] sm:$0xff]
    %v1513 = vld [vmem:[#allocation8 + $0x1308] sm:$0xff]
    %v1514 = vld [vmem:[#allocation8 + $0x1310] sm:$0xff]
    %v1515 = vld [vmem:[#allocation8 + $0x1318] sm:$0xff]
    %v1516 = vld [vmem:[#allocation8 + $0x1320] sm:$0xff]
    %v1517 = vld [vmem:[#allocation8 + $0x1328] sm:$0xff]
    %v1518 = vld [vmem:[#allocation8 + $0x1330] sm:$0xff]
    %v1519 = vld [vmem:[#allocation8 + $0x1338] sm:$0xff]
    %v1520 = vld [vmem:[#allocation8 + $0x1340] sm:$0xff]
    %v1521 = vld [vmem:[#allocation8 + $0x1348] sm:$0xff]
    %v1522 = vld [vmem:[#allocation8 + $0x1350] sm:$0xff]
    %v1523 = vld [vmem:[#allocation8 + $0x1358] sm:$0xff]
    %v1524 = vld [vmem:[#allocation8 + $0x1360] sm:$0xff]
    %v1525 = vld [vmem:[#allocation8 + $0x1368] sm:$0xff]
    %v1526 = vld [vmem:[#allocation8 + $0x1370] sm:$0xff]
    %v1527 = vld [vmem:[#allocation8 + $0x1378] sm:$0xff]
    %v1528 = vld [vmem:[#allocation8 + $0x1380] sm:$0xff]
    %v1529 = vld [vmem:[#allocation8 + $0x1388] sm:$0xff]
    %v1530 = vld [vmem:[#allocation8 + $0x1390] sm:$0xff]
    %v1531 = vld [vmem:[#allocation8 + $0x1398] sm:$0xff]
    %v1532 = vld [vmem:[#allocation8 + $0x13a0] sm:$0xff]
    %v1533 = vld [vmem:[#allocation8 + $0x13a8] sm:$0xff]
    %v1534 = vld [vmem:[#allocation8 + $0x13b0] sm:$0xff]
    %v1535 = vld [vmem:[#allocation8 + $0x13b8] sm:$0xff]
    %v1536 = vld [vmem:[#allocation8 + $0x13c0] sm:$0xff]
    %v1537 = vld [vmem:[#allocation8 + $0x13c8] sm:$0xff]
    %v1538 = vld [vmem:[#allocation8 + $0x13d0] sm:$0xff]
    %v1539 = vld [vmem:[#allocation8 + $0x13d8] sm:$0xff]
    %v1540 = vld [vmem:[#allocation8 + $0x13e0] sm:$0xff]
    %v1541 = vld [vmem:[#allocation8 + $0x13e8] sm:$0xff]
    %v1542 = vld [vmem:[#allocation8 + $0x13f0] sm:$0xff]
    %v1543 = vld [vmem:[#allocation8 + $0x13f8] sm:$0xff]
    %v1544 = vld [vmem:[#allocation8 + $0x1400] sm:$0xff]
    %v1545 = vld [vmem:[#allocation8 + $0x1408] sm:$0xff]
    %v1546 = vld [vmem:[#allocation8 + $0x1410] sm:$0xff]
    %v1547 = vld [vmem:[#allocation8 + $0x1418] sm:$0xff]
    %v1548 = vld [vmem:[#allocation8 + $0x1420] sm:$0xff]
    %v1549 = vld [vmem:[#allocation8 + $0x1428] sm:$0xff]
    %v1550 = vld [vmem:[#allocation8 + $0x1430] sm:$0xff]
    %v1551 = vld [vmem:[#allocation8 + $0x1438] sm:$0xff]
    %v1552 = vld [vmem:[#allocation8 + $0x1440] sm:$0xff]
    %v1553 = vld [vmem:[#allocation8 + $0x1448] sm:$0xff]
    %v1554 = vld [vmem:[#allocation8 + $0x1450] sm:$0xff]
    %v1555 = vld [vmem:[#allocation8 + $0x1458] sm:$0xff]
    %v1556 = vld [vmem:[#allocation8 + $0x1460] sm:$0xff]
    %v1557 = vld [vmem:[#allocation8 + $0x1468] sm:$0xff]
    %v1558 = vld [vmem:[#allocation8 + $0x1470] sm:$0xff]
    %v1559 = vld [vmem:[#allocation8 + $0x1478] sm:$0xff]
    %v1560 = vld [vmem:[#allocation8 + $0x1480] sm:$0xff]
    %v1561 = vld [vmem:[#allocation8 + $0x1488] sm:$0xff]
    %v1562 = vld [vmem:[#allocation8 + $0x1490] sm:$0xff]
    %v1563 = vld [vmem:[#allocation8 + $0x1498] sm:$0xff]
    %v1564 = vld [vmem:[#allocation8 + $0x14a0] sm:$0xff]
    %v1565 = vld [vmem:[#allocation8 + $0x14a8] sm:$0xff]
    %v1566 = vld [vmem:[#allocation8 + $0x14b0] sm:$0xff]
    %v1567 = vld [vmem:[#allocation8 + $0x14b8] sm:$0xff]
    %v1568 = vld [vmem:[#allocation8 + $0x14c0] sm:$0xff]
    %v1569 = vld [vmem:[#allocation8 + $0x14c8] sm:$0xff]
    %v1570 = vld [vmem:[#allocation8 + $0x14d0] sm:$0xff]
    %v1571 = vld [vmem:[#allocation8 + $0x14d8] sm:$0xff]
    %v1572 = vld [vmem:[#allocation8 + $0x14e0] sm:$0xff]
    %v1573 = vld [vmem:[#allocation8 + $0x14e8] sm:$0xff]
    %v1574 = vld [vmem:[#allocation8 + $0x14f0] sm:$0xff]
    %v1575 = vld [vmem:[#allocation8 + $0x14f8] sm:$0xff]
    %v1576 = vld [vmem:[#allocation8 + $0x1500] sm:$0xff]
    %v1577 = vld [vmem:[#allocation8 + $0x1508] sm:$0xff]
    %v1578 = vld [vmem:[#allocation8 + $0x1510] sm:$0xff]
    %v1579 = vld [vmem:[#allocation8 + $0x1518] sm:$0xff]
    %v1580 = vld [vmem:[#allocation8 + $0x1520] sm:$0xff]
    %v1581 = vld [vmem:[#allocation8 + $0x1528] sm:$0xff]
    %v1582 = vld [vmem:[#allocation8 + $0x1530] sm:$0xff]
    %v1583 = vld [vmem:[#allocation8 + $0x1538] sm:$0xff]
    %v1584 = vld [vmem:[#allocation8 + $0x1540] sm:$0xff]
    %v1585 = vld [vmem:[#allocation8 + $0x1548] sm:$0xff]
    %v1586 = vld [vmem:[#allocation8 + $0x1550] sm:$0xff]
    %v1587 = vld [vmem:[#allocation8 + $0x1558] sm:$0xff]
    %v1588 = vld [vmem:[#allocation8 + $0x1560] sm:$0xff]
    %v1589 = vld [vmem:[#allocation8 + $0x1568] sm:$0xff]
    %v1590 = vld [vmem:[#allocation8 + $0x1570] sm:$0xff]
    %v1591 = vld [vmem:[#allocation8 + $0x1578] sm:$0xff]
    %v1592 = vld [vmem:[#allocation8 + $0x1580] sm:$0xff]
    %v1593 = vld [vmem:[#allocation8 + $0x1588] sm:$0xff]
    %v1594 = vld [vmem:[#allocation8 + $0x1590] sm:$0xff]
    %v1595 = vld [vmem:[#allocation8 + $0x1598] sm:$0xff]
    %v1596 = vld [vmem:[#allocation8 + $0x15a0] sm:$0xff]
    %v1597 = vld [vmem:[#allocation8 + $0x15a8] sm:$0xff]
    %v1598 = vld [vmem:[#allocation8 + $0x15b0] sm:$0xff]
    %v1599 = vld [vmem:[#allocation8 + $0x15b8] sm:$0xff]
    %v1600 = vld [vmem:[#allocation8 + $0x15c0] sm:$0xff]
    %v1601 = vld [vmem:[#allocation8 + $0x15c8] sm:$0xff]
    %v1602 = vld [vmem:[#allocation8 + $0x15d0] sm:$0xff]
    %v1603 = vld [vmem:[#allocation8 + $0x15d8] sm:$0xff]
    %v1604 = vld [vmem:[#allocation8 + $0x15e0] sm:$0xff]
    %v1605 = vld [vmem:[#allocation8 + $0x15e8] sm:$0xff]
    %v1606 = vld [vmem:[#allocation8 + $0x15f0] sm:$0xff]
    %v1607 = vld [vmem:[#allocation8 + $0x15f8] sm:$0xff]
    %v1608 = vld [vmem:[#allocation8 + $0x1600] sm:$0xff]
    %v1609 = vld [vmem:[#allocation8 + $0x1608] sm:$0xff]
    %v1610 = vld [vmem:[#allocation8 + $0x1610] sm:$0xff]
    %v1611 = vld [vmem:[#allocation8 + $0x1618] sm:$0xff]
    %v1612 = vld [vmem:[#allocation8 + $0x1620] sm:$0xff]
    %v1613 = vld [vmem:[#allocation8 + $0x1628] sm:$0xff]
    %v1614 = vld [vmem:[#allocation8 + $0x1630] sm:$0xff]
    %v1615 = vld [vmem:[#allocation8 + $0x1638] sm:$0xff]
    %v1616 = vld [vmem:[#allocation8 + $0x1640] sm:$0xff]
    %v1617 = vld [vmem:[#allocation8 + $0x1648] sm:$0xff]
    %v1618 = vld [vmem:[#allocation8 + $0x1650] sm:$0xff]
    %v1619 = vld [vmem:[#allocation8 + $0x1658] sm:$0xff]
    %v1620 = vld [vmem:[#allocation8 + $0x1660] sm:$0xff]
    %v1621 = vld [vmem:[#allocation8 + $0x1668] sm:$0xff]
    %v1622 = vld [vmem:[#allocation8 + $0x1670] sm:$0xff]
    %v1623 = vld [vmem:[#allocation8 + $0x1678] sm:$0xff]
    %v1624 = vld [vmem:[#allocation8 + $0x1680] sm:$0xff]
    %v1625 = vld [vmem:[#allocation8 + $0x1688] sm:$0xff]
    %v1626 = vld [vmem:[#allocation8 + $0x1690] sm:$0xff]
    %v1627 = vld [vmem:[#allocation8 + $0x1698] sm:$0xff]
    %v1628 = vld [vmem:[#allocation8 + $0x16a0] sm:$0xff]
    %v1629 = vld [vmem:[#allocation8 + $0x16a8] sm:$0xff]
    %v1630 = vld [vmem:[#allocation8 + $0x16b0] sm:$0xff]
    %v1631 = vld [vmem:[#allocation8 + $0x16b8] sm:$0xff]
    %v1632 = vld [vmem:[#allocation8 + $0x16c0] sm:$0xff]
    %v1633 = vld [vmem:[#allocation8 + $0x16c8] sm:$0xff]
    %v1634 = vld [vmem:[#allocation8 + $0x16d0] sm:$0xff]
    %v1635 = vld [vmem:[#allocation8 + $0x16d8] sm:$0xff]
    %v1636 = vld [vmem:[#allocation8 + $0x16e0] sm:$0xff]
    %v1637 = vld [vmem:[#allocation8 + $0x16e8] sm:$0xff]
    %v1638 = vld [vmem:[#allocation8 + $0x16f0] sm:$0xff]
    %v1639 = vld [vmem:[#allocation8 + $0x16f8] sm:$0xff]
    %v1640 = vld [vmem:[#allocation8 + $0x1700] sm:$0xff]
    %v1641 = vld [vmem:[#allocation8 + $0x1708] sm:$0xff]
    %v1642 = vld [vmem:[#allocation8 + $0x1710] sm:$0xff]
    %v1643 = vld [vmem:[#allocation8 + $0x1718] sm:$0xff]
    %v1644 = vld [vmem:[#allocation8 + $0x1720] sm:$0xff]
    %v1645 = vld [vmem:[#allocation8 + $0x1728] sm:$0xff]
    %v1646 = vld [vmem:[#allocation8 + $0x1730] sm:$0xff]
    %v1647 = vld [vmem:[#allocation8 + $0x1738] sm:$0xff]
    %v1648 = vld [vmem:[#allocation8 + $0x1740] sm:$0xff]
    %v1649 = vld [vmem:[#allocation8 + $0x1748] sm:$0xff]
    %v1650 = vld [vmem:[#allocation8 + $0x1750] sm:$0xff]
    %v1651 = vld [vmem:[#allocation8 + $0x1758] sm:$0xff]
    %v1652 = vld [vmem:[#allocation8 + $0x1760] sm:$0xff]
    %v1653 = vld [vmem:[#allocation8 + $0x1768] sm:$0xff]
    %v1654 = vld [vmem:[#allocation8 + $0x1770] sm:$0xff]
    %v1655 = vld [vmem:[#allocation8 + $0x1778] sm:$0xff]
    %v1656 = vld [vmem:[#allocation8 + $0x1780] sm:$0xff]
    %v1657 = vld [vmem:[#allocation8 + $0x1788] sm:$0xff]
    %v1658 = vld [vmem:[#allocation8 + $0x1790] sm:$0xff]
    %v1659 = vld [vmem:[#allocation8 + $0x1798] sm:$0xff]
    %v1660 = vld [vmem:[#allocation8 + $0x17a0] sm:$0xff]
    %v1661 = vld [vmem:[#allocation8 + $0x17a8] sm:$0xff]
    %v1662 = vld [vmem:[#allocation8 + $0x17b0] sm:$0xff]
    %v1663 = vld [vmem:[#allocation8 + $0x17b8] sm:$0xff]
    %v1664 = vld [vmem:[#allocation8 + $0x17c0] sm:$0xff]
    %v1665 = vld [vmem:[#allocation8 + $0x17c8] sm:$0xff]
    %v1666 = vld [vmem:[#allocation8 + $0x17d0] sm:$0xff]
    %v1667 = vld [vmem:[#allocation8 + $0x17d8] sm:$0xff]
    %v1668 = vld [vmem:[#allocation8 + $0x17e0] sm:$0xff]
    %v1669 = vld [vmem:[#allocation8 + $0x17e8] sm:$0xff]
    %v1670 = vld [vmem:[#allocation8 + $0x17f0] sm:$0xff]
    %v1671 = vld [vmem:[#allocation8 + $0x17f8] sm:$0xff]
    %v1672 = vld [vmem:[#allocation8 + $0x1800] sm:$0xff]
    %v1673 = vld [vmem:[#allocation8 + $0x1808] sm:$0xff]
    %v1674 = vld [vmem:[#allocation8 + $0x1810] sm:$0xff]
    %v1675 = vld [vmem:[#allocation8 + $0x1818] sm:$0xff]
    %v1676 = vld [vmem:[#allocation8 + $0x1820] sm:$0xff]
    %v1677 = vld [vmem:[#allocation8 + $0x1828] sm:$0xff]
    %v1678 = vld [vmem:[#allocation8 + $0x1830] sm:$0xff]
    %v1679 = vld [vmem:[#allocation8 + $0x1838] sm:$0xff]
    %v1680 = vld [vmem:[#allocation8 + $0x1840] sm:$0xff]
    %v1681 = vld [vmem:[#allocation8 + $0x1848] sm:$0xff]
    %v1682 = vld [vmem:[#allocation8 + $0x1850] sm:$0xff]
    %v1683 = vld [vmem:[#allocation8 + $0x1858] sm:$0xff]
    %v1684 = vld [vmem:[#allocation8 + $0x1860] sm:$0xff]
    %v1685 = vld [vmem:[#allocation8 + $0x1868] sm:$0xff]
    %v1686 = vld [vmem:[#allocation8 + $0x1870] sm:$0xff]
    %v1687 = vld [vmem:[#allocation8 + $0x1878] sm:$0xff]
    %v1688 = vld [vmem:[#allocation8 + $0x1880] sm:$0xff]
    %v1689 = vld [vmem:[#allocation8 + $0x1888] sm:$0xff]
    %v1690 = vld [vmem:[#allocation8 + $0x1890] sm:$0xff]
    %v1691 = vld [vmem:[#allocation8 + $0x1898] sm:$0xff]
    %v1692 = vld [vmem:[#allocation8 + $0x18a0] sm:$0xff]
    %v1693 = vld [vmem:[#allocation8 + $0x18a8] sm:$0xff]
    %v1694 = vld [vmem:[#allocation8 + $0x18b0] sm:$0xff]
    %v1695 = vld [vmem:[#allocation8 + $0x18b8] sm:$0xff]
    %v1696 = vld [vmem:[#allocation8 + $0x18c0] sm:$0xff]
    %v1697 = vld [vmem:[#allocation8 + $0x18c8] sm:$0xff]
    %v1698 = vld [vmem:[#allocation8 + $0x18d0] sm:$0xff]
    %v1699 = vld [vmem:[#allocation8 + $0x18d8] sm:$0xff]
    %v1700 = vld [vmem:[#allocation8 + $0x18e0] sm:$0xff]
    %v1701 = vld [vmem:[#allocation8 + $0x18e8] sm:$0xff]
    %v1702 = vld [vmem:[#allocation8 + $0x18f0] sm:$0xff]
    %v1703 = vld [vmem:[#allocation8 + $0x18f8] sm:$0xff]
    %v1704 = vld [vmem:[#allocation10] sm:$0xff]
    %v1705 = vld [vmem:[#allocation10 + $0x8] sm:$0x3]
    %v1708 = vlaneseq
    %v1709 = vshrl.u32 %v1708, 7
    %v1710 = vsub.s32 0, %v1709
    %v1711 = vrot.slane %v1704, %v1710
    %v1712 = vlaneseq
    %v1713 = vshrl.u32 %v1712, 7
    %v1714 = vsub.s32 1, %v1713
    %v1715 = vrot.slane %v1704, %v1714
    %v1716 = vlaneseq
    %v1717 = vshrl.u32 %v1716, 7
    %v1718 = vsub.s32 2, %v1717
    %v1719 = vrot.slane %v1704, %v1718
    %v1720 = vlaneseq
    %v1721 = vshrl.u32 %v1720, 7
    %v1722 = vsub.s32 3, %v1721
    %v1723 = vrot.slane %v1704, %v1722
    %v1724 = vlaneseq
    %v1725 = vshrl.u32 %v1724, 7
    %v1726 = vsub.s32 4, %v1725
    %v1727 = vrot.slane %v1704, %v1726
    %v1728 = vlaneseq
    %v1729 = vshrl.u32 %v1728, 7
    %v1730 = vsub.s32 5, %v1729
    %v1731 = vrot.slane %v1704, %v1730
    %v1732 = vlaneseq
    %v1733 = vshrl.u32 %v1732, 7
    %v1734 = vsub.s32 6, %v1733
    %v1735 = vrot.slane %v1704, %v1734
    %v1736 = vlaneseq
    %v1737 = vshrl.u32 %v1736, 7
    %v1738 = vsub.s32 7, %v1737
    %v1739 = vrot.slane %v1704, %v1738
    %v1740 = vlaneseq
    %v1741 = vshrl.u32 %v1740, 7
    %v1742 = vsub.s32 0, %v1741
    %v1743 = vrot.slane %v1705, %v1742
    %v1744 = vlaneseq
    %v1745 = vshrl.u32 %v1744, 7
    %v1746 = vsub.s32 1, %v1745
    %v1747 = vrot.slane %v1705, %v1746
    %v2558 = vunpack.c.l.b16 %v904
    %v2559 = vunpack.c.h.b16 %v904
    %v2560 = vunpack.c.l.b16 %v905
    %v2561 = vunpack.c.h.b16 %v905
    %v2562 = vunpack.c.l.b16 %v906
    %v2563 = vunpack.c.h.b16 %v906
    %v2564 = vunpack.c.l.b16 %v907
    %v2565 = vunpack.c.h.b16 %v907
    %v2566 = vunpack.c.l.b16 %v908
    %v2567 = vunpack.c.h.b16 %v908
    %v2568 = vunpack.c.l.b16 %v909
    %v2569 = vunpack.c.h.b16 %v909
    %v2570 = vunpack.c.l.b16 %v910
    %v2571 = vunpack.c.h.b16 %v910
    %v2572 = vunpack.c.l.b16 %v911
    %v2573 = vunpack.c.h.b16 %v911
    %v2574 = vunpack.c.l.b16 %v912
    %v2575 = vunpack.c.h.b16 %v912
    %v2576 = vunpack.c.l.b16 %v913
    %v2577 = vunpack.c.h.b16 %v913
    %v2578 = vunpack.c.l.b16 %v914
    %v2579 = vunpack.c.h.b16 %v914
    %v2580 = vunpack.c.l.b16 %v915
    %v2581 = vunpack.c.h.b16 %v915
    %v2582 = vunpack.c.l.b16 %v916
    %v2583 = vunpack.c.h.b16 %v916
    %v2584 = vunpack.c.l.b16 %v917
    %v2585 = vunpack.c.h.b16 %v917
    %v2586 = vunpack.c.l.b16 %v918
    %v2587 = vunpack.c.h.b16 %v918
    %v2588 = vunpack.c.l.b16 %v919
    %v2589 = vunpack.c.h.b16 %v919
    %v2590 = vunpack.c.l.b16 %v920
    %v2591 = vunpack.c.h.b16 %v920
    %v2592 = vunpack.c.l.b16 %v921
    %v2593 = vunpack.c.h.b16 %v921
    %v2594 = vunpack.c.l.b16 %v922
    %v2595 = vunpack.c.h.b16 %v922
    %v2596 = vunpack.c.l.b16 %v923
    %v2597 = vunpack.c.h.b16 %v923
    %v2598 = vunpack.c.l.b16 %v924
    %v2599 = vunpack.c.h.b16 %v924
    %v2600 = vunpack.c.l.b16 %v925
    %v2601 = vunpack.c.h.b16 %v925
    %v2602 = vunpack.c.l.b16 %v926
    %v2603 = vunpack.c.h.b16 %v926
    %v2604 = vunpack.c.l.b16 %v927
    %v2605 = vunpack.c.h.b16 %v927
    %v2606 = vunpack.c.l.b16 %v928
    %v2607 = vunpack.c.h.b16 %v928
    %v2608 = vunpack.c.l.b16 %v929
    %v2609 = vunpack.c.h.b16 %v929
    %v2610 = vunpack.c.l.b16 %v930
    %v2611 = vunpack.c.h.b16 %v930
    %v2612 = vunpack.c.l.b16 %v931
    %v2613 = vunpack.c.h.b16 %v931
    %v2614 = vunpack.c.l.b16 %v932
    %v2615 = vunpack.c.h.b16 %v932
    %v2616 = vunpack.c.l.b16 %v933
    %v2617 = vunpack.c.h.b16 %v933
    %v2618 = vunpack.c.l.b16 %v934
    %v2619 = vunpack.c.h.b16 %v934
    %v2620 = vunpack.c.l.b16 %v935
    %v2621 = vunpack.c.h.b16 %v935
    %v2622 = vunpack.c.l.b16 %v936
    %v2623 = vunpack.c.h.b16 %v936
    %v2624 = vunpack.c.l.b16 %v937
    %v2625 = vunpack.c.h.b16 %v937
    %v2626 = vunpack.c.l.b16 %v938
    %v2627 = vunpack.c.h.b16 %v938
    %v2628 = vunpack.c.l.b16 %v939
    %v2629 = vunpack.c.h.b16 %v939
    %v2630 = vunpack.c.l.b16 %v940
    %v2631 = vunpack.c.h.b16 %v940
    %v2632 = vunpack.c.l.b16 %v941
    %v2633 = vunpack.c.h.b16 %v941
    %v2634 = vunpack.c.l.b16 %v942
    %v2635 = vunpack.c.h.b16 %v942
    %v2636 = vunpack.c.l.b16 %v943
    %v2637 = vunpack.c.h.b16 %v943
    %v2638 = vunpack.c.l.b16 %v944
    %v2639 = vunpack.c.h.b16 %v944
    %v2640 = vunpack.c.l.b16 %v945
    %v2641 = vunpack.c.h.b16 %v945
    %v2642 = vunpack.c.l.b16 %v946
    %v2643 = vunpack.c.h.b16 %v946
    %v2644 = vunpack.c.l.b16 %v947
    %v2645 = vunpack.c.h.b16 %v947
    %v2646 = vunpack.c.l.b16 %v948
    %v2647 = vunpack.c.h.b16 %v948
    %v2648 = vunpack.c.l.b16 %v949
    %v2649 = vunpack.c.h.b16 %v949
    %v2650 = vunpack.c.l.b16 %v950
    %v2651 = vunpack.c.h.b16 %v950
    %v2652 = vunpack.c.l.b16 %v951
    %v2653 = vunpack.c.h.b16 %v951
    %v2654 = vunpack.c.l.b16 %v952
    %v2655 = vunpack.c.h.b16 %v952
    %v2656 = vunpack.c.l.b16 %v953
    %v2657 = vunpack.c.h.b16 %v953
    %v2658 = vunpack.c.l.b16 %v954
    %v2659 = vunpack.c.h.b16 %v954
    %v2660 = vunpack.c.l.b16 %v955
    %v2661 = vunpack.c.h.b16 %v955
    %v2662 = vunpack.c.l.b16 %v956
    %v2663 = vunpack.c.h.b16 %v956
    %v2664 = vunpack.c.l.b16 %v957
    %v2665 = vunpack.c.h.b16 %v957
    %v2666 = vunpack.c.l.b16 %v958
    %v2667 = vunpack.c.h.b16 %v958
    %v2668 = vunpack.c.l.b16 %v959
    %v2669 = vunpack.c.h.b16 %v959
    %v2670 = vunpack.c.l.b16 %v960
    %v2671 = vunpack.c.h.b16 %v960
    %v2672 = vunpack.c.l.b16 %v961
    %v2673 = vunpack.c.h.b16 %v961
    %v2674 = vunpack.c.l.b16 %v962
    %v2675 = vunpack.c.h.b16 %v962
    %v2676 = vunpack.c.l.b16 %v963
    %v2677 = vunpack.c.h.b16 %v963
    %v2678 = vunpack.c.l.b16 %v964
    %v2679 = vunpack.c.h.b16 %v964
    %v2680 = vunpack.c.l.b16 %v965
    %v2681 = vunpack.c.h.b16 %v965
    %v2682 = vunpack.c.l.b16 %v966
    %v2683 = vunpack.c.h.b16 %v966
    %v2684 = vunpack.c.l.b16 %v967
    %v2685 = vunpack.c.h.b16 %v967
    %v2686 = vunpack.c.l.b16 %v968
    %v2687 = vunpack.c.h.b16 %v968
    %v2688 = vunpack.c.l.b16 %v969
    %v2689 = vunpack.c.h.b16 %v969
    %v2690 = vunpack.c.l.b16 %v970
    %v2691 = vunpack.c.h.b16 %v970
    %v2692 = vunpack.c.l.b16 %v971
    %v2693 = vunpack.c.h.b16 %v971
    %v2694 = vunpack.c.l.b16 %v972
    %v2695 = vunpack.c.h.b16 %v972
    %v2696 = vunpack.c.l.b16 %v973
    %v2697 = vunpack.c.h.b16 %v973
    %v2698 = vunpack.c.l.b16 %v974
    %v2699 = vunpack.c.h.b16 %v974
    %v2700 = vunpack.c.l.b16 %v975
    %v2701 = vunpack.c.h.b16 %v975
    %v2702 = vunpack.c.l.b16 %v976
    %v2703 = vunpack.c.h.b16 %v976
    %v2704 = vunpack.c.l.b16 %v977
    %v2705 = vunpack.c.h.b16 %v977
    %v2706 = vunpack.c.l.b16 %v978
    %v2707 = vunpack.c.h.b16 %v978
    %v2708 = vunpack.c.l.b16 %v979
    %v2709 = vunpack.c.h.b16 %v979
    %v2710 = vunpack.c.l.b16 %v980
    %v2711 = vunpack.c.h.b16 %v980
    %v2712 = vunpack.c.l.b16 %v981
    %v2713 = vunpack.c.h.b16 %v981
    %v2714 = vunpack.c.l.b16 %v982
    %v2715 = vunpack.c.h.b16 %v982
    %v2716 = vunpack.c.l.b16 %v983
    %v2717 = vunpack.c.h.b16 %v983
    %v2718 = vunpack.c.l.b16 %v984
    %v2719 = vunpack.c.h.b16 %v984
    %v2720 = vunpack.c.l.b16 %v985
    %v2721 = vunpack.c.h.b16 %v985
    %v2722 = vunpack.c.l.b16 %v986
    %v2723 = vunpack.c.h.b16 %v986
    %v2724 = vunpack.c.l.b16 %v987
    %v2725 = vunpack.c.h.b16 %v987
    %v2726 = vunpack.c.l.b16 %v988
    %v2727 = vunpack.c.h.b16 %v988
    %v2728 = vunpack.c.l.b16 %v989
    %v2729 = vunpack.c.h.b16 %v989
    %v2730 = vunpack.c.l.b16 %v990
    %v2731 = vunpack.c.h.b16 %v990
    %v2732 = vunpack.c.l.b16 %v991
    %v2733 = vunpack.c.h.b16 %v991
    %v2734 = vunpack.c.l.b16 %v992
    %v2735 = vunpack.c.h.b16 %v992
    %v2736 = vunpack.c.l.b16 %v993
    %v2737 = vunpack.c.h.b16 %v993
    %v2738 = vunpack.c.l.b16 %v994
    %v2739 = vunpack.c.h.b16 %v994
    %v2740 = vunpack.c.l.b16 %v995
    %v2741 = vunpack.c.h.b16 %v995
    %v2742 = vunpack.c.l.b16 %v996
    %v2743 = vunpack.c.h.b16 %v996
    %v2744 = vunpack.c.l.b16 %v997
    %v2745 = vunpack.c.h.b16 %v997
    %v2746 = vunpack.c.l.b16 %v998
    %v2747 = vunpack.c.h.b16 %v998
    %v2748 = vunpack.c.l.b16 %v999
    %v2749 = vunpack.c.h.b16 %v999
    %v2750 = vunpack.c.l.b16 %v1000
    %v2751 = vunpack.c.h.b16 %v1000
    %v2752 = vunpack.c.l.b16 %v1001
    %v2753 = vunpack.c.h.b16 %v1001
    %v2754 = vunpack.c.l.b16 %v1002
    %v2755 = vunpack.c.h.b16 %v1002
    %v2756 = vunpack.c.l.b16 %v1003
    %v2757 = vunpack.c.h.b16 %v1003
    %v2758 = vunpack.c.l.b16 %v1004
    %v2759 = vunpack.c.h.b16 %v1004
    %v2760 = vunpack.c.l.b16 %v1005
    %v2761 = vunpack.c.h.b16 %v1005
    %v2762 = vunpack.c.l.b16 %v1006
    %v2763 = vunpack.c.h.b16 %v1006
    %v2764 = vunpack.c.l.b16 %v1007
    %v2765 = vunpack.c.h.b16 %v1007
    %v2766 = vunpack.c.l.b16 %v1008
    %v2767 = vunpack.c.h.b16 %v1008
    %v2768 = vunpack.c.l.b16 %v1009
    %v2769 = vunpack.c.h.b16 %v1009
    %v2770 = vunpack.c.l.b16 %v1010
    %v2771 = vunpack.c.h.b16 %v1010
    %v2772 = vunpack.c.l.b16 %v1011
    %v2773 = vunpack.c.h.b16 %v1011
    %v2774 = vunpack.c.l.b16 %v1012
    %v2775 = vunpack.c.h.b16 %v1012
    %v2776 = vunpack.c.l.b16 %v1013
    %v2777 = vunpack.c.h.b16 %v1013
    %v2778 = vunpack.c.l.b16 %v1014
    %v2779 = vunpack.c.h.b16 %v1014
    %v2780 = vunpack.c.l.b16 %v1015
    %v2781 = vunpack.c.h.b16 %v1015
    %v2782 = vunpack.c.l.b16 %v1016
    %v2783 = vunpack.c.h.b16 %v1016
    %v2784 = vunpack.c.l.b16 %v1017
    %v2785 = vunpack.c.h.b16 %v1017
    %v2786 = vunpack.c.l.b16 %v1018
    %v2787 = vunpack.c.h.b16 %v1018
    %v2788 = vunpack.c.l.b16 %v1019
    %v2789 = vunpack.c.h.b16 %v1019
    %v2790 = vunpack.c.l.b16 %v1020
    %v2791 = vunpack.c.h.b16 %v1020
    %v2792 = vunpack.c.l.b16 %v1021
    %v2793 = vunpack.c.h.b16 %v1021
    %v2794 = vunpack.c.l.b16 %v1022
    %v2795 = vunpack.c.h.b16 %v1022
    %v2796 = vunpack.c.l.b16 %v1023
    %v2797 = vunpack.c.h.b16 %v1023
    %v2798 = vunpack.c.l.b16 %v1024
    %v2799 = vunpack.c.h.b16 %v1024
    %v2800 = vunpack.c.l.b16 %v1025
    %v2801 = vunpack.c.h.b16 %v1025
    %v2802 = vunpack.c.l.b16 %v1026
    %v2803 = vunpack.c.h.b16 %v1026
    %v2804 = vunpack.c.l.b16 %v1027
    %v2805 = vunpack.c.h.b16 %v1027
    %v2806 = vunpack.c.l.b16 %v1028
    %v2807 = vunpack.c.h.b16 %v1028
    %v2808 = vunpack.c.l.b16 %v1029
    %v2809 = vunpack.c.h.b16 %v1029
    %v2810 = vunpack.c.l.b16 %v1030
    %v2811 = vunpack.c.h.b16 %v1030
    %v2812 = vunpack.c.l.b16 %v1031
    %v2813 = vunpack.c.h.b16 %v1031
    %v2814 = vunpack.c.l.b16 %v1032
    %v2815 = vunpack.c.h.b16 %v1032
    %v2816 = vunpack.c.l.b16 %v1033
    %v2817 = vunpack.c.h.b16 %v1033
    %v2818 = vunpack.c.l.b16 %v1034
    %v2819 = vunpack.c.h.b16 %v1034
    %v2820 = vunpack.c.l.b16 %v1035
    %v2821 = vunpack.c.h.b16 %v1035
    %v2822 = vunpack.c.l.b16 %v1036
    %v2823 = vunpack.c.h.b16 %v1036
    %v2824 = vunpack.c.l.b16 %v1037
    %v2825 = vunpack.c.h.b16 %v1037
    %v2826 = vunpack.c.l.b16 %v1038
    %v2827 = vunpack.c.h.b16 %v1038
    %v2828 = vunpack.c.l.b16 %v1039
    %v2829 = vunpack.c.h.b16 %v1039
    %v2830 = vunpack.c.l.b16 %v1040
    %v2831 = vunpack.c.h.b16 %v1040
    %v2832 = vunpack.c.l.b16 %v1041
    %v2833 = vunpack.c.h.b16 %v1041
    %v2834 = vunpack.c.l.b16 %v1042
    %v2835 = vunpack.c.h.b16 %v1042
    %v2836 = vunpack.c.l.b16 %v1043
    %v2837 = vunpack.c.h.b16 %v1043
    %v2838 = vunpack.c.l.b16 %v1044
    %v2839 = vunpack.c.h.b16 %v1044
    %v2840 = vunpack.c.l.b16 %v1045
    %v2841 = vunpack.c.h.b16 %v1045
    %v2842 = vunpack.c.l.b16 %v1046
    %v2843 = vunpack.c.h.b16 %v1046
    %v2844 = vunpack.c.l.b16 %v1047
    %v2845 = vunpack.c.h.b16 %v1047
    %v2846 = vunpack.c.l.b16 %v1048
    %v2847 = vunpack.c.h.b16 %v1048
    %v2848 = vunpack.c.l.b16 %v1049
    %v2849 = vunpack.c.h.b16 %v1049
    %v2850 = vunpack.c.l.b16 %v1050
    %v2851 = vunpack.c.h.b16 %v1050
    %v2852 = vunpack.c.l.b16 %v1051
    %v2853 = vunpack.c.h.b16 %v1051
    %v2854 = vunpack.c.l.b16 %v1052
    %v2855 = vunpack.c.h.b16 %v1052
    %v2856 = vunpack.c.l.b16 %v1053
    %v2857 = vunpack.c.h.b16 %v1053
    %v2858 = vunpack.c.l.b16 %v1054
    %v2859 = vunpack.c.h.b16 %v1054
    %v2860 = vunpack.c.l.b16 %v1055
    %v2861 = vunpack.c.h.b16 %v1055
    %v2862 = vunpack.c.l.b16 %v1056
    %v2863 = vunpack.c.h.b16 %v1056
    %v2864 = vunpack.c.l.b16 %v1057
    %v2865 = vunpack.c.h.b16 %v1057
    %v2866 = vunpack.c.l.b16 %v1058
    %v2867 = vunpack.c.h.b16 %v1058
    %v2868 = vunpack.c.l.b16 %v1059
    %v2869 = vunpack.c.h.b16 %v1059
    %v2870 = vunpack.c.l.b16 %v1060
    %v2871 = vunpack.c.h.b16 %v1060
    %v2872 = vunpack.c.l.b16 %v1061
    %v2873 = vunpack.c.h.b16 %v1061
    %v2874 = vunpack.c.l.b16 %v1062
    %v2875 = vunpack.c.h.b16 %v1062
    %v2876 = vunpack.c.l.b16 %v1063
    %v2877 = vunpack.c.h.b16 %v1063
    %v2878 = vunpack.c.l.b16 %v1064
    %v2879 = vunpack.c.h.b16 %v1064
    %v2880 = vunpack.c.l.b16 %v1065
    %v2881 = vunpack.c.h.b16 %v1065
    %v2882 = vunpack.c.l.b16 %v1066
    %v2883 = vunpack.c.h.b16 %v1066
    %v2884 = vunpack.c.l.b16 %v1067
    %v2885 = vunpack.c.h.b16 %v1067
    %v2886 = vunpack.c.l.b16 %v1068
    %v2887 = vunpack.c.h.b16 %v1068
    %v2888 = vunpack.c.l.b16 %v1069
    %v2889 = vunpack.c.h.b16 %v1069
    %v2890 = vunpack.c.l.b16 %v1070
    %v2891 = vunpack.c.h.b16 %v1070
    %v2892 = vunpack.c.l.b16 %v1071
    %v2893 = vunpack.c.h.b16 %v1071
    %v2894 = vunpack.c.l.b16 %v1072
    %v2895 = vunpack.c.h.b16 %v1072
    %v2896 = vunpack.c.l.b16 %v1073
    %v2897 = vunpack.c.h.b16 %v1073
    %v2898 = vunpack.c.l.b16 %v1074
    %v2899 = vunpack.c.h.b16 %v1074
    %v2900 = vunpack.c.l.b16 %v1075
    %v2901 = vunpack.c.h.b16 %v1075
    %v2902 = vunpack.c.l.b16 %v1076
    %v2903 = vunpack.c.h.b16 %v1076
    %v2904 = vunpack.c.l.b16 %v1077
    %v2905 = vunpack.c.h.b16 %v1077
    %v2906 = vunpack.c.l.b16 %v1078
    %v2907 = vunpack.c.h.b16 %v1078
    %v2908 = vunpack.c.l.b16 %v1079
    %v2909 = vunpack.c.h.b16 %v1079
    %v2910 = vunpack.c.l.b16 %v1080
    %v2911 = vunpack.c.h.b16 %v1080
    %v2912 = vunpack.c.l.b16 %v1081
    %v2913 = vunpack.c.h.b16 %v1081
    %v2914 = vunpack.c.l.b16 %v1082
    %v2915 = vunpack.c.h.b16 %v1082
    %v2916 = vunpack.c.l.b16 %v1083
    %v2917 = vunpack.c.h.b16 %v1083
    %v2918 = vunpack.c.l.b16 %v1084
    %v2919 = vunpack.c.h.b16 %v1084
    %v2920 = vunpack.c.l.b16 %v1085
    %v2921 = vunpack.c.h.b16 %v1085
    %v2922 = vunpack.c.l.b16 %v1086
    %v2923 = vunpack.c.h.b16 %v1086
    %v2924 = vunpack.c.l.b16 %v1087
    %v2925 = vunpack.c.h.b16 %v1087
    %v2926 = vunpack.c.l.b16 %v1088
    %v2927 = vunpack.c.h.b16 %v1088
    %v2928 = vunpack.c.l.b16 %v1089
    %v2929 = vunpack.c.h.b16 %v1089
    %v2930 = vunpack.c.l.b16 %v1090
    %v2931 = vunpack.c.h.b16 %v1090
    %v2932 = vunpack.c.l.b16 %v1091
    %v2933 = vunpack.c.h.b16 %v1091
    %v2934 = vunpack.c.l.b16 %v1092
    %v2935 = vunpack.c.h.b16 %v1092
    %v2936 = vunpack.c.l.b16 %v1093
    %v2937 = vunpack.c.h.b16 %v1093
    %v2938 = vunpack.c.l.b16 %v1094
    %v2939 = vunpack.c.h.b16 %v1094
    %v2940 = vunpack.c.l.b16 %v1095
    %v2941 = vunpack.c.h.b16 %v1095
    %v2942 = vunpack.c.l.b16 %v1096
    %v2943 = vunpack.c.h.b16 %v1096
    %v2944 = vunpack.c.l.b16 %v1097
    %v2945 = vunpack.c.h.b16 %v1097
    %v2946 = vunpack.c.l.b16 %v1098
    %v2947 = vunpack.c.h.b16 %v1098
    %v2948 = vunpack.c.l.b16 %v1099
    %v2949 = vunpack.c.h.b16 %v1099
    %v2950 = vunpack.c.l.b16 %v1100
    %v2951 = vunpack.c.h.b16 %v1100
    %v2952 = vunpack.c.l.b16 %v1101
    %v2953 = vunpack.c.h.b16 %v1101
    %v2954 = vunpack.c.l.b16 %v1102
    %v2955 = vunpack.c.h.b16 %v1102
    %v2956 = vunpack.c.l.b16 %v1103
    %v2957 = vunpack.c.h.b16 %v1103
    %v2958 = vunpack.c.l.b16 %v1104
    %v2959 = vunpack.c.h.b16 %v1104
    %v2960 = vunpack.c.l.b16 %v1105
    %v2961 = vunpack.c.h.b16 %v1105
    %v2962 = vunpack.c.l.b16 %v1106
    %v2963 = vunpack.c.h.b16 %v1106
    %v2964 = vunpack.c.l.b16 %v1107
    %v2965 = vunpack.c.h.b16 %v1107
    %v2966 = vunpack.c.l.b16 %v1108
    %v2967 = vunpack.c.h.b16 %v1108
    %v2968 = vunpack.c.l.b16 %v1109
    %v2969 = vunpack.c.h.b16 %v1109
    %v2970 = vunpack.c.l.b16 %v1110
    %v2971 = vunpack.c.h.b16 %v1110
    %v2972 = vunpack.c.l.b16 %v1111
    %v2973 = vunpack.c.h.b16 %v1111
    %v2974 = vunpack.c.l.b16 %v1112
    %v2975 = vunpack.c.h.b16 %v1112
    %v2976 = vunpack.c.l.b16 %v1113
    %v2977 = vunpack.c.h.b16 %v1113
    %v2978 = vunpack.c.l.b16 %v1114
    %v2979 = vunpack.c.h.b16 %v1114
    %v2980 = vunpack.c.l.b16 %v1115
    %v2981 = vunpack.c.h.b16 %v1115
    %v2982 = vunpack.c.l.b16 %v1116
    %v2983 = vunpack.c.h.b16 %v1116
    %v2984 = vunpack.c.l.b16 %v1117
    %v2985 = vunpack.c.h.b16 %v1117
    %v2986 = vunpack.c.l.b16 %v1118
    %v2987 = vunpack.c.h.b16 %v1118
    %v2988 = vunpack.c.l.b16 %v1119
    %v2989 = vunpack.c.h.b16 %v1119
    %v2990 = vunpack.c.l.b16 %v1120
    %v2991 = vunpack.c.h.b16 %v1120
    %v2992 = vunpack.c.l.b16 %v1121
    %v2993 = vunpack.c.h.b16 %v1121
    %v2994 = vunpack.c.l.b16 %v1122
    %v2995 = vunpack.c.h.b16 %v1122
    %v2996 = vunpack.c.l.b16 %v1123
    %v2997 = vunpack.c.h.b16 %v1123
    %v2998 = vunpack.c.l.b16 %v1124
    %v2999 = vunpack.c.h.b16 %v1124
    %v3000 = vunpack.c.l.b16 %v1125
    %v3001 = vunpack.c.h.b16 %v1125
    %v3002 = vunpack.c.l.b16 %v1126
    %v3003 = vunpack.c.h.b16 %v1126
    %v3004 = vunpack.c.l.b16 %v1127
    %v3005 = vunpack.c.h.b16 %v1127
    %v3006 = vunpack.c.l.b16 %v1128
    %v3007 = vunpack.c.h.b16 %v1128
    %v3008 = vunpack.c.l.b16 %v1129
    %v3009 = vunpack.c.h.b16 %v1129
    %v3010 = vunpack.c.l.b16 %v1130
    %v3011 = vunpack.c.h.b16 %v1130
    %v3012 = vunpack.c.l.b16 %v1131
    %v3013 = vunpack.c.h.b16 %v1131
    %v3014 = vunpack.c.l.b16 %v1132
    %v3015 = vunpack.c.h.b16 %v1132
    %v3016 = vunpack.c.l.b16 %v1133
    %v3017 = vunpack.c.h.b16 %v1133
    %v3018 = vunpack.c.l.b16 %v1134
    %v3019 = vunpack.c.h.b16 %v1134
    %v3020 = vunpack.c.l.b16 %v1135
    %v3021 = vunpack.c.h.b16 %v1135
    %v3022 = vunpack.c.l.b16 %v1136
    %v3023 = vunpack.c.h.b16 %v1136
    %v3024 = vunpack.c.l.b16 %v1137
    %v3025 = vunpack.c.h.b16 %v1137
    %v3026 = vunpack.c.l.b16 %v1138
    %v3027 = vunpack.c.h.b16 %v1138
    %v3028 = vunpack.c.l.b16 %v1139
    %v3029 = vunpack.c.h.b16 %v1139
    %v3030 = vunpack.c.l.b16 %v1140
    %v3031 = vunpack.c.h.b16 %v1140
    %v3032 = vunpack.c.l.b16 %v1141
    %v3033 = vunpack.c.h.b16 %v1141
    %v3034 = vunpack.c.l.b16 %v1142
    %v3035 = vunpack.c.h.b16 %v1142
    %v3036 = vunpack.c.l.b16 %v1143
    %v3037 = vunpack.c.h.b16 %v1143
    %v3038 = vunpack.c.l.b16 %v1144
    %v3039 = vunpack.c.h.b16 %v1144
    %v3040 = vunpack.c.l.b16 %v1145
    %v3041 = vunpack.c.h.b16 %v1145
    %v3042 = vunpack.c.l.b16 %v1146
    %v3043 = vunpack.c.h.b16 %v1146
    %v3044 = vunpack.c.l.b16 %v1147
    %v3045 = vunpack.c.h.b16 %v1147
    %v3046 = vunpack.c.l.b16 %v1148
    %v3047 = vunpack.c.h.b16 %v1148
    %v3048 = vunpack.c.l.b16 %v1149
    %v3049 = vunpack.c.h.b16 %v1149
    %v3050 = vunpack.c.l.b16 %v1150
    %v3051 = vunpack.c.h.b16 %v1150
    %v3052 = vunpack.c.l.b16 %v1151
    %v3053 = vunpack.c.h.b16 %v1151
    %v3054 = vunpack.c.l.b16 %v1152
    %v3055 = vunpack.c.h.b16 %v1152
    %v3056 = vunpack.c.l.b16 %v1153
    %v3057 = vunpack.c.h.b16 %v1153
    %v3058 = vunpack.c.l.b16 %v1154
    %v3059 = vunpack.c.h.b16 %v1154
    %v3060 = vunpack.c.l.b16 %v1155
    %v3061 = vunpack.c.h.b16 %v1155
    %v3062 = vunpack.c.l.b16 %v1156
    %v3063 = vunpack.c.h.b16 %v1156
    %v3064 = vunpack.c.l.b16 %v1157
    %v3065 = vunpack.c.h.b16 %v1157
    %v3066 = vunpack.c.l.b16 %v1158
    %v3067 = vunpack.c.h.b16 %v1158
    %v3068 = vunpack.c.l.b16 %v1159
    %v3069 = vunpack.c.h.b16 %v1159
    %v3070 = vunpack.c.l.b16 %v1160
    %v3071 = vunpack.c.h.b16 %v1160
    %v3072 = vunpack.c.l.b16 %v1161
    %v3073 = vunpack.c.h.b16 %v1161
    %v3074 = vunpack.c.l.b16 %v1162
    %v3075 = vunpack.c.h.b16 %v1162
    %v3076 = vunpack.c.l.b16 %v1163
    %v3077 = vunpack.c.h.b16 %v1163
    %v3078 = vunpack.c.l.b16 %v1164
    %v3079 = vunpack.c.h.b16 %v1164
    %v3080 = vunpack.c.l.b16 %v1165
    %v3081 = vunpack.c.h.b16 %v1165
    %v3082 = vunpack.c.l.b16 %v1166
    %v3083 = vunpack.c.h.b16 %v1166
    %v3084 = vunpack.c.l.b16 %v1167
    %v3085 = vunpack.c.h.b16 %v1167
    %v3086 = vunpack.c.l.b16 %v1168
    %v3087 = vunpack.c.h.b16 %v1168
    %v3088 = vunpack.c.l.b16 %v1169
    %v3089 = vunpack.c.h.b16 %v1169
    %v3090 = vunpack.c.l.b16 %v1170
    %v3091 = vunpack.c.h.b16 %v1170
    %v3092 = vunpack.c.l.b16 %v1171
    %v3093 = vunpack.c.h.b16 %v1171
    %v3094 = vunpack.c.l.b16 %v1172
    %v3095 = vunpack.c.h.b16 %v1172
    %v3096 = vunpack.c.l.b16 %v1173
    %v3097 = vunpack.c.h.b16 %v1173
    %v3098 = vunpack.c.l.b16 %v1174
    %v3099 = vunpack.c.h.b16 %v1174
    %v3100 = vunpack.c.l.b16 %v1175
    %v3101 = vunpack.c.h.b16 %v1175
    %v3102 = vunpack.c.l.b16 %v1176
    %v3103 = vunpack.c.h.b16 %v1176
    %v3104 = vunpack.c.l.b16 %v1177
    %v3105 = vunpack.c.h.b16 %v1177
    %v3106 = vunpack.c.l.b16 %v1178
    %v3107 = vunpack.c.h.b16 %v1178
    %v3108 = vunpack.c.l.b16 %v1179
    %v3109 = vunpack.c.h.b16 %v1179
    %v3110 = vunpack.c.l.b16 %v1180
    %v3111 = vunpack.c.h.b16 %v1180
    %v3112 = vunpack.c.l.b16 %v1181
    %v3113 = vunpack.c.h.b16 %v1181
    %v3114 = vunpack.c.l.b16 %v1182
    %v3115 = vunpack.c.h.b16 %v1182
    %v3116 = vunpack.c.l.b16 %v1183
    %v3117 = vunpack.c.h.b16 %v1183
    %v3118 = vunpack.c.l.b16 %v1184
    %v3119 = vunpack.c.h.b16 %v1184
    %v3120 = vunpack.c.l.b16 %v1185
    %v3121 = vunpack.c.h.b16 %v1185
    %v3122 = vunpack.c.l.b16 %v1186
    %v3123 = vunpack.c.h.b16 %v1186
    %v3124 = vunpack.c.l.b16 %v1187
    %v3125 = vunpack.c.h.b16 %v1187
    %v3126 = vunpack.c.l.b16 %v1188
    %v3127 = vunpack.c.h.b16 %v1188
    %v3128 = vunpack.c.l.b16 %v1189
    %v3129 = vunpack.c.h.b16 %v1189
    %v3130 = vunpack.c.l.b16 %v1190
    %v3131 = vunpack.c.h.b16 %v1190
    %v3132 = vunpack.c.l.b16 %v1191
    %v3133 = vunpack.c.h.b16 %v1191
    %v3134 = vunpack.c.l.b16 %v1192
    %v3135 = vunpack.c.h.b16 %v1192
    %v3136 = vunpack.c.l.b16 %v1193
    %v3137 = vunpack.c.h.b16 %v1193
    %v3138 = vunpack.c.l.b16 %v1194
    %v3139 = vunpack.c.h.b16 %v1194
    %v3140 = vunpack.c.l.b16 %v1195
    %v3141 = vunpack.c.h.b16 %v1195
    %v3142 = vunpack.c.l.b16 %v1196
    %v3143 = vunpack.c.h.b16 %v1196
    %v3144 = vunpack.c.l.b16 %v1197
    %v3145 = vunpack.c.h.b16 %v1197
    %v3146 = vunpack.c.l.b16 %v1198
    %v3147 = vunpack.c.h.b16 %v1198
    %v3148 = vunpack.c.l.b16 %v1199
    %v3149 = vunpack.c.h.b16 %v1199
    %v3150 = vunpack.c.l.b16 %v1200
    %v3151 = vunpack.c.h.b16 %v1200
    %v3152 = vunpack.c.l.b16 %v1201
    %v3153 = vunpack.c.h.b16 %v1201
    %v3154 = vunpack.c.l.b16 %v1202
    %v3155 = vunpack.c.h.b16 %v1202
    %v3156 = vunpack.c.l.b16 %v1203
    %v3157 = vunpack.c.h.b16 %v1203
    %v3158 = vunpack.c.l.b16 %v1204
    %v3159 = vunpack.c.h.b16 %v1204
    %v3160 = vunpack.c.l.b16 %v1205
    %v3161 = vunpack.c.h.b16 %v1205
    %v3162 = vunpack.c.l.b16 %v1206
    %v3163 = vunpack.c.h.b16 %v1206
    %v3164 = vunpack.c.l.b16 %v1207
    %v3165 = vunpack.c.h.b16 %v1207
    %v3166 = vunpack.c.l.b16 %v1208
    %v3167 = vunpack.c.h.b16 %v1208
    %v3168 = vunpack.c.l.b16 %v1209
    %v3169 = vunpack.c.h.b16 %v1209
    %v3170 = vunpack.c.l.b16 %v1210
    %v3171 = vunpack.c.h.b16 %v1210
    %v3172 = vunpack.c.l.b16 %v1211
    %v3173 = vunpack.c.h.b16 %v1211
    %v3174 = vunpack.c.l.b16 %v1212
    %v3175 = vunpack.c.h.b16 %v1212
    %v3176 = vunpack.c.l.b16 %v1213
    %v3177 = vunpack.c.h.b16 %v1213
    %v3178 = vunpack.c.l.b16 %v1214
    %v3179 = vunpack.c.h.b16 %v1214
    %v3180 = vunpack.c.l.b16 %v1215
    %v3181 = vunpack.c.h.b16 %v1215
    %v3182 = vunpack.c.l.b16 %v1216
    %v3183 = vunpack.c.h.b16 %v1216
    %v3184 = vunpack.c.l.b16 %v1217
    %v3185 = vunpack.c.h.b16 %v1217
    %v3186 = vunpack.c.l.b16 %v1218
    %v3187 = vunpack.c.h.b16 %v1218
    %v3188 = vunpack.c.l.b16 %v1219
    %v3189 = vunpack.c.h.b16 %v1219
    %v3190 = vunpack.c.l.b16 %v1220
    %v3191 = vunpack.c.h.b16 %v1220
    %v3192 = vunpack.c.l.b16 %v1221
    %v3193 = vunpack.c.h.b16 %v1221
    %v3194 = vunpack.c.l.b16 %v1222
    %v3195 = vunpack.c.h.b16 %v1222
    %v3196 = vunpack.c.l.b16 %v1223
    %v3197 = vunpack.c.h.b16 %v1223
    %v3198 = vunpack.c.l.b16 %v1224
    %v3199 = vunpack.c.h.b16 %v1224
    %v3200 = vunpack.c.l.b16 %v1225
    %v3201 = vunpack.c.h.b16 %v1225
    %v3202 = vunpack.c.l.b16 %v1226
    %v3203 = vunpack.c.h.b16 %v1226
    %v3204 = vunpack.c.l.b16 %v1227
    %v3205 = vunpack.c.h.b16 %v1227
    %v3206 = vunpack.c.l.b16 %v1228
    %v3207 = vunpack.c.h.b16 %v1228
    %v3208 = vunpack.c.l.b16 %v1229
    %v3209 = vunpack.c.h.b16 %v1229
    %v3210 = vunpack.c.l.b16 %v1230
    %v3211 = vunpack.c.h.b16 %v1230
    %v3212 = vunpack.c.l.b16 %v1231
    %v3213 = vunpack.c.h.b16 %v1231
    %v3214 = vunpack.c.l.b16 %v1232
    %v3215 = vunpack.c.h.b16 %v1232
    %v3216 = vunpack.c.l.b16 %v1233
    %v3217 = vunpack.c.h.b16 %v1233
    %v3218 = vunpack.c.l.b16 %v1234
    %v3219 = vunpack.c.h.b16 %v1234
    %v3220 = vunpack.c.l.b16 %v1235
    %v3221 = vunpack.c.h.b16 %v1235
    %v3222 = vunpack.c.l.b16 %v1236
    %v3223 = vunpack.c.h.b16 %v1236
    %v3224 = vunpack.c.l.b16 %v1237
    %v3225 = vunpack.c.h.b16 %v1237
    %v3226 = vunpack.c.l.b16 %v1238
    %v3227 = vunpack.c.h.b16 %v1238
    %v3228 = vunpack.c.l.b16 %v1239
    %v3229 = vunpack.c.h.b16 %v1239
    %v3230 = vunpack.c.l.b16 %v1240
    %v3231 = vunpack.c.h.b16 %v1240
    %v3232 = vunpack.c.l.b16 %v1241
    %v3233 = vunpack.c.h.b16 %v1241
    %v3234 = vunpack.c.l.b16 %v1242
    %v3235 = vunpack.c.h.b16 %v1242
    %v3236 = vunpack.c.l.b16 %v1243
    %v3237 = vunpack.c.h.b16 %v1243
    %v3238 = vunpack.c.l.b16 %v1244
    %v3239 = vunpack.c.h.b16 %v1244
    %v3240 = vunpack.c.l.b16 %v1245
    %v3241 = vunpack.c.h.b16 %v1245
    %v3242 = vunpack.c.l.b16 %v1246
    %v3243 = vunpack.c.h.b16 %v1246
    %v3244 = vunpack.c.l.b16 %v1247
    %v3245 = vunpack.c.h.b16 %v1247
    %v3246 = vunpack.c.l.b16 %v1248
    %v3247 = vunpack.c.h.b16 %v1248
    %v3248 = vunpack.c.l.b16 %v1249
    %v3249 = vunpack.c.h.b16 %v1249
    %v3250 = vunpack.c.l.b16 %v1250
    %v3251 = vunpack.c.h.b16 %v1250
    %v3252 = vunpack.c.l.b16 %v1251
    %v3253 = vunpack.c.h.b16 %v1251
    %v3254 = vunpack.c.l.b16 %v1252
    %v3255 = vunpack.c.h.b16 %v1252
    %v3256 = vunpack.c.l.b16 %v1253
    %v3257 = vunpack.c.h.b16 %v1253
    %v3258 = vunpack.c.l.b16 %v1254
    %v3259 = vunpack.c.h.b16 %v1254
    %v3260 = vunpack.c.l.b16 %v1255
    %v3261 = vunpack.c.h.b16 %v1255
    %v3262 = vunpack.c.l.b16 %v1256
    %v3263 = vunpack.c.h.b16 %v1256
    %v3264 = vunpack.c.l.b16 %v1257
    %v3265 = vunpack.c.h.b16 %v1257
    %v3266 = vunpack.c.l.b16 %v1258
    %v3267 = vunpack.c.h.b16 %v1258
    %v3268 = vunpack.c.l.b16 %v1259
    %v3269 = vunpack.c.h.b16 %v1259
    %v3270 = vunpack.c.l.b16 %v1260
    %v3271 = vunpack.c.h.b16 %v1260
    %v3272 = vunpack.c.l.b16 %v1261
    %v3273 = vunpack.c.h.b16 %v1261
    %v3274 = vunpack.c.l.b16 %v1262
    %v3275 = vunpack.c.h.b16 %v1262
    %v3276 = vunpack.c.l.b16 %v1263
    %v3277 = vunpack.c.h.b16 %v1263
    %v3278 = vunpack.c.l.b16 %v1264
    %v3279 = vunpack.c.h.b16 %v1264
    %v3280 = vunpack.c.l.b16 %v1265
    %v3281 = vunpack.c.h.b16 %v1265
    %v3282 = vunpack.c.l.b16 %v1266
    %v3283 = vunpack.c.h.b16 %v1266
    %v3284 = vunpack.c.l.b16 %v1267
    %v3285 = vunpack.c.h.b16 %v1267
    %v3286 = vunpack.c.l.b16 %v1268
    %v3287 = vunpack.c.h.b16 %v1268
    %v3288 = vunpack.c.l.b16 %v1269
    %v3289 = vunpack.c.h.b16 %v1269
    %v3290 = vunpack.c.l.b16 %v1270
    %v3291 = vunpack.c.h.b16 %v1270
    %v3292 = vunpack.c.l.b16 %v1271
    %v3293 = vunpack.c.h.b16 %v1271
    %v3294 = vunpack.c.l.b16 %v1272
    %v3295 = vunpack.c.h.b16 %v1272
    %v3296 = vunpack.c.l.b16 %v1273
    %v3297 = vunpack.c.h.b16 %v1273
    %v3298 = vunpack.c.l.b16 %v1274
    %v3299 = vunpack.c.h.b16 %v1274
    %v3300 = vunpack.c.l.b16 %v1275
    %v3301 = vunpack.c.h.b16 %v1275
    %v3302 = vunpack.c.l.b16 %v1276
    %v3303 = vunpack.c.h.b16 %v1276
    %v3304 = vunpack.c.l.b16 %v1277
    %v3305 = vunpack.c.h.b16 %v1277
    %v3306 = vunpack.c.l.b16 %v1278
    %v3307 = vunpack.c.h.b16 %v1278
    %v3308 = vunpack.c.l.b16 %v1279
    %v3309 = vunpack.c.h.b16 %v1279
    %v3310 = vunpack.c.l.b16 %v1280
    %v3311 = vunpack.c.h.b16 %v1280
    %v3312 = vunpack.c.l.b16 %v1281
    %v3313 = vunpack.c.h.b16 %v1281
    %v3314 = vunpack.c.l.b16 %v1282
    %v3315 = vunpack.c.h.b16 %v1282
    %v3316 = vunpack.c.l.b16 %v1283
    %v3317 = vunpack.c.h.b16 %v1283
    %v3318 = vunpack.c.l.b16 %v1284
    %v3319 = vunpack.c.h.b16 %v1284
    %v3320 = vunpack.c.l.b16 %v1285
    %v3321 = vunpack.c.h.b16 %v1285
    %v3322 = vunpack.c.l.b16 %v1286
    %v3323 = vunpack.c.h.b16 %v1286
    %v3324 = vunpack.c.l.b16 %v1287
    %v3325 = vunpack.c.h.b16 %v1287
    %v3326 = vunpack.c.l.b16 %v1288
    %v3327 = vunpack.c.h.b16 %v1288
    %v3328 = vunpack.c.l.b16 %v1289
    %v3329 = vunpack.c.h.b16 %v1289
    %v3330 = vunpack.c.l.b16 %v1290
    %v3331 = vunpack.c.h.b16 %v1290
    %v3332 = vunpack.c.l.b16 %v1291
    %v3333 = vunpack.c.h.b16 %v1291
    %v3334 = vunpack.c.l.b16 %v1292
    %v3335 = vunpack.c.h.b16 %v1292
    %v3336 = vunpack.c.l.b16 %v1293
    %v3337 = vunpack.c.h.b16 %v1293
    %v3338 = vunpack.c.l.b16 %v1294
    %v3339 = vunpack.c.h.b16 %v1294
    %v3340 = vunpack.c.l.b16 %v1295
    %v3341 = vunpack.c.h.b16 %v1295
    %v3342 = vunpack.c.l.b16 %v1296
    %v3343 = vunpack.c.h.b16 %v1296
    %v3344 = vunpack.c.l.b16 %v1297
    %v3345 = vunpack.c.h.b16 %v1297
    %v3346 = vunpack.c.l.b16 %v1298
    %v3347 = vunpack.c.h.b16 %v1298
    %v3348 = vunpack.c.l.b16 %v1299
    %v3349 = vunpack.c.h.b16 %v1299
    %v3350 = vunpack.c.l.b16 %v1300
    %v3351 = vunpack.c.h.b16 %v1300
    %v3352 = vunpack.c.l.b16 %v1301
    %v3353 = vunpack.c.h.b16 %v1301
    %v3354 = vunpack.c.l.b16 %v1302
    %v3355 = vunpack.c.h.b16 %v1302
    %v3356 = vunpack.c.l.b16 %v1303
    %v3357 = vunpack.c.h.b16 %v1303
    %v3358 = vunpack.c.l.b16 %v1304
    %v3359 = vunpack.c.h.b16 %v1304
    %v3360 = vunpack.c.l.b16 %v1305
    %v3361 = vunpack.c.h.b16 %v1305
    %v3362 = vunpack.c.l.b16 %v1306
    %v3363 = vunpack.c.h.b16 %v1306
    %v3364 = vunpack.c.l.b16 %v1307
    %v3365 = vunpack.c.h.b16 %v1307
    %v3366 = vunpack.c.l.b16 %v1308
    %v3367 = vunpack.c.h.b16 %v1308
    %v3368 = vunpack.c.l.b16 %v1309
    %v3369 = vunpack.c.h.b16 %v1309
    %v3370 = vunpack.c.l.b16 %v1310
    %v3371 = vunpack.c.h.b16 %v1310
    %v3372 = vunpack.c.l.b16 %v1311
    %v3373 = vunpack.c.h.b16 %v1311
    %v3374 = vunpack.c.l.b16 %v1312
    %v3375 = vunpack.c.h.b16 %v1312
    %v3376 = vunpack.c.l.b16 %v1313
    %v3377 = vunpack.c.h.b16 %v1313
    %v3378 = vunpack.c.l.b16 %v1314
    %v3379 = vunpack.c.h.b16 %v1314
    %v3380 = vunpack.c.l.b16 %v1315
    %v3381 = vunpack.c.h.b16 %v1315
    %v3382 = vunpack.c.l.b16 %v1316
    %v3383 = vunpack.c.h.b16 %v1316
    %v3384 = vunpack.c.l.b16 %v1317
    %v3385 = vunpack.c.h.b16 %v1317
    %v3386 = vunpack.c.l.b16 %v1318
    %v3387 = vunpack.c.h.b16 %v1318
    %v3388 = vunpack.c.l.b16 %v1319
    %v3389 = vunpack.c.h.b16 %v1319
    %v3390 = vunpack.c.l.b16 %v1320
    %v3391 = vunpack.c.h.b16 %v1320
    %v3392 = vunpack.c.l.b16 %v1321
    %v3393 = vunpack.c.h.b16 %v1321
    %v3394 = vunpack.c.l.b16 %v1322
    %v3395 = vunpack.c.h.b16 %v1322
    %v3396 = vunpack.c.l.b16 %v1323
    %v3397 = vunpack.c.h.b16 %v1323
    %v3398 = vunpack.c.l.b16 %v1324
    %v3399 = vunpack.c.h.b16 %v1324
    %v3400 = vunpack.c.l.b16 %v1325
    %v3401 = vunpack.c.h.b16 %v1325
    %v3402 = vunpack.c.l.b16 %v1326
    %v3403 = vunpack.c.h.b16 %v1326
    %v3404 = vunpack.c.l.b16 %v1327
    %v3405 = vunpack.c.h.b16 %v1327
    %v3406 = vunpack.c.l.b16 %v1328
    %v3407 = vunpack.c.h.b16 %v1328
    %v3408 = vunpack.c.l.b16 %v1329
    %v3409 = vunpack.c.h.b16 %v1329
    %v3410 = vunpack.c.l.b16 %v1330
    %v3411 = vunpack.c.h.b16 %v1330
    %v3412 = vunpack.c.l.b16 %v1331
    %v3413 = vunpack.c.h.b16 %v1331
    %v3414 = vunpack.c.l.b16 %v1332
    %v3415 = vunpack.c.h.b16 %v1332
    %v3416 = vunpack.c.l.b16 %v1333
    %v3417 = vunpack.c.h.b16 %v1333
    %v3418 = vunpack.c.l.b16 %v1334
    %v3419 = vunpack.c.h.b16 %v1334
    %v3420 = vunpack.c.l.b16 %v1335
    %v3421 = vunpack.c.h.b16 %v1335
    %v3422 = vunpack.c.l.b16 %v1336
    %v3423 = vunpack.c.h.b16 %v1336
    %v3424 = vunpack.c.l.b16 %v1337
    %v3425 = vunpack.c.h.b16 %v1337
    %v3426 = vunpack.c.l.b16 %v1338
    %v3427 = vunpack.c.h.b16 %v1338
    %v3428 = vunpack.c.l.b16 %v1339
    %v3429 = vunpack.c.h.b16 %v1339
    %v3430 = vunpack.c.l.b16 %v1340
    %v3431 = vunpack.c.h.b16 %v1340
    %v3432 = vunpack.c.l.b16 %v1341
    %v3433 = vunpack.c.h.b16 %v1341
    %v3434 = vunpack.c.l.b16 %v1342
    %v3435 = vunpack.c.h.b16 %v1342
    %v3436 = vunpack.c.l.b16 %v1343
    %v3437 = vunpack.c.h.b16 %v1343
    %v3438 = vunpack.c.l.b16 %v1344
    %v3439 = vunpack.c.h.b16 %v1344
    %v3440 = vunpack.c.l.b16 %v1345
    %v3441 = vunpack.c.h.b16 %v1345
    %v3442 = vunpack.c.l.b16 %v1346
    %v3443 = vunpack.c.h.b16 %v1346
    %v3444 = vunpack.c.l.b16 %v1347
    %v3445 = vunpack.c.h.b16 %v1347
    %v3446 = vunpack.c.l.b16 %v1348
    %v3447 = vunpack.c.h.b16 %v1348
    %v3448 = vunpack.c.l.b16 %v1349
    %v3449 = vunpack.c.h.b16 %v1349
    %v3450 = vunpack.c.l.b16 %v1350
    %v3451 = vunpack.c.h.b16 %v1350
    %v3452 = vunpack.c.l.b16 %v1351
    %v3453 = vunpack.c.h.b16 %v1351
    %v3454 = vunpack.c.l.b16 %v1352
    %v3455 = vunpack.c.h.b16 %v1352
    %v3456 = vunpack.c.l.b16 %v1353
    %v3457 = vunpack.c.h.b16 %v1353
    %v3458 = vunpack.c.l.b16 %v1354
    %v3459 = vunpack.c.h.b16 %v1354
    %v3460 = vunpack.c.l.b16 %v1355
    %v3461 = vunpack.c.h.b16 %v1355
    %v3462 = vunpack.c.l.b16 %v1356
    %v3463 = vunpack.c.h.b16 %v1356
    %v3464 = vunpack.c.l.b16 %v1357
    %v3465 = vunpack.c.h.b16 %v1357
    %v3466 = vunpack.c.l.b16 %v1358
    %v3467 = vunpack.c.h.b16 %v1358
    %v3468 = vunpack.c.l.b16 %v1359
    %v3469 = vunpack.c.h.b16 %v1359
    %v3470 = vunpack.c.l.b16 %v1360
    %v3471 = vunpack.c.h.b16 %v1360
    %v3472 = vunpack.c.l.b16 %v1361
    %v3473 = vunpack.c.h.b16 %v1361
    %v3474 = vunpack.c.l.b16 %v1362
    %v3475 = vunpack.c.h.b16 %v1362
    %v3476 = vunpack.c.l.b16 %v1363
    %v3477 = vunpack.c.h.b16 %v1363
    %v3478 = vunpack.c.l.b16 %v1364
    %v3479 = vunpack.c.h.b16 %v1364
    %v3480 = vunpack.c.l.b16 %v1365
    %v3481 = vunpack.c.h.b16 %v1365
    %v3482 = vunpack.c.l.b16 %v1366
    %v3483 = vunpack.c.h.b16 %v1366
    %v3484 = vunpack.c.l.b16 %v1367
    %v3485 = vunpack.c.h.b16 %v1367
    %v3486 = vunpack.c.l.b16 %v1368
    %v3487 = vunpack.c.h.b16 %v1368
    %v3488 = vunpack.c.l.b16 %v1369
    %v3489 = vunpack.c.h.b16 %v1369
    %v3490 = vunpack.c.l.b16 %v1370
    %v3491 = vunpack.c.h.b16 %v1370
    %v3492 = vunpack.c.l.b16 %v1371
    %v3493 = vunpack.c.h.b16 %v1371
    %v3494 = vunpack.c.l.b16 %v1372
    %v3495 = vunpack.c.h.b16 %v1372
    %v3496 = vunpack.c.l.b16 %v1373
    %v3497 = vunpack.c.h.b16 %v1373
    %v3498 = vunpack.c.l.b16 %v1374
    %v3499 = vunpack.c.h.b16 %v1374
    %v3500 = vunpack.c.l.b16 %v1375
    %v3501 = vunpack.c.h.b16 %v1375
    %v3502 = vunpack.c.l.b16 %v1376
    %v3503 = vunpack.c.h.b16 %v1376
    %v3504 = vunpack.c.l.b16 %v1377
    %v3505 = vunpack.c.h.b16 %v1377
    %v3506 = vunpack.c.l.b16 %v1378
    %v3507 = vunpack.c.h.b16 %v1378
    %v3508 = vunpack.c.l.b16 %v1379
    %v3509 = vunpack.c.h.b16 %v1379
    %v3510 = vunpack.c.l.b16 %v1380
    %v3511 = vunpack.c.h.b16 %v1380
    %v3512 = vunpack.c.l.b16 %v1381
    %v3513 = vunpack.c.h.b16 %v1381
    %v3514 = vunpack.c.l.b16 %v1382
    %v3515 = vunpack.c.h.b16 %v1382
    %v3516 = vunpack.c.l.b16 %v1383
    %v3517 = vunpack.c.h.b16 %v1383
    %v3518 = vunpack.c.l.b16 %v1384
    %v3519 = vunpack.c.h.b16 %v1384
    %v3520 = vunpack.c.l.b16 %v1385
    %v3521 = vunpack.c.h.b16 %v1385
    %v3522 = vunpack.c.l.b16 %v1386
    %v3523 = vunpack.c.h.b16 %v1386
    %v3524 = vunpack.c.l.b16 %v1387
    %v3525 = vunpack.c.h.b16 %v1387
    %v3526 = vunpack.c.l.b16 %v1388
    %v3527 = vunpack.c.h.b16 %v1388
    %v3528 = vunpack.c.l.b16 %v1389
    %v3529 = vunpack.c.h.b16 %v1389
    %v3530 = vunpack.c.l.b16 %v1390
    %v3531 = vunpack.c.h.b16 %v1390
    %v3532 = vunpack.c.l.b16 %v1391
    %v3533 = vunpack.c.h.b16 %v1391
    %v3534 = vunpack.c.l.b16 %v1392
    %v3535 = vunpack.c.h.b16 %v1392
    %v3536 = vunpack.c.l.b16 %v1393
    %v3537 = vunpack.c.h.b16 %v1393
    %v3538 = vunpack.c.l.b16 %v1394
    %v3539 = vunpack.c.h.b16 %v1394
    %v3540 = vunpack.c.l.b16 %v1395
    %v3541 = vunpack.c.h.b16 %v1395
    %v3542 = vunpack.c.l.b16 %v1396
    %v3543 = vunpack.c.h.b16 %v1396
    %v3544 = vunpack.c.l.b16 %v1397
    %v3545 = vunpack.c.h.b16 %v1397
    %v3546 = vunpack.c.l.b16 %v1398
    %v3547 = vunpack.c.h.b16 %v1398
    %v3548 = vunpack.c.l.b16 %v1399
    %v3549 = vunpack.c.h.b16 %v1399
    %v3550 = vunpack.c.l.b16 %v1400
    %v3551 = vunpack.c.h.b16 %v1400
    %v3552 = vunpack.c.l.b16 %v1401
    %v3553 = vunpack.c.h.b16 %v1401
    %v3554 = vunpack.c.l.b16 %v1402
    %v3555 = vunpack.c.h.b16 %v1402
    %v3556 = vunpack.c.l.b16 %v1403
    %v3557 = vunpack.c.h.b16 %v1403
    %v3558 = vunpack.c.l.b16 %v1404
    %v3559 = vunpack.c.h.b16 %v1404
    %v3560 = vunpack.c.l.b16 %v1405
    %v3561 = vunpack.c.h.b16 %v1405
    %v3562 = vunpack.c.l.b16 %v1406
    %v3563 = vunpack.c.h.b16 %v1406
    %v3564 = vunpack.c.l.b16 %v1407
    %v3565 = vunpack.c.h.b16 %v1407
    %v3566 = vunpack.c.l.b16 %v1408
    %v3567 = vunpack.c.h.b16 %v1408
    %v3568 = vunpack.c.l.b16 %v1409
    %v3569 = vunpack.c.h.b16 %v1409
    %v3570 = vunpack.c.l.b16 %v1410
    %v3571 = vunpack.c.h.b16 %v1410
    %v3572 = vunpack.c.l.b16 %v1411
    %v3573 = vunpack.c.h.b16 %v1411
    %v3574 = vunpack.c.l.b16 %v1412
    %v3575 = vunpack.c.h.b16 %v1412
    %v3576 = vunpack.c.l.b16 %v1413
    %v3577 = vunpack.c.h.b16 %v1413
    %v3578 = vunpack.c.l.b16 %v1414
    %v3579 = vunpack.c.h.b16 %v1414
    %v3580 = vunpack.c.l.b16 %v1415
    %v3581 = vunpack.c.h.b16 %v1415
    %v3582 = vunpack.c.l.b16 %v1416
    %v3583 = vunpack.c.h.b16 %v1416
    %v3584 = vunpack.c.l.b16 %v1417
    %v3585 = vunpack.c.h.b16 %v1417
    %v3586 = vunpack.c.l.b16 %v1418
    %v3587 = vunpack.c.h.b16 %v1418
    %v3588 = vunpack.c.l.b16 %v1419
    %v3589 = vunpack.c.h.b16 %v1419
    %v3590 = vunpack.c.l.b16 %v1420
    %v3591 = vunpack.c.h.b16 %v1420
    %v3592 = vunpack.c.l.b16 %v1421
    %v3593 = vunpack.c.h.b16 %v1421
    %v3594 = vunpack.c.l.b16 %v1422
    %v3595 = vunpack.c.h.b16 %v1422
    %v3596 = vunpack.c.l.b16 %v1423
    %v3597 = vunpack.c.h.b16 %v1423
    %v3598 = vunpack.c.l.b16 %v1424
    %v3599 = vunpack.c.h.b16 %v1424
    %v3600 = vunpack.c.l.b16 %v1425
    %v3601 = vunpack.c.h.b16 %v1425
    %v3602 = vunpack.c.l.b16 %v1426
    %v3603 = vunpack.c.h.b16 %v1426
    %v3604 = vunpack.c.l.b16 %v1427
    %v3605 = vunpack.c.h.b16 %v1427
    %v3606 = vunpack.c.l.b16 %v1428
    %v3607 = vunpack.c.h.b16 %v1428
    %v3608 = vunpack.c.l.b16 %v1429
    %v3609 = vunpack.c.h.b16 %v1429
    %v3610 = vunpack.c.l.b16 %v1430
    %v3611 = vunpack.c.h.b16 %v1430
    %v3612 = vunpack.c.l.b16 %v1431
    %v3613 = vunpack.c.h.b16 %v1431
    %v3614 = vunpack.c.l.b16 %v1432
    %v3615 = vunpack.c.h.b16 %v1432
    %v3616 = vunpack.c.l.b16 %v1433
    %v3617 = vunpack.c.h.b16 %v1433
    %v3618 = vunpack.c.l.b16 %v1434
    %v3619 = vunpack.c.h.b16 %v1434
    %v3620 = vunpack.c.l.b16 %v1435
    %v3621 = vunpack.c.h.b16 %v1435
    %v3622 = vunpack.c.l.b16 %v1436
    %v3623 = vunpack.c.h.b16 %v1436
    %v3624 = vunpack.c.l.b16 %v1437
    %v3625 = vunpack.c.h.b16 %v1437
    %v3626 = vunpack.c.l.b16 %v1438
    %v3627 = vunpack.c.h.b16 %v1438
    %v3628 = vunpack.c.l.b16 %v1439
    %v3629 = vunpack.c.h.b16 %v1439
    %v3630 = vunpack.c.l.b16 %v1440
    %v3631 = vunpack.c.h.b16 %v1440
    %v3632 = vunpack.c.l.b16 %v1441
    %v3633 = vunpack.c.h.b16 %v1441
    %v3634 = vunpack.c.l.b16 %v1442
    %v3635 = vunpack.c.h.b16 %v1442
    %v3636 = vunpack.c.l.b16 %v1443
    %v3637 = vunpack.c.h.b16 %v1443
    %v3638 = vunpack.c.l.b16 %v1444
    %v3639 = vunpack.c.h.b16 %v1444
    %v3640 = vunpack.c.l.b16 %v1445
    %v3641 = vunpack.c.h.b16 %v1445
    %v3642 = vunpack.c.l.b16 %v1446
    %v3643 = vunpack.c.h.b16 %v1446
    %v3644 = vunpack.c.l.b16 %v1447
    %v3645 = vunpack.c.h.b16 %v1447
    %v3646 = vunpack.c.l.b16 %v1448
    %v3647 = vunpack.c.h.b16 %v1448
    %v3648 = vunpack.c.l.b16 %v1449
    %v3649 = vunpack.c.h.b16 %v1449
    %v3650 = vunpack.c.l.b16 %v1450
    %v3651 = vunpack.c.h.b16 %v1450
    %v3652 = vunpack.c.l.b16 %v1451
    %v3653 = vunpack.c.h.b16 %v1451
    %v3654 = vunpack.c.l.b16 %v1452
    %v3655 = vunpack.c.h.b16 %v1452
    %v3656 = vunpack.c.l.b16 %v1453
    %v3657 = vunpack.c.h.b16 %v1453
    %v3658 = vunpack.c.l.b16 %v1454
    %v3659 = vunpack.c.h.b16 %v1454
    %v3660 = vunpack.c.l.b16 %v1455
    %v3661 = vunpack.c.h.b16 %v1455
    %v3662 = vunpack.c.l.b16 %v1456
    %v3663 = vunpack.c.h.b16 %v1456
    %v3664 = vunpack.c.l.b16 %v1457
    %v3665 = vunpack.c.h.b16 %v1457
    %v3666 = vunpack.c.l.b16 %v1458
    %v3667 = vunpack.c.h.b16 %v1458
    %v3668 = vunpack.c.l.b16 %v1459
    %v3669 = vunpack.c.h.b16 %v1459
    %v3670 = vunpack.c.l.b16 %v1460
    %v3671 = vunpack.c.h.b16 %v1460
    %v3672 = vunpack.c.l.b16 %v1461
    %v3673 = vunpack.c.h.b16 %v1461
    %v3674 = vunpack.c.l.b16 %v1462
    %v3675 = vunpack.c.h.b16 %v1462
    %v3676 = vunpack.c.l.b16 %v1463
    %v3677 = vunpack.c.h.b16 %v1463
    %v3678 = vunpack.c.l.b16 %v1464
    %v3679 = vunpack.c.h.b16 %v1464
    %v3680 = vunpack.c.l.b16 %v1465
    %v3681 = vunpack.c.h.b16 %v1465
    %v3682 = vunpack.c.l.b16 %v1466
    %v3683 = vunpack.c.h.b16 %v1466
    %v3684 = vunpack.c.l.b16 %v1467
    %v3685 = vunpack.c.h.b16 %v1467
    %v3686 = vunpack.c.l.b16 %v1468
    %v3687 = vunpack.c.h.b16 %v1468
    %v3688 = vunpack.c.l.b16 %v1469
    %v3689 = vunpack.c.h.b16 %v1469
    %v3690 = vunpack.c.l.b16 %v1470
    %v3691 = vunpack.c.h.b16 %v1470
    %v3692 = vunpack.c.l.b16 %v1471
    %v3693 = vunpack.c.h.b16 %v1471
    %v3694 = vunpack.c.l.b16 %v1472
    %v3695 = vunpack.c.h.b16 %v1472
    %v3696 = vunpack.c.l.b16 %v1473
    %v3697 = vunpack.c.h.b16 %v1473
    %v3698 = vunpack.c.l.b16 %v1474
    %v3699 = vunpack.c.h.b16 %v1474
    %v3700 = vunpack.c.l.b16 %v1475
    %v3701 = vunpack.c.h.b16 %v1475
    %v3702 = vunpack.c.l.b16 %v1476
    %v3703 = vunpack.c.h.b16 %v1476
    %v3704 = vunpack.c.l.b16 %v1477
    %v3705 = vunpack.c.h.b16 %v1477
    %v3706 = vunpack.c.l.b16 %v1478
    %v3707 = vunpack.c.h.b16 %v1478
    %v3708 = vunpack.c.l.b16 %v1479
    %v3709 = vunpack.c.h.b16 %v1479
    %v3710 = vunpack.c.l.b16 %v1480
    %v3711 = vunpack.c.h.b16 %v1480
    %v3712 = vunpack.c.l.b16 %v1481
    %v3713 = vunpack.c.h.b16 %v1481
    %v3714 = vunpack.c.l.b16 %v1482
    %v3715 = vunpack.c.h.b16 %v1482
    %v3716 = vunpack.c.l.b16 %v1483
    %v3717 = vunpack.c.h.b16 %v1483
    %v3718 = vunpack.c.l.b16 %v1484
    %v3719 = vunpack.c.h.b16 %v1484
    %v3720 = vunpack.c.l.b16 %v1485
    %v3721 = vunpack.c.h.b16 %v1485
    %v3722 = vunpack.c.l.b16 %v1486
    %v3723 = vunpack.c.h.b16 %v1486
    %v3724 = vunpack.c.l.b16 %v1487
    %v3725 = vunpack.c.h.b16 %v1487
    %v3726 = vunpack.c.l.b16 %v1488
    %v3727 = vunpack.c.h.b16 %v1488
    %v3728 = vunpack.c.l.b16 %v1489
    %v3729 = vunpack.c.h.b16 %v1489
    %v3730 = vunpack.c.l.b16 %v1490
    %v3731 = vunpack.c.h.b16 %v1490
    %v3732 = vunpack.c.l.b16 %v1491
    %v3733 = vunpack.c.h.b16 %v1491
    %v3734 = vunpack.c.l.b16 %v1492
    %v3735 = vunpack.c.h.b16 %v1492
    %v3736 = vunpack.c.l.b16 %v1493
    %v3737 = vunpack.c.h.b16 %v1493
    %v3738 = vunpack.c.l.b16 %v1494
    %v3739 = vunpack.c.h.b16 %v1494
    %v3740 = vunpack.c.l.b16 %v1495
    %v3741 = vunpack.c.h.b16 %v1495
    %v3742 = vunpack.c.l.b16 %v1496
    %v3743 = vunpack.c.h.b16 %v1496
    %v3744 = vunpack.c.l.b16 %v1497
    %v3745 = vunpack.c.h.b16 %v1497
    %v3746 = vunpack.c.l.b16 %v1498
    %v3747 = vunpack.c.h.b16 %v1498
    %v3748 = vunpack.c.l.b16 %v1499
    %v3749 = vunpack.c.h.b16 %v1499
    %v3750 = vunpack.c.l.b16 %v1500
    %v3751 = vunpack.c.h.b16 %v1500
    %v3752 = vunpack.c.l.b16 %v1501
    %v3753 = vunpack.c.h.b16 %v1501
    %v3754 = vunpack.c.l.b16 %v1502
    %v3755 = vunpack.c.h.b16 %v1502
    %v3756 = vunpack.c.l.b16 %v1503
    %v3757 = vunpack.c.h.b16 %v1503
    %v3758 = vunpack.c.l.b16 %v1504
    %v3759 = vunpack.c.h.b16 %v1504
    %v3760 = vunpack.c.l.b16 %v1505
    %v3761 = vunpack.c.h.b16 %v1505
    %v3762 = vunpack.c.l.b16 %v1506
    %v3763 = vunpack.c.h.b16 %v1506
    %v3764 = vunpack.c.l.b16 %v1507
    %v3765 = vunpack.c.h.b16 %v1507
    %v3766 = vunpack.c.l.b16 %v1508
    %v3767 = vunpack.c.h.b16 %v1508
    %v3768 = vunpack.c.l.b16 %v1509
    %v3769 = vunpack.c.h.b16 %v1509
    %v3770 = vunpack.c.l.b16 %v1510
    %v3771 = vunpack.c.h.b16 %v1510
    %v3772 = vunpack.c.l.b16 %v1511
    %v3773 = vunpack.c.h.b16 %v1511
    %v3774 = vunpack.c.l.b16 %v1512
    %v3775 = vunpack.c.h.b16 %v1512
    %v3776 = vunpack.c.l.b16 %v1513
    %v3777 = vunpack.c.h.b16 %v1513
    %v3778 = vunpack.c.l.b16 %v1514
    %v3779 = vunpack.c.h.b16 %v1514
    %v3780 = vunpack.c.l.b16 %v1515
    %v3781 = vunpack.c.h.b16 %v1515
    %v3782 = vunpack.c.l.b16 %v1516
    %v3783 = vunpack.c.h.b16 %v1516
    %v3784 = vunpack.c.l.b16 %v1517
    %v3785 = vunpack.c.h.b16 %v1517
    %v3786 = vunpack.c.l.b16 %v1518
    %v3787 = vunpack.c.h.b16 %v1518
    %v3788 = vunpack.c.l.b16 %v1519
    %v3789 = vunpack.c.h.b16 %v1519
    %v3790 = vunpack.c.l.b16 %v1520
    %v3791 = vunpack.c.h.b16 %v1520
    %v3792 = vunpack.c.l.b16 %v1521
    %v3793 = vunpack.c.h.b16 %v1521
    %v3794 = vunpack.c.l.b16 %v1522
    %v3795 = vunpack.c.h.b16 %v1522
    %v3796 = vunpack.c.l.b16 %v1523
    %v3797 = vunpack.c.h.b16 %v1523
    %v3798 = vunpack.c.l.b16 %v1524
    %v3799 = vunpack.c.h.b16 %v1524
    %v3800 = vunpack.c.l.b16 %v1525
    %v3801 = vunpack.c.h.b16 %v1525
    %v3802 = vunpack.c.l.b16 %v1526
    %v3803 = vunpack.c.h.b16 %v1526
    %v3804 = vunpack.c.l.b16 %v1527
    %v3805 = vunpack.c.h.b16 %v1527
    %v3806 = vunpack.c.l.b16 %v1528
    %v3807 = vunpack.c.h.b16 %v1528
    %v3808 = vunpack.c.l.b16 %v1529
    %v3809 = vunpack.c.h.b16 %v1529
    %v3810 = vunpack.c.l.b16 %v1530
    %v3811 = vunpack.c.h.b16 %v1530
    %v3812 = vunpack.c.l.b16 %v1531
    %v3813 = vunpack.c.h.b16 %v1531
    %v3814 = vunpack.c.l.b16 %v1532
    %v3815 = vunpack.c.h.b16 %v1532
    %v3816 = vunpack.c.l.b16 %v1533
    %v3817 = vunpack.c.h.b16 %v1533
    %v3818 = vunpack.c.l.b16 %v1534
    %v3819 = vunpack.c.h.b16 %v1534
    %v3820 = vunpack.c.l.b16 %v1535
    %v3821 = vunpack.c.h.b16 %v1535
    %v3822 = vunpack.c.l.b16 %v1536
    %v3823 = vunpack.c.h.b16 %v1536
    %v3824 = vunpack.c.l.b16 %v1537
    %v3825 = vunpack.c.h.b16 %v1537
    %v3826 = vunpack.c.l.b16 %v1538
    %v3827 = vunpack.c.h.b16 %v1538
    %v3828 = vunpack.c.l.b16 %v1539
    %v3829 = vunpack.c.h.b16 %v1539
    %v3830 = vunpack.c.l.b16 %v1540
    %v3831 = vunpack.c.h.b16 %v1540
    %v3832 = vunpack.c.l.b16 %v1541
    %v3833 = vunpack.c.h.b16 %v1541
    %v3834 = vunpack.c.l.b16 %v1542
    %v3835 = vunpack.c.h.b16 %v1542
    %v3836 = vunpack.c.l.b16 %v1543
    %v3837 = vunpack.c.h.b16 %v1543
    %v3838 = vunpack.c.l.b16 %v1544
    %v3839 = vunpack.c.h.b16 %v1544
    %v3840 = vunpack.c.l.b16 %v1545
    %v3841 = vunpack.c.h.b16 %v1545
    %v3842 = vunpack.c.l.b16 %v1546
    %v3843 = vunpack.c.h.b16 %v1546
    %v3844 = vunpack.c.l.b16 %v1547
    %v3845 = vunpack.c.h.b16 %v1547
    %v3846 = vunpack.c.l.b16 %v1548
    %v3847 = vunpack.c.h.b16 %v1548
    %v3848 = vunpack.c.l.b16 %v1549
    %v3849 = vunpack.c.h.b16 %v1549
    %v3850 = vunpack.c.l.b16 %v1550
    %v3851 = vunpack.c.h.b16 %v1550
    %v3852 = vunpack.c.l.b16 %v1551
    %v3853 = vunpack.c.h.b16 %v1551
    %v3854 = vunpack.c.l.b16 %v1552
    %v3855 = vunpack.c.h.b16 %v1552
    %v3856 = vunpack.c.l.b16 %v1553
    %v3857 = vunpack.c.h.b16 %v1553
    %v3858 = vunpack.c.l.b16 %v1554
    %v3859 = vunpack.c.h.b16 %v1554
    %v3860 = vunpack.c.l.b16 %v1555
    %v3861 = vunpack.c.h.b16 %v1555
    %v3862 = vunpack.c.l.b16 %v1556
    %v3863 = vunpack.c.h.b16 %v1556
    %v3864 = vunpack.c.l.b16 %v1557
    %v3865 = vunpack.c.h.b16 %v1557
    %v3866 = vunpack.c.l.b16 %v1558
    %v3867 = vunpack.c.h.b16 %v1558
    %v3868 = vunpack.c.l.b16 %v1559
    %v3869 = vunpack.c.h.b16 %v1559
    %v3870 = vunpack.c.l.b16 %v1560
    %v3871 = vunpack.c.h.b16 %v1560
    %v3872 = vunpack.c.l.b16 %v1561
    %v3873 = vunpack.c.h.b16 %v1561
    %v3874 = vunpack.c.l.b16 %v1562
    %v3875 = vunpack.c.h.b16 %v1562
    %v3876 = vunpack.c.l.b16 %v1563
    %v3877 = vunpack.c.h.b16 %v1563
    %v3878 = vunpack.c.l.b16 %v1564
    %v3879 = vunpack.c.h.b16 %v1564
    %v3880 = vunpack.c.l.b16 %v1565
    %v3881 = vunpack.c.h.b16 %v1565
    %v3882 = vunpack.c.l.b16 %v1566
    %v3883 = vunpack.c.h.b16 %v1566
    %v3884 = vunpack.c.l.b16 %v1567
    %v3885 = vunpack.c.h.b16 %v1567
    %v3886 = vunpack.c.l.b16 %v1568
    %v3887 = vunpack.c.h.b16 %v1568
    %v3888 = vunpack.c.l.b16 %v1569
    %v3889 = vunpack.c.h.b16 %v1569
    %v3890 = vunpack.c.l.b16 %v1570
    %v3891 = vunpack.c.h.b16 %v1570
    %v3892 = vunpack.c.l.b16 %v1571
    %v3893 = vunpack.c.h.b16 %v1571
    %v3894 = vunpack.c.l.b16 %v1572
    %v3895 = vunpack.c.h.b16 %v1572
    %v3896 = vunpack.c.l.b16 %v1573
    %v3897 = vunpack.c.h.b16 %v1573
    %v3898 = vunpack.c.l.b16 %v1574
    %v3899 = vunpack.c.h.b16 %v1574
    %v3900 = vunpack.c.l.b16 %v1575
    %v3901 = vunpack.c.h.b16 %v1575
    %v3902 = vunpack.c.l.b16 %v1576
    %v3903 = vunpack.c.h.b16 %v1576
    %v3904 = vunpack.c.l.b16 %v1577
    %v3905 = vunpack.c.h.b16 %v1577
    %v3906 = vunpack.c.l.b16 %v1578
    %v3907 = vunpack.c.h.b16 %v1578
    %v3908 = vunpack.c.l.b16 %v1579
    %v3909 = vunpack.c.h.b16 %v1579
    %v3910 = vunpack.c.l.b16 %v1580
    %v3911 = vunpack.c.h.b16 %v1580
    %v3912 = vunpack.c.l.b16 %v1581
    %v3913 = vunpack.c.h.b16 %v1581
    %v3914 = vunpack.c.l.b16 %v1582
    %v3915 = vunpack.c.h.b16 %v1582
    %v3916 = vunpack.c.l.b16 %v1583
    %v3917 = vunpack.c.h.b16 %v1583
    %v3918 = vunpack.c.l.b16 %v1584
    %v3919 = vunpack.c.h.b16 %v1584
    %v3920 = vunpack.c.l.b16 %v1585
    %v3921 = vunpack.c.h.b16 %v1585
    %v3922 = vunpack.c.l.b16 %v1586
    %v3923 = vunpack.c.h.b16 %v1586
    %v3924 = vunpack.c.l.b16 %v1587
    %v3925 = vunpack.c.h.b16 %v1587
    %v3926 = vunpack.c.l.b16 %v1588
    %v3927 = vunpack.c.h.b16 %v1588
    %v3928 = vunpack.c.l.b16 %v1589
    %v3929 = vunpack.c.h.b16 %v1589
    %v3930 = vunpack.c.l.b16 %v1590
    %v3931 = vunpack.c.h.b16 %v1590
    %v3932 = vunpack.c.l.b16 %v1591
    %v3933 = vunpack.c.h.b16 %v1591
    %v3934 = vunpack.c.l.b16 %v1592
    %v3935 = vunpack.c.h.b16 %v1592
    %v3936 = vunpack.c.l.b16 %v1593
    %v3937 = vunpack.c.h.b16 %v1593
    %v3938 = vunpack.c.l.b16 %v1594
    %v3939 = vunpack.c.h.b16 %v1594
    %v3940 = vunpack.c.l.b16 %v1595
    %v3941 = vunpack.c.h.b16 %v1595
    %v3942 = vunpack.c.l.b16 %v1596
    %v3943 = vunpack.c.h.b16 %v1596
    %v3944 = vunpack.c.l.b16 %v1597
    %v3945 = vunpack.c.h.b16 %v1597
    %v3946 = vunpack.c.l.b16 %v1598
    %v3947 = vunpack.c.h.b16 %v1598
    %v3948 = vunpack.c.l.b16 %v1599
    %v3949 = vunpack.c.h.b16 %v1599
    %v3950 = vunpack.c.l.b16 %v1600
    %v3951 = vunpack.c.h.b16 %v1600
    %v3952 = vunpack.c.l.b16 %v1601
    %v3953 = vunpack.c.h.b16 %v1601
    %v3954 = vunpack.c.l.b16 %v1602
    %v3955 = vunpack.c.h.b16 %v1602
    %v3956 = vunpack.c.l.b16 %v1603
    %v3957 = vunpack.c.h.b16 %v1603
    %v3958 = vunpack.c.l.b16 %v1604
    %v3959 = vunpack.c.h.b16 %v1604
    %v3960 = vunpack.c.l.b16 %v1605
    %v3961 = vunpack.c.h.b16 %v1605
    %v3962 = vunpack.c.l.b16 %v1606
    %v3963 = vunpack.c.h.b16 %v1606
    %v3964 = vunpack.c.l.b16 %v1607
    %v3965 = vunpack.c.h.b16 %v1607
    %v3966 = vunpack.c.l.b16 %v1608
    %v3967 = vunpack.c.h.b16 %v1608
    %v3968 = vunpack.c.l.b16 %v1609
    %v3969 = vunpack.c.h.b16 %v1609
    %v3970 = vunpack.c.l.b16 %v1610
    %v3971 = vunpack.c.h.b16 %v1610
    %v3972 = vunpack.c.l.b16 %v1611
    %v3973 = vunpack.c.h.b16 %v1611
    %v3974 = vunpack.c.l.b16 %v1612
    %v3975 = vunpack.c.h.b16 %v1612
    %v3976 = vunpack.c.l.b16 %v1613
    %v3977 = vunpack.c.h.b16 %v1613
    %v3978 = vunpack.c.l.b16 %v1614
    %v3979 = vunpack.c.h.b16 %v1614
    %v3980 = vunpack.c.l.b16 %v1615
    %v3981 = vunpack.c.h.b16 %v1615
    %v3982 = vunpack.c.l.b16 %v1616
    %v3983 = vunpack.c.h.b16 %v1616
    %v3984 = vunpack.c.l.b16 %v1617
    %v3985 = vunpack.c.h.b16 %v1617
    %v3986 = vunpack.c.l.b16 %v1618
    %v3987 = vunpack.c.h.b16 %v1618
    %v3988 = vunpack.c.l.b16 %v1619
    %v3989 = vunpack.c.h.b16 %v1619
    %v3990 = vunpack.c.l.b16 %v1620
    %v3991 = vunpack.c.h.b16 %v1620
    %v3992 = vunpack.c.l.b16 %v1621
    %v3993 = vunpack.c.h.b16 %v1621
    %v3994 = vunpack.c.l.b16 %v1622
    %v3995 = vunpack.c.h.b16 %v1622
    %v3996 = vunpack.c.l.b16 %v1623
    %v3997 = vunpack.c.h.b16 %v1623
    %v3998 = vunpack.c.l.b16 %v1624
    %v3999 = vunpack.c.h.b16 %v1624
    %v4000 = vunpack.c.l.b16 %v1625
    %v4001 = vunpack.c.h.b16 %v1625
    %v4002 = vunpack.c.l.b16 %v1626
    %v4003 = vunpack.c.h.b16 %v1626
    %v4004 = vunpack.c.l.b16 %v1627
    %v4005 = vunpack.c.h.b16 %v1627
    %v4006 = vunpack.c.l.b16 %v1628
    %v4007 = vunpack.c.h.b16 %v1628
    %v4008 = vunpack.c.l.b16 %v1629
    %v4009 = vunpack.c.h.b16 %v1629
    %v4010 = vunpack.c.l.b16 %v1630
    %v4011 = vunpack.c.h.b16 %v1630
    %v4012 = vunpack.c.l.b16 %v1631
    %v4013 = vunpack.c.h.b16 %v1631
    %v4014 = vunpack.c.l.b16 %v1632
    %v4015 = vunpack.c.h.b16 %v1632
    %v4016 = vunpack.c.l.b16 %v1633
    %v4017 = vunpack.c.h.b16 %v1633
    %v4018 = vunpack.c.l.b16 %v1634
    %v4019 = vunpack.c.h.b16 %v1634
    %v4020 = vunpack.c.l.b16 %v1635
    %v4021 = vunpack.c.h.b16 %v1635
    %v4022 = vunpack.c.l.b16 %v1636
    %v4023 = vunpack.c.h.b16 %v1636
    %v4024 = vunpack.c.l.b16 %v1637
    %v4025 = vunpack.c.h.b16 %v1637
    %v4026 = vunpack.c.l.b16 %v1638
    %v4027 = vunpack.c.h.b16 %v1638
    %v4028 = vunpack.c.l.b16 %v1639
    %v4029 = vunpack.c.h.b16 %v1639
    %v4030 = vunpack.c.l.b16 %v1640
    %v4031 = vunpack.c.h.b16 %v1640
    %v4032 = vunpack.c.l.b16 %v1641
    %v4033 = vunpack.c.h.b16 %v1641
    %v4034 = vunpack.c.l.b16 %v1642
    %v4035 = vunpack.c.h.b16 %v1642
    %v4036 = vunpack.c.l.b16 %v1643
    %v4037 = vunpack.c.h.b16 %v1643
    %v4038 = vunpack.c.l.b16 %v1644
    %v4039 = vunpack.c.h.b16 %v1644
    %v4040 = vunpack.c.l.b16 %v1645
    %v4041 = vunpack.c.h.b16 %v1645
    %v4042 = vunpack.c.l.b16 %v1646
    %v4043 = vunpack.c.h.b16 %v1646
    %v4044 = vunpack.c.l.b16 %v1647
    %v4045 = vunpack.c.h.b16 %v1647
    %v4046 = vunpack.c.l.b16 %v1648
    %v4047 = vunpack.c.h.b16 %v1648
    %v4048 = vunpack.c.l.b16 %v1649
    %v4049 = vunpack.c.h.b16 %v1649
    %v4050 = vunpack.c.l.b16 %v1650
    %v4051 = vunpack.c.h.b16 %v1650
    %v4052 = vunpack.c.l.b16 %v1651
    %v4053 = vunpack.c.h.b16 %v1651
    %v4054 = vunpack.c.l.b16 %v1652
    %v4055 = vunpack.c.h.b16 %v1652
    %v4056 = vunpack.c.l.b16 %v1653
    %v4057 = vunpack.c.h.b16 %v1653
    %v4058 = vunpack.c.l.b16 %v1654
    %v4059 = vunpack.c.h.b16 %v1654
    %v4060 = vunpack.c.l.b16 %v1655
    %v4061 = vunpack.c.h.b16 %v1655
    %v4062 = vunpack.c.l.b16 %v1656
    %v4063 = vunpack.c.h.b16 %v1656
    %v4064 = vunpack.c.l.b16 %v1657
    %v4065 = vunpack.c.h.b16 %v1657
    %v4066 = vunpack.c.l.b16 %v1658
    %v4067 = vunpack.c.h.b16 %v1658
    %v4068 = vunpack.c.l.b16 %v1659
    %v4069 = vunpack.c.h.b16 %v1659
    %v4070 = vunpack.c.l.b16 %v1660
    %v4071 = vunpack.c.h.b16 %v1660
    %v4072 = vunpack.c.l.b16 %v1661
    %v4073 = vunpack.c.h.b16 %v1661
    %v4074 = vunpack.c.l.b16 %v1662
    %v4075 = vunpack.c.h.b16 %v1662
    %v4076 = vunpack.c.l.b16 %v1663
    %v4077 = vunpack.c.h.b16 %v1663
    %v4078 = vunpack.c.l.b16 %v1664
    %v4079 = vunpack.c.h.b16 %v1664
    %v4080 = vunpack.c.l.b16 %v1665
    %v4081 = vunpack.c.h.b16 %v1665
    %v4082 = vunpack.c.l.b16 %v1666
    %v4083 = vunpack.c.h.b16 %v1666
    %v4084 = vunpack.c.l.b16 %v1667
    %v4085 = vunpack.c.h.b16 %v1667
    %v4086 = vunpack.c.l.b16 %v1668
    %v4087 = vunpack.c.h.b16 %v1668
    %v4088 = vunpack.c.l.b16 %v1669
    %v4089 = vunpack.c.h.b16 %v1669
    %v4090 = vunpack.c.l.b16 %v1670
    %v4091 = vunpack.c.h.b16 %v1670
    %v4092 = vunpack.c.l.b16 %v1671
    %v4093 = vunpack.c.h.b16 %v1671
    %v4094 = vunpack.c.l.b16 %v1672
    %v4095 = vunpack.c.h.b16 %v1672
    %v4096 = vunpack.c.l.b16 %v1673
    %v4097 = vunpack.c.h.b16 %v1673
    %v4098 = vunpack.c.l.b16 %v1674
    %v4099 = vunpack.c.h.b16 %v1674
    %v4100 = vunpack.c.l.b16 %v1675
    %v4101 = vunpack.c.h.b16 %v1675
    %v4102 = vunpack.c.l.b16 %v1676
    %v4103 = vunpack.c.h.b16 %v1676
    %v4104 = vunpack.c.l.b16 %v1677
    %v4105 = vunpack.c.h.b16 %v1677
    %v4106 = vunpack.c.l.b16 %v1678
    %v4107 = vunpack.c.h.b16 %v1678
    %v4108 = vunpack.c.l.b16 %v1679
    %v4109 = vunpack.c.h.b16 %v1679
    %v4110 = vunpack.c.l.b16 %v1680
    %v4111 = vunpack.c.h.b16 %v1680
    %v4112 = vunpack.c.l.b16 %v1681
    %v4113 = vunpack.c.h.b16 %v1681
    %v4114 = vunpack.c.l.b16 %v1682
    %v4115 = vunpack.c.h.b16 %v1682
    %v4116 = vunpack.c.l.b16 %v1683
    %v4117 = vunpack.c.h.b16 %v1683
    %v4118 = vunpack.c.l.b16 %v1684
    %v4119 = vunpack.c.h.b16 %v1684
    %v4120 = vunpack.c.l.b16 %v1685
    %v4121 = vunpack.c.h.b16 %v1685
    %v4122 = vunpack.c.l.b16 %v1686
    %v4123 = vunpack.c.h.b16 %v1686
    %v4124 = vunpack.c.l.b16 %v1687
    %v4125 = vunpack.c.h.b16 %v1687
    %v4126 = vunpack.c.l.b16 %v1688
    %v4127 = vunpack.c.h.b16 %v1688
    %v4128 = vunpack.c.l.b16 %v1689
    %v4129 = vunpack.c.h.b16 %v1689
    %v4130 = vunpack.c.l.b16 %v1690
    %v4131 = vunpack.c.h.b16 %v1690
    %v4132 = vunpack.c.l.b16 %v1691
    %v4133 = vunpack.c.h.b16 %v1691
    %v4134 = vunpack.c.l.b16 %v1692
    %v4135 = vunpack.c.h.b16 %v1692
    %v4136 = vunpack.c.l.b16 %v1693
    %v4137 = vunpack.c.h.b16 %v1693
    %v4138 = vunpack.c.l.b16 %v1694
    %v4139 = vunpack.c.h.b16 %v1694
    %v4140 = vunpack.c.l.b16 %v1695
    %v4141 = vunpack.c.h.b16 %v1695
    %v4142 = vunpack.c.l.b16 %v1696
    %v4143 = vunpack.c.h.b16 %v1696
    %v4144 = vunpack.c.l.b16 %v1697
    %v4145 = vunpack.c.h.b16 %v1697
    %v4146 = vunpack.c.l.b16 %v1698
    %v4147 = vunpack.c.h.b16 %v1698
    %v4148 = vunpack.c.l.b16 %v1699
    %v4149 = vunpack.c.h.b16 %v1699
    %v4150 = vunpack.c.l.b16 %v1700
    %v4151 = vunpack.c.h.b16 %v1700
    %v4152 = vunpack.c.l.b16 %v1701
    %v4153 = vunpack.c.h.b16 %v1701
    %v4154 = vunpack.c.l.b16 %v1702
    %v4155 = vunpack.c.h.b16 %v1702
    %v4156 = vunpack.c.l.b16 %v1703
    %v4157 = vunpack.c.h.b16 %v1703
    %v4158 = vpack.c.b16 %v2568, %v2558
    %v4159 = vpack.c.b16 %v2569, %v2559
    %v4160 = vpack.c.b16 %v2570, %v2560
    %v4161 = vpack.c.b16 %v2571, %v2561
    %v4162 = vpack.c.b16 %v2572, %v2562
    %v4163 = vpack.c.b16 %v2573, %v2563
    %v4164 = vpack.c.b16 %v2574, %v2564
    %v4165 = vpack.c.b16 %v2575, %v2565
    %v4166 = vpack.c.b16 %v2576, %v2566
    %v4167 = vpack.c.b16 %v2577, %v2567
    %v4168 = vpack.c.b16 %v2588, %v2578
    %v4169 = vpack.c.b16 %v2589, %v2579
    %v4170 = vpack.c.b16 %v2590, %v2580
    %v4171 = vpack.c.b16 %v2591, %v2581
    %v4172 = vpack.c.b16 %v2592, %v2582
    %v4173 = vpack.c.b16 %v2593, %v2583
    %v4174 = vpack.c.b16 %v2594, %v2584
    %v4175 = vpack.c.b16 %v2595, %v2585
    %v4176 = vpack.c.b16 %v2596, %v2586
    %v4177 = vpack.c.b16 %v2597, %v2587
    %v4178 = vpack.c.b16 %v2608, %v2598
    %v4179 = vpack.c.b16 %v2609, %v2599
    %v4180 = vpack.c.b16 %v2610, %v2600
    %v4181 = vpack.c.b16 %v2611, %v2601
    %v4182 = vpack.c.b16 %v2612, %v2602
    %v4183 = vpack.c.b16 %v2613, %v2603
    %v4184 = vpack.c.b16 %v2614, %v2604
    %v4185 = vpack.c.b16 %v2615, %v2605
    %v4186 = vpack.c.b16 %v2616, %v2606
    %v4187 = vpack.c.b16 %v2617, %v2607
    %v4188 = vpack.c.b16 %v2628, %v2618
    %v4189 = vpack.c.b16 %v2629, %v2619
    %v4190 = vpack.c.b16 %v2630, %v2620
    %v4191 = vpack.c.b16 %v2631, %v2621
    %v4192 = vpack.c.b16 %v2632, %v2622
    %v4193 = vpack.c.b16 %v2633, %v2623
    %v4194 = vpack.c.b16 %v2634, %v2624
    %v4195 = vpack.c.b16 %v2635, %v2625
    %v4196 = vpack.c.b16 %v2636, %v2626
    %v4197 = vpack.c.b16 %v2637, %v2627
    %v4198 = vpack.c.b16 %v2648, %v2638
    %v4199 = vpack.c.b16 %v2649, %v2639
    %v4200 = vpack.c.b16 %v2650, %v2640
    %v4201 = vpack.c.b16 %v2651, %v2641
    %v4202 = vpack.c.b16 %v2652, %v2642
    %v4203 = vpack.c.b16 %v2653, %v2643
    %v4204 = vpack.c.b16 %v2654, %v2644
    %v4205 = vpack.c.b16 %v2655, %v2645
    %v4206 = vpack.c.b16 %v2656, %v2646
    %v4207 = vpack.c.b16 %v2657, %v2647
    %v4208 = vpack.c.b16 %v2668, %v2658
    %v4209 = vpack.c.b16 %v2669, %v2659
    %v4210 = vpack.c.b16 %v2670, %v2660
    %v4211 = vpack.c.b16 %v2671, %v2661
    %v4212 = vpack.c.b16 %v2672, %v2662
    %v4213 = vpack.c.b16 %v2673, %v2663
    %v4214 = vpack.c.b16 %v2674, %v2664
    %v4215 = vpack.c.b16 %v2675, %v2665
    %v4216 = vpack.c.b16 %v2676, %v2666
    %v4217 = vpack.c.b16 %v2677, %v2667
    %v4218 = vpack.c.b16 %v2688, %v2678
    %v4219 = vpack.c.b16 %v2689, %v2679
    %v4220 = vpack.c.b16 %v2690, %v2680
    %v4221 = vpack.c.b16 %v2691, %v2681
    %v4222 = vpack.c.b16 %v2692, %v2682
    %v4223 = vpack.c.b16 %v2693, %v2683
    %v4224 = vpack.c.b16 %v2694, %v2684
    %v4225 = vpack.c.b16 %v2695, %v2685
    %v4226 = vpack.c.b16 %v2696, %v2686
    %v4227 = vpack.c.b16 %v2697, %v2687
    %v4228 = vpack.c.b16 %v2708, %v2698
    %v4229 = vpack.c.b16 %v2709, %v2699
    %v4230 = vpack.c.b16 %v2710, %v2700
    %v4231 = vpack.c.b16 %v2711, %v2701
    %v4232 = vpack.c.b16 %v2712, %v2702
    %v4233 = vpack.c.b16 %v2713, %v2703
    %v4234 = vpack.c.b16 %v2714, %v2704
    %v4235 = vpack.c.b16 %v2715, %v2705
    %v4236 = vpack.c.b16 %v2716, %v2706
    %v4237 = vpack.c.b16 %v2717, %v2707
    %v4238 = vpack.c.b16 %v2728, %v2718
    %v4239 = vpack.c.b16 %v2729, %v2719
    %v4240 = vpack.c.b16 %v2730, %v2720
    %v4241 = vpack.c.b16 %v2731, %v2721
    %v4242 = vpack.c.b16 %v2732, %v2722
    %v4243 = vpack.c.b16 %v2733, %v2723
    %v4244 = vpack.c.b16 %v2734, %v2724
    %v4245 = vpack.c.b16 %v2735, %v2725
    %v4246 = vpack.c.b16 %v2736, %v2726
    %v4247 = vpack.c.b16 %v2737, %v2727
    %v4248 = vpack.c.b16 %v2748, %v2738
    %v4249 = vpack.c.b16 %v2749, %v2739
    %v4250 = vpack.c.b16 %v2750, %v2740
    %v4251 = vpack.c.b16 %v2751, %v2741
    %v4252 = vpack.c.b16 %v2752, %v2742
    %v4253 = vpack.c.b16 %v2753, %v2743
    %v4254 = vpack.c.b16 %v2754, %v2744
    %v4255 = vpack.c.b16 %v2755, %v2745
    %v4256 = vpack.c.b16 %v2756, %v2746
    %v4257 = vpack.c.b16 %v2757, %v2747
    %v4258 = vpack.c.b16 %v2768, %v2758
    %v4259 = vpack.c.b16 %v2769, %v2759
    %v4260 = vpack.c.b16 %v2770, %v2760
    %v4261 = vpack.c.b16 %v2771, %v2761
    %v4262 = vpack.c.b16 %v2772, %v2762
    %v4263 = vpack.c.b16 %v2773, %v2763
    %v4264 = vpack.c.b16 %v2774, %v2764
    %v4265 = vpack.c.b16 %v2775, %v2765
    %v4266 = vpack.c.b16 %v2776, %v2766
    %v4267 = vpack.c.b16 %v2777, %v2767
    %v4268 = vpack.c.b16 %v2788, %v2778
    %v4269 = vpack.c.b16 %v2789, %v2779
    %v4270 = vpack.c.b16 %v2790, %v2780
    %v4271 = vpack.c.b16 %v2791, %v2781
    %v4272 = vpack.c.b16 %v2792, %v2782
    %v4273 = vpack.c.b16 %v2793, %v2783
    %v4274 = vpack.c.b16 %v2794, %v2784
    %v4275 = vpack.c.b16 %v2795, %v2785
    %v4276 = vpack.c.b16 %v2796, %v2786
    %v4277 = vpack.c.b16 %v2797, %v2787
    %v4278 = vpack.c.b16 %v2808, %v2798
    %v4279 = vpack.c.b16 %v2809, %v2799
    %v4280 = vpack.c.b16 %v2810, %v2800
    %v4281 = vpack.c.b16 %v2811, %v2801
    %v4282 = vpack.c.b16 %v2812, %v2802
    %v4283 = vpack.c.b16 %v2813, %v2803
    %v4284 = vpack.c.b16 %v2814, %v2804
    %v4285 = vpack.c.b16 %v2815, %v2805
    %v4286 = vpack.c.b16 %v2816, %v2806
    %v4287 = vpack.c.b16 %v2817, %v2807
    %v4288 = vpack.c.b16 %v2828, %v2818
    %v4289 = vpack.c.b16 %v2829, %v2819
    %v4290 = vpack.c.b16 %v2830, %v2820
    %v4291 = vpack.c.b16 %v2831, %v2821
    %v4292 = vpack.c.b16 %v2832, %v2822
    %v4293 = vpack.c.b16 %v2833, %v2823
    %v4294 = vpack.c.b16 %v2834, %v2824
    %v4295 = vpack.c.b16 %v2835, %v2825
    %v4296 = vpack.c.b16 %v2836, %v2826
    %v4297 = vpack.c.b16 %v2837, %v2827
    %v4298 = vpack.c.b16 %v2848, %v2838
    %v4299 = vpack.c.b16 %v2849, %v2839
    %v4300 = vpack.c.b16 %v2850, %v2840
    %v4301 = vpack.c.b16 %v2851, %v2841
    %v4302 = vpack.c.b16 %v2852, %v2842
    %v4303 = vpack.c.b16 %v2853, %v2843
    %v4304 = vpack.c.b16 %v2854, %v2844
    %v4305 = vpack.c.b16 %v2855, %v2845
    %v4306 = vpack.c.b16 %v2856, %v2846
    %v4307 = vpack.c.b16 %v2857, %v2847
    %v4308 = vpack.c.b16 %v2868, %v2858
    %v4309 = vpack.c.b16 %v2869, %v2859
    %v4310 = vpack.c.b16 %v2870, %v2860
    %v4311 = vpack.c.b16 %v2871, %v2861
    %v4312 = vpack.c.b16 %v2872, %v2862
    %v4313 = vpack.c.b16 %v2873, %v2863
    %v4314 = vpack.c.b16 %v2874, %v2864
    %v4315 = vpack.c.b16 %v2875, %v2865
    %v4316 = vpack.c.b16 %v2876, %v2866
    %v4317 = vpack.c.b16 %v2877, %v2867
    %v4318 = vpack.c.b16 %v2888, %v2878
    %v4319 = vpack.c.b16 %v2889, %v2879
    %v4320 = vpack.c.b16 %v2890, %v2880
    %v4321 = vpack.c.b16 %v2891, %v2881
    %v4322 = vpack.c.b16 %v2892, %v2882
    %v4323 = vpack.c.b16 %v2893, %v2883
    %v4324 = vpack.c.b16 %v2894, %v2884
    %v4325 = vpack.c.b16 %v2895, %v2885
    %v4326 = vpack.c.b16 %v2896, %v2886
    %v4327 = vpack.c.b16 %v2897, %v2887
    %v4328 = vpack.c.b16 %v2908, %v2898
    %v4329 = vpack.c.b16 %v2909, %v2899
    %v4330 = vpack.c.b16 %v2910, %v2900
    %v4331 = vpack.c.b16 %v2911, %v2901
    %v4332 = vpack.c.b16 %v2912, %v2902
    %v4333 = vpack.c.b16 %v2913, %v2903
    %v4334 = vpack.c.b16 %v2914, %v2904
    %v4335 = vpack.c.b16 %v2915, %v2905
    %v4336 = vpack.c.b16 %v2916, %v2906
    %v4337 = vpack.c.b16 %v2917, %v2907
    %v4338 = vpack.c.b16 %v2928, %v2918
    %v4339 = vpack.c.b16 %v2929, %v2919
    %v4340 = vpack.c.b16 %v2930, %v2920
    %v4341 = vpack.c.b16 %v2931, %v2921
    %v4342 = vpack.c.b16 %v2932, %v2922
    %v4343 = vpack.c.b16 %v2933, %v2923
    %v4344 = vpack.c.b16 %v2934, %v2924
    %v4345 = vpack.c.b16 %v2935, %v2925
    %v4346 = vpack.c.b16 %v2936, %v2926
    %v4347 = vpack.c.b16 %v2937, %v2927
    %v4348 = vpack.c.b16 %v2948, %v2938
    %v4349 = vpack.c.b16 %v2949, %v2939
    %v4350 = vpack.c.b16 %v2950, %v2940
    %v4351 = vpack.c.b16 %v2951, %v2941
    %v4352 = vpack.c.b16 %v2952, %v2942
    %v4353 = vpack.c.b16 %v2953, %v2943
    %v4354 = vpack.c.b16 %v2954, %v2944
    %v4355 = vpack.c.b16 %v2955, %v2945
    %v4356 = vpack.c.b16 %v2956, %v2946
    %v4357 = vpack.c.b16 %v2957, %v2947
    %v4358 = vpack.c.b16 %v2968, %v2958
    %v4359 = vpack.c.b16 %v2969, %v2959
    %v4360 = vpack.c.b16 %v2970, %v2960
    %v4361 = vpack.c.b16 %v2971, %v2961
    %v4362 = vpack.c.b16 %v2972, %v2962
    %v4363 = vpack.c.b16 %v2973, %v2963
    %v4364 = vpack.c.b16 %v2974, %v2964
    %v4365 = vpack.c.b16 %v2975, %v2965
    %v4366 = vpack.c.b16 %v2976, %v2966
    %v4367 = vpack.c.b16 %v2977, %v2967
    %v4368 = vpack.c.b16 %v2988, %v2978
    %v4369 = vpack.c.b16 %v2989, %v2979
    %v4370 = vpack.c.b16 %v2990, %v2980
    %v4371 = vpack.c.b16 %v2991, %v2981
    %v4372 = vpack.c.b16 %v2992, %v2982
    %v4373 = vpack.c.b16 %v2993, %v2983
    %v4374 = vpack.c.b16 %v2994, %v2984
    %v4375 = vpack.c.b16 %v2995, %v2985
    %v4376 = vpack.c.b16 %v2996, %v2986
    %v4377 = vpack.c.b16 %v2997, %v2987
    %v4378 = vpack.c.b16 %v3008, %v2998
    %v4379 = vpack.c.b16 %v3009, %v2999
    %v4380 = vpack.c.b16 %v3010, %v3000
    %v4381 = vpack.c.b16 %v3011, %v3001
    %v4382 = vpack.c.b16 %v3012, %v3002
    %v4383 = vpack.c.b16 %v3013, %v3003
    %v4384 = vpack.c.b16 %v3014, %v3004
    %v4385 = vpack.c.b16 %v3015, %v3005
    %v4386 = vpack.c.b16 %v3016, %v3006
    %v4387 = vpack.c.b16 %v3017, %v3007
    %v4388 = vpack.c.b16 %v3028, %v3018
    %v4389 = vpack.c.b16 %v3029, %v3019
    %v4390 = vpack.c.b16 %v3030, %v3020
    %v4391 = vpack.c.b16 %v3031, %v3021
    %v4392 = vpack.c.b16 %v3032, %v3022
    %v4393 = vpack.c.b16 %v3033, %v3023
    %v4394 = vpack.c.b16 %v3034, %v3024
    %v4395 = vpack.c.b16 %v3035, %v3025
    %v4396 = vpack.c.b16 %v3036, %v3026
    %v4397 = vpack.c.b16 %v3037, %v3027
    %v4398 = vpack.c.b16 %v3048, %v3038
    %v4399 = vpack.c.b16 %v3049, %v3039
    %v4400 = vpack.c.b16 %v3050, %v3040
    %v4401 = vpack.c.b16 %v3051, %v3041
    %v4402 = vpack.c.b16 %v3052, %v3042
    %v4403 = vpack.c.b16 %v3053, %v3043
    %v4404 = vpack.c.b16 %v3054, %v3044
    %v4405 = vpack.c.b16 %v3055, %v3045
    %v4406 = vpack.c.b16 %v3056, %v3046
    %v4407 = vpack.c.b16 %v3057, %v3047
    %v4408 = vpack.c.b16 %v3068, %v3058
    %v4409 = vpack.c.b16 %v3069, %v3059
    %v4410 = vpack.c.b16 %v3070, %v3060
    %v4411 = vpack.c.b16 %v3071, %v3061
    %v4412 = vpack.c.b16 %v3072, %v3062
    %v4413 = vpack.c.b16 %v3073, %v3063
    %v4414 = vpack.c.b16 %v3074, %v3064
    %v4415 = vpack.c.b16 %v3075, %v3065
    %v4416 = vpack.c.b16 %v3076, %v3066
    %v4417 = vpack.c.b16 %v3077, %v3067
    %v4418 = vpack.c.b16 %v3088, %v3078
    %v4419 = vpack.c.b16 %v3089, %v3079
    %v4420 = vpack.c.b16 %v3090, %v3080
    %v4421 = vpack.c.b16 %v3091, %v3081
    %v4422 = vpack.c.b16 %v3092, %v3082
    %v4423 = vpack.c.b16 %v3093, %v3083
    %v4424 = vpack.c.b16 %v3094, %v3084
    %v4425 = vpack.c.b16 %v3095, %v3085
    %v4426 = vpack.c.b16 %v3096, %v3086
    %v4427 = vpack.c.b16 %v3097, %v3087
    %v4428 = vpack.c.b16 %v3108, %v3098
    %v4429 = vpack.c.b16 %v3109, %v3099
    %v4430 = vpack.c.b16 %v3110, %v3100
    %v4431 = vpack.c.b16 %v3111, %v3101
    %v4432 = vpack.c.b16 %v3112, %v3102
    %v4433 = vpack.c.b16 %v3113, %v3103
    %v4434 = vpack.c.b16 %v3114, %v3104
    %v4435 = vpack.c.b16 %v3115, %v3105
    %v4436 = vpack.c.b16 %v3116, %v3106
    %v4437 = vpack.c.b16 %v3117, %v3107
    %v4438 = vpack.c.b16 %v3128, %v3118
    %v4439 = vpack.c.b16 %v3129, %v3119
    %v4440 = vpack.c.b16 %v3130, %v3120
    %v4441 = vpack.c.b16 %v3131, %v3121
    %v4442 = vpack.c.b16 %v3132, %v3122
    %v4443 = vpack.c.b16 %v3133, %v3123
    %v4444 = vpack.c.b16 %v3134, %v3124
    %v4445 = vpack.c.b16 %v3135, %v3125
    %v4446 = vpack.c.b16 %v3136, %v3126
    %v4447 = vpack.c.b16 %v3137, %v3127
    %v4448 = vpack.c.b16 %v3148, %v3138
    %v4449 = vpack.c.b16 %v3149, %v3139
    %v4450 = vpack.c.b16 %v3150, %v3140
    %v4451 = vpack.c.b16 %v3151, %v3141
    %v4452 = vpack.c.b16 %v3152, %v3142
    %v4453 = vpack.c.b16 %v3153, %v3143
    %v4454 = vpack.c.b16 %v3154, %v3144
    %v4455 = vpack.c.b16 %v3155, %v3145
    %v4456 = vpack.c.b16 %v3156, %v3146
    %v4457 = vpack.c.b16 %v3157, %v3147
    %v4458 = vpack.c.b16 %v3168, %v3158
    %v4459 = vpack.c.b16 %v3169, %v3159
    %v4460 = vpack.c.b16 %v3170, %v3160
    %v4461 = vpack.c.b16 %v3171, %v3161
    %v4462 = vpack.c.b16 %v3172, %v3162
    %v4463 = vpack.c.b16 %v3173, %v3163
    %v4464 = vpack.c.b16 %v3174, %v3164
    %v4465 = vpack.c.b16 %v3175, %v3165
    %v4466 = vpack.c.b16 %v3176, %v3166
    %v4467 = vpack.c.b16 %v3177, %v3167
    %v4468 = vpack.c.b16 %v3188, %v3178
    %v4469 = vpack.c.b16 %v3189, %v3179
    %v4470 = vpack.c.b16 %v3190, %v3180
    %v4471 = vpack.c.b16 %v3191, %v3181
    %v4472 = vpack.c.b16 %v3192, %v3182
    %v4473 = vpack.c.b16 %v3193, %v3183
    %v4474 = vpack.c.b16 %v3194, %v3184
    %v4475 = vpack.c.b16 %v3195, %v3185
    %v4476 = vpack.c.b16 %v3196, %v3186
    %v4477 = vpack.c.b16 %v3197, %v3187
    %v4478 = vpack.c.b16 %v3208, %v3198
    %v4479 = vpack.c.b16 %v3209, %v3199
    %v4480 = vpack.c.b16 %v3210, %v3200
    %v4481 = vpack.c.b16 %v3211, %v3201
    %v4482 = vpack.c.b16 %v3212, %v3202
    %v4483 = vpack.c.b16 %v3213, %v3203
    %v4484 = vpack.c.b16 %v3214, %v3204
    %v4485 = vpack.c.b16 %v3215, %v3205
    %v4486 = vpack.c.b16 %v3216, %v3206
    %v4487 = vpack.c.b16 %v3217, %v3207
    %v4488 = vpack.c.b16 %v3228, %v3218
    %v4489 = vpack.c.b16 %v3229, %v3219
    %v4490 = vpack.c.b16 %v3230, %v3220
    %v4491 = vpack.c.b16 %v3231, %v3221
    %v4492 = vpack.c.b16 %v3232, %v3222
    %v4493 = vpack.c.b16 %v3233, %v3223
    %v4494 = vpack.c.b16 %v3234, %v3224
    %v4495 = vpack.c.b16 %v3235, %v3225
    %v4496 = vpack.c.b16 %v3236, %v3226
    %v4497 = vpack.c.b16 %v3237, %v3227
    %v4498 = vpack.c.b16 %v3248, %v3238
    %v4499 = vpack.c.b16 %v3249, %v3239
    %v4500 = vpack.c.b16 %v3250, %v3240
    %v4501 = vpack.c.b16 %v3251, %v3241
    %v4502 = vpack.c.b16 %v3252, %v3242
    %v4503 = vpack.c.b16 %v3253, %v3243
    %v4504 = vpack.c.b16 %v3254, %v3244
    %v4505 = vpack.c.b16 %v3255, %v3245
    %v4506 = vpack.c.b16 %v3256, %v3246
    %v4507 = vpack.c.b16 %v3257, %v3247
    %v4508 = vpack.c.b16 %v3268, %v3258
    %v4509 = vpack.c.b16 %v3269, %v3259
    %v4510 = vpack.c.b16 %v3270, %v3260
    %v4511 = vpack.c.b16 %v3271, %v3261
    %v4512 = vpack.c.b16 %v3272, %v3262
    %v4513 = vpack.c.b16 %v3273, %v3263
    %v4514 = vpack.c.b16 %v3274, %v3264
    %v4515 = vpack.c.b16 %v3275, %v3265
    %v4516 = vpack.c.b16 %v3276, %v3266
    %v4517 = vpack.c.b16 %v3277, %v3267
    %v4518 = vpack.c.b16 %v3288, %v3278
    %v4519 = vpack.c.b16 %v3289, %v3279
    %v4520 = vpack.c.b16 %v3290, %v3280
    %v4521 = vpack.c.b16 %v3291, %v3281
    %v4522 = vpack.c.b16 %v3292, %v3282
    %v4523 = vpack.c.b16 %v3293, %v3283
    %v4524 = vpack.c.b16 %v3294, %v3284
    %v4525 = vpack.c.b16 %v3295, %v3285
    %v4526 = vpack.c.b16 %v3296, %v3286
    %v4527 = vpack.c.b16 %v3297, %v3287
    %v4528 = vpack.c.b16 %v3308, %v3298
    %v4529 = vpack.c.b16 %v3309, %v3299
    %v4530 = vpack.c.b16 %v3310, %v3300
    %v4531 = vpack.c.b16 %v3311, %v3301
    %v4532 = vpack.c.b16 %v3312, %v3302
    %v4533 = vpack.c.b16 %v3313, %v3303
    %v4534 = vpack.c.b16 %v3314, %v3304
    %v4535 = vpack.c.b16 %v3315, %v3305
    %v4536 = vpack.c.b16 %v3316, %v3306
    %v4537 = vpack.c.b16 %v3317, %v3307
    %v4538 = vpack.c.b16 %v3328, %v3318
    %v4539 = vpack.c.b16 %v3329, %v3319
    %v4540 = vpack.c.b16 %v3330, %v3320
    %v4541 = vpack.c.b16 %v3331, %v3321
    %v4542 = vpack.c.b16 %v3332, %v3322
    %v4543 = vpack.c.b16 %v3333, %v3323
    %v4544 = vpack.c.b16 %v3334, %v3324
    %v4545 = vpack.c.b16 %v3335, %v3325
    %v4546 = vpack.c.b16 %v3336, %v3326
    %v4547 = vpack.c.b16 %v3337, %v3327
    %v4548 = vpack.c.b16 %v3348, %v3338
    %v4549 = vpack.c.b16 %v3349, %v3339
    %v4550 = vpack.c.b16 %v3350, %v3340
    %v4551 = vpack.c.b16 %v3351, %v3341
    %v4552 = vpack.c.b16 %v3352, %v3342
    %v4553 = vpack.c.b16 %v3353, %v3343
    %v4554 = vpack.c.b16 %v3354, %v3344
    %v4555 = vpack.c.b16 %v3355, %v3345
    %v4556 = vpack.c.b16 %v3356, %v3346
    %v4557 = vpack.c.b16 %v3357, %v3347
    %v4558 = vpack.c.b16 %v3368, %v3358
    %v4559 = vpack.c.b16 %v3369, %v3359
    %v4560 = vpack.c.b16 %v3370, %v3360
    %v4561 = vpack.c.b16 %v3371, %v3361
    %v4562 = vpack.c.b16 %v3372, %v3362
    %v4563 = vpack.c.b16 %v3373, %v3363
    %v4564 = vpack.c.b16 %v3374, %v3364
    %v4565 = vpack.c.b16 %v3375, %v3365
    %v4566 = vpack.c.b16 %v3376, %v3366
    %v4567 = vpack.c.b16 %v3377, %v3367
    %v4568 = vpack.c.b16 %v3388, %v3378
    %v4569 = vpack.c.b16 %v3389, %v3379
    %v4570 = vpack.c.b16 %v3390, %v3380
    %v4571 = vpack.c.b16 %v3391, %v3381
    %v4572 = vpack.c.b16 %v3392, %v3382
    %v4573 = vpack.c.b16 %v3393, %v3383
    %v4574 = vpack.c.b16 %v3394, %v3384
    %v4575 = vpack.c.b16 %v3395, %v3385
    %v4576 = vpack.c.b16 %v3396, %v3386
    %v4577 = vpack.c.b16 %v3397, %v3387
    %v4578 = vpack.c.b16 %v3408, %v3398
    %v4579 = vpack.c.b16 %v3409, %v3399
    %v4580 = vpack.c.b16 %v3410, %v3400
    %v4581 = vpack.c.b16 %v3411, %v3401
    %v4582 = vpack.c.b16 %v3412, %v3402
    %v4583 = vpack.c.b16 %v3413, %v3403
    %v4584 = vpack.c.b16 %v3414, %v3404
    %v4585 = vpack.c.b16 %v3415, %v3405
    %v4586 = vpack.c.b16 %v3416, %v3406
    %v4587 = vpack.c.b16 %v3417, %v3407
    %v4588 = vpack.c.b16 %v3428, %v3418
    %v4589 = vpack.c.b16 %v3429, %v3419
    %v4590 = vpack.c.b16 %v3430, %v3420
    %v4591 = vpack.c.b16 %v3431, %v3421
    %v4592 = vpack.c.b16 %v3432, %v3422
    %v4593 = vpack.c.b16 %v3433, %v3423
    %v4594 = vpack.c.b16 %v3434, %v3424
    %v4595 = vpack.c.b16 %v3435, %v3425
    %v4596 = vpack.c.b16 %v3436, %v3426
    %v4597 = vpack.c.b16 %v3437, %v3427
    %v4598 = vpack.c.b16 %v3448, %v3438
    %v4599 = vpack.c.b16 %v3449, %v3439
    %v4600 = vpack.c.b16 %v3450, %v3440
    %v4601 = vpack.c.b16 %v3451, %v3441
    %v4602 = vpack.c.b16 %v3452, %v3442
    %v4603 = vpack.c.b16 %v3453, %v3443
    %v4604 = vpack.c.b16 %v3454, %v3444
    %v4605 = vpack.c.b16 %v3455, %v3445
    %v4606 = vpack.c.b16 %v3456, %v3446
    %v4607 = vpack.c.b16 %v3457, %v3447
    %v4608 = vpack.c.b16 %v3468, %v3458
    %v4609 = vpack.c.b16 %v3469, %v3459
    %v4610 = vpack.c.b16 %v3470, %v3460
    %v4611 = vpack.c.b16 %v3471, %v3461
    %v4612 = vpack.c.b16 %v3472, %v3462
    %v4613 = vpack.c.b16 %v3473, %v3463
    %v4614 = vpack.c.b16 %v3474, %v3464
    %v4615 = vpack.c.b16 %v3475, %v3465
    %v4616 = vpack.c.b16 %v3476, %v3466
    %v4617 = vpack.c.b16 %v3477, %v3467
    %v4618 = vpack.c.b16 %v3488, %v3478
    %v4619 = vpack.c.b16 %v3489, %v3479
    %v4620 = vpack.c.b16 %v3490, %v3480
    %v4621 = vpack.c.b16 %v3491, %v3481
    %v4622 = vpack.c.b16 %v3492, %v3482
    %v4623 = vpack.c.b16 %v3493, %v3483
    %v4624 = vpack.c.b16 %v3494, %v3484
    %v4625 = vpack.c.b16 %v3495, %v3485
    %v4626 = vpack.c.b16 %v3496, %v3486
    %v4627 = vpack.c.b16 %v3497, %v3487
    %v4628 = vpack.c.b16 %v3508, %v3498
    %v4629 = vpack.c.b16 %v3509, %v3499
    %v4630 = vpack.c.b16 %v3510, %v3500
    %v4631 = vpack.c.b16 %v3511, %v3501
    %v4632 = vpack.c.b16 %v3512, %v3502
    %v4633 = vpack.c.b16 %v3513, %v3503
    %v4634 = vpack.c.b16 %v3514, %v3504
    %v4635 = vpack.c.b16 %v3515, %v3505
    %v4636 = vpack.c.b16 %v3516, %v3506
    %v4637 = vpack.c.b16 %v3517, %v3507
    %v4638 = vpack.c.b16 %v3528, %v3518
    %v4639 = vpack.c.b16 %v3529, %v3519
    %v4640 = vpack.c.b16 %v3530, %v3520
    %v4641 = vpack.c.b16 %v3531, %v3521
    %v4642 = vpack.c.b16 %v3532, %v3522
    %v4643 = vpack.c.b16 %v3533, %v3523
    %v4644 = vpack.c.b16 %v3534, %v3524
    %v4645 = vpack.c.b16 %v3535, %v3525
    %v4646 = vpack.c.b16 %v3536, %v3526
    %v4647 = vpack.c.b16 %v3537, %v3527
    %v4648 = vpack.c.b16 %v3548, %v3538
    %v4649 = vpack.c.b16 %v3549, %v3539
    %v4650 = vpack.c.b16 %v3550, %v3540
    %v4651 = vpack.c.b16 %v3551, %v3541
    %v4652 = vpack.c.b16 %v3552, %v3542
    %v4653 = vpack.c.b16 %v3553, %v3543
    %v4654 = vpack.c.b16 %v3554, %v3544
    %v4655 = vpack.c.b16 %v3555, %v3545
    %v4656 = vpack.c.b16 %v3556, %v3546
    %v4657 = vpack.c.b16 %v3557, %v3547
    %v4658 = vpack.c.b16 %v3568, %v3558
    %v4659 = vpack.c.b16 %v3569, %v3559
    %v4660 = vpack.c.b16 %v3570, %v3560
    %v4661 = vpack.c.b16 %v3571, %v3561
    %v4662 = vpack.c.b16 %v3572, %v3562
    %v4663 = vpack.c.b16 %v3573, %v3563
    %v4664 = vpack.c.b16 %v3574, %v3564
    %v4665 = vpack.c.b16 %v3575, %v3565
    %v4666 = vpack.c.b16 %v3576, %v3566
    %v4667 = vpack.c.b16 %v3577, %v3567
    %v4668 = vpack.c.b16 %v3588, %v3578
    %v4669 = vpack.c.b16 %v3589, %v3579
    %v4670 = vpack.c.b16 %v3590, %v3580
    %v4671 = vpack.c.b16 %v3591, %v3581
    %v4672 = vpack.c.b16 %v3592, %v3582
    %v4673 = vpack.c.b16 %v3593, %v3583
    %v4674 = vpack.c.b16 %v3594, %v3584
    %v4675 = vpack.c.b16 %v3595, %v3585
    %v4676 = vpack.c.b16 %v3596, %v3586
    %v4677 = vpack.c.b16 %v3597, %v3587
    %v4678 = vpack.c.b16 %v3608, %v3598
    %v4679 = vpack.c.b16 %v3609, %v3599
    %v4680 = vpack.c.b16 %v3610, %v3600
    %v4681 = vpack.c.b16 %v3611, %v3601
    %v4682 = vpack.c.b16 %v3612, %v3602
    %v4683 = vpack.c.b16 %v3613, %v3603
    %v4684 = vpack.c.b16 %v3614, %v3604
    %v4685 = vpack.c.b16 %v3615, %v3605
    %v4686 = vpack.c.b16 %v3616, %v3606
    %v4687 = vpack.c.b16 %v3617, %v3607
    %v4688 = vpack.c.b16 %v3628, %v3618
    %v4689 = vpack.c.b16 %v3629, %v3619
    %v4690 = vpack.c.b16 %v3630, %v3620
    %v4691 = vpack.c.b16 %v3631, %v3621
    %v4692 = vpack.c.b16 %v3632, %v3622
    %v4693 = vpack.c.b16 %v3633, %v3623
    %v4694 = vpack.c.b16 %v3634, %v3624
    %v4695 = vpack.c.b16 %v3635, %v3625
    %v4696 = vpack.c.b16 %v3636, %v3626
    %v4697 = vpack.c.b16 %v3637, %v3627
    %v4698 = vpack.c.b16 %v3648, %v3638
    %v4699 = vpack.c.b16 %v3649, %v3639
    %v4700 = vpack.c.b16 %v3650, %v3640
    %v4701 = vpack.c.b16 %v3651, %v3641
    %v4702 = vpack.c.b16 %v3652, %v3642
    %v4703 = vpack.c.b16 %v3653, %v3643
    %v4704 = vpack.c.b16 %v3654, %v3644
    %v4705 = vpack.c.b16 %v3655, %v3645
    %v4706 = vpack.c.b16 %v3656, %v3646
    %v4707 = vpack.c.b16 %v3657, %v3647
    %v4708 = vpack.c.b16 %v3668, %v3658
    %v4709 = vpack.c.b16 %v3669, %v3659
    %v4710 = vpack.c.b16 %v3670, %v3660
    %v4711 = vpack.c.b16 %v3671, %v3661
    %v4712 = vpack.c.b16 %v3672, %v3662
    %v4713 = vpack.c.b16 %v3673, %v3663
    %v4714 = vpack.c.b16 %v3674, %v3664
    %v4715 = vpack.c.b16 %v3675, %v3665
    %v4716 = vpack.c.b16 %v3676, %v3666
    %v4717 = vpack.c.b16 %v3677, %v3667
    %v4718 = vpack.c.b16 %v3688, %v3678
    %v4719 = vpack.c.b16 %v3689, %v3679
    %v4720 = vpack.c.b16 %v3690, %v3680
    %v4721 = vpack.c.b16 %v3691, %v3681
    %v4722 = vpack.c.b16 %v3692, %v3682
    %v4723 = vpack.c.b16 %v3693, %v3683
    %v4724 = vpack.c.b16 %v3694, %v3684
    %v4725 = vpack.c.b16 %v3695, %v3685
    %v4726 = vpack.c.b16 %v3696, %v3686
    %v4727 = vpack.c.b16 %v3697, %v3687
    %v4728 = vpack.c.b16 %v3708, %v3698
    %v4729 = vpack.c.b16 %v3709, %v3699
    %v4730 = vpack.c.b16 %v3710, %v3700
    %v4731 = vpack.c.b16 %v3711, %v3701
    %v4732 = vpack.c.b16 %v3712, %v3702
    %v4733 = vpack.c.b16 %v3713, %v3703
    %v4734 = vpack.c.b16 %v3714, %v3704
    %v4735 = vpack.c.b16 %v3715, %v3705
    %v4736 = vpack.c.b16 %v3716, %v3706
    %v4737 = vpack.c.b16 %v3717, %v3707
    %v4738 = vpack.c.b16 %v3728, %v3718
    %v4739 = vpack.c.b16 %v3729, %v3719
    %v4740 = vpack.c.b16 %v3730, %v3720
    %v4741 = vpack.c.b16 %v3731, %v3721
    %v4742 = vpack.c.b16 %v3732, %v3722
    %v4743 = vpack.c.b16 %v3733, %v3723
    %v4744 = vpack.c.b16 %v3734, %v3724
    %v4745 = vpack.c.b16 %v3735, %v3725
    %v4746 = vpack.c.b16 %v3736, %v3726
    %v4747 = vpack.c.b16 %v3737, %v3727
    %v4748 = vpack.c.b16 %v3748, %v3738
    %v4749 = vpack.c.b16 %v3749, %v3739
    %v4750 = vpack.c.b16 %v3750, %v3740
    %v4751 = vpack.c.b16 %v3751, %v3741
    %v4752 = vpack.c.b16 %v3752, %v3742
    %v4753 = vpack.c.b16 %v3753, %v3743
    %v4754 = vpack.c.b16 %v3754, %v3744
    %v4755 = vpack.c.b16 %v3755, %v3745
    %v4756 = vpack.c.b16 %v3756, %v3746
    %v4757 = vpack.c.b16 %v3757, %v3747
    %v4758 = vpack.c.b16 %v3768, %v3758
    %v4759 = vpack.c.b16 %v3769, %v3759
    %v4760 = vpack.c.b16 %v3770, %v3760
    %v4761 = vpack.c.b16 %v3771, %v3761
    %v4762 = vpack.c.b16 %v3772, %v3762
    %v4763 = vpack.c.b16 %v3773, %v3763
    %v4764 = vpack.c.b16 %v3774, %v3764
    %v4765 = vpack.c.b16 %v3775, %v3765
    %v4766 = vpack.c.b16 %v3776, %v3766
    %v4767 = vpack.c.b16 %v3777, %v3767
    %v4768 = vpack.c.b16 %v3788, %v3778
    %v4769 = vpack.c.b16 %v3789, %v3779
    %v4770 = vpack.c.b16 %v3790, %v3780
    %v4771 = vpack.c.b16 %v3791, %v3781
    %v4772 = vpack.c.b16 %v3792, %v3782
    %v4773 = vpack.c.b16 %v3793, %v3783
    %v4774 = vpack.c.b16 %v3794, %v3784
    %v4775 = vpack.c.b16 %v3795, %v3785
    %v4776 = vpack.c.b16 %v3796, %v3786
    %v4777 = vpack.c.b16 %v3797, %v3787
    %v4778 = vpack.c.b16 %v3808, %v3798
    %v4779 = vpack.c.b16 %v3809, %v3799
    %v4780 = vpack.c.b16 %v3810, %v3800
    %v4781 = vpack.c.b16 %v3811, %v3801
    %v4782 = vpack.c.b16 %v3812, %v3802
    %v4783 = vpack.c.b16 %v3813, %v3803
    %v4784 = vpack.c.b16 %v3814, %v3804
    %v4785 = vpack.c.b16 %v3815, %v3805
    %v4786 = vpack.c.b16 %v3816, %v3806
    %v4787 = vpack.c.b16 %v3817, %v3807
    %v4788 = vpack.c.b16 %v3828, %v3818
    %v4789 = vpack.c.b16 %v3829, %v3819
    %v4790 = vpack.c.b16 %v3830, %v3820
    %v4791 = vpack.c.b16 %v3831, %v3821
    %v4792 = vpack.c.b16 %v3832, %v3822
    %v4793 = vpack.c.b16 %v3833, %v3823
    %v4794 = vpack.c.b16 %v3834, %v3824
    %v4795 = vpack.c.b16 %v3835, %v3825
    %v4796 = vpack.c.b16 %v3836, %v3826
    %v4797 = vpack.c.b16 %v3837, %v3827
    %v4798 = vpack.c.b16 %v3848, %v3838
    %v4799 = vpack.c.b16 %v3849, %v3839
    %v4800 = vpack.c.b16 %v3850, %v3840
    %v4801 = vpack.c.b16 %v3851, %v3841
    %v4802 = vpack.c.b16 %v3852, %v3842
    %v4803 = vpack.c.b16 %v3853, %v3843
    %v4804 = vpack.c.b16 %v3854, %v3844
    %v4805 = vpack.c.b16 %v3855, %v3845
    %v4806 = vpack.c.b16 %v3856, %v3846
    %v4807 = vpack.c.b16 %v3857, %v3847
    %v4808 = vpack.c.b16 %v3868, %v3858
    %v4809 = vpack.c.b16 %v3869, %v3859
    %v4810 = vpack.c.b16 %v3870, %v3860
    %v4811 = vpack.c.b16 %v3871, %v3861
    %v4812 = vpack.c.b16 %v3872, %v3862
    %v4813 = vpack.c.b16 %v3873, %v3863
    %v4814 = vpack.c.b16 %v3874, %v3864
    %v4815 = vpack.c.b16 %v3875, %v3865
    %v4816 = vpack.c.b16 %v3876, %v3866
    %v4817 = vpack.c.b16 %v3877, %v3867
    %v4818 = vpack.c.b16 %v3888, %v3878
    %v4819 = vpack.c.b16 %v3889, %v3879
    %v4820 = vpack.c.b16 %v3890, %v3880
    %v4821 = vpack.c.b16 %v3891, %v3881
    %v4822 = vpack.c.b16 %v3892, %v3882
    %v4823 = vpack.c.b16 %v3893, %v3883
    %v4824 = vpack.c.b16 %v3894, %v3884
    %v4825 = vpack.c.b16 %v3895, %v3885
    %v4826 = vpack.c.b16 %v3896, %v3886
    %v4827 = vpack.c.b16 %v3897, %v3887
    %v4828 = vpack.c.b16 %v3908, %v3898
    %v4829 = vpack.c.b16 %v3909, %v3899
    %v4830 = vpack.c.b16 %v3910, %v3900
    %v4831 = vpack.c.b16 %v3911, %v3901
    %v4832 = vpack.c.b16 %v3912, %v3902
    %v4833 = vpack.c.b16 %v3913, %v3903
    %v4834 = vpack.c.b16 %v3914, %v3904
    %v4835 = vpack.c.b16 %v3915, %v3905
    %v4836 = vpack.c.b16 %v3916, %v3906
    %v4837 = vpack.c.b16 %v3917, %v3907
    %v4838 = vpack.c.b16 %v3928, %v3918
    %v4839 = vpack.c.b16 %v3929, %v3919
    %v4840 = vpack.c.b16 %v3930, %v3920
    %v4841 = vpack.c.b16 %v3931, %v3921
    %v4842 = vpack.c.b16 %v3932, %v3922
    %v4843 = vpack.c.b16 %v3933, %v3923
    %v4844 = vpack.c.b16 %v3934, %v3924
    %v4845 = vpack.c.b16 %v3935, %v3925
    %v4846 = vpack.c.b16 %v3936, %v3926
    %v4847 = vpack.c.b16 %v3937, %v3927
    %v4848 = vpack.c.b16 %v3948, %v3938
    %v4849 = vpack.c.b16 %v3949, %v3939
    %v4850 = vpack.c.b16 %v3950, %v3940
    %v4851 = vpack.c.b16 %v3951, %v3941
    %v4852 = vpack.c.b16 %v3952, %v3942
    %v4853 = vpack.c.b16 %v3953, %v3943
    %v4854 = vpack.c.b16 %v3954, %v3944
    %v4855 = vpack.c.b16 %v3955, %v3945
    %v4856 = vpack.c.b16 %v3956, %v3946
    %v4857 = vpack.c.b16 %v3957, %v3947
    %v4858 = vpack.c.b16 %v3968, %v3958
    %v4859 = vpack.c.b16 %v3969, %v3959
    %v4860 = vpack.c.b16 %v3970, %v3960
    %v4861 = vpack.c.b16 %v3971, %v3961
    %v4862 = vpack.c.b16 %v3972, %v3962
    %v4863 = vpack.c.b16 %v3973, %v3963
    %v4864 = vpack.c.b16 %v3974, %v3964
    %v4865 = vpack.c.b16 %v3975, %v3965
    %v4866 = vpack.c.b16 %v3976, %v3966
    %v4867 = vpack.c.b16 %v3977, %v3967
    %v4868 = vpack.c.b16 %v3988, %v3978
    %v4869 = vpack.c.b16 %v3989, %v3979
    %v4870 = vpack.c.b16 %v3990, %v3980
    %v4871 = vpack.c.b16 %v3991, %v3981
    %v4872 = vpack.c.b16 %v3992, %v3982
    %v4873 = vpack.c.b16 %v3993, %v3983
    %v4874 = vpack.c.b16 %v3994, %v3984
    %v4875 = vpack.c.b16 %v3995, %v3985
    %v4876 = vpack.c.b16 %v3996, %v3986
    %v4877 = vpack.c.b16 %v3997, %v3987
    %v4878 = vpack.c.b16 %v4008, %v3998
    %v4879 = vpack.c.b16 %v4009, %v3999
    %v4880 = vpack.c.b16 %v4010, %v4000
    %v4881 = vpack.c.b16 %v4011, %v4001
    %v4882 = vpack.c.b16 %v4012, %v4002
    %v4883 = vpack.c.b16 %v4013, %v4003
    %v4884 = vpack.c.b16 %v4014, %v4004
    %v4885 = vpack.c.b16 %v4015, %v4005
    %v4886 = vpack.c.b16 %v4016, %v4006
    %v4887 = vpack.c.b16 %v4017, %v4007
    %v4888 = vpack.c.b16 %v4028, %v4018
    %v4889 = vpack.c.b16 %v4029, %v4019
    %v4890 = vpack.c.b16 %v4030, %v4020
    %v4891 = vpack.c.b16 %v4031, %v4021
    %v4892 = vpack.c.b16 %v4032, %v4022
    %v4893 = vpack.c.b16 %v4033, %v4023
    %v4894 = vpack.c.b16 %v4034, %v4024
    %v4895 = vpack.c.b16 %v4035, %v4025
    %v4896 = vpack.c.b16 %v4036, %v4026
    %v4897 = vpack.c.b16 %v4037, %v4027
    %v4898 = vpack.c.b16 %v4048, %v4038
    %v4899 = vpack.c.b16 %v4049, %v4039
    %v4900 = vpack.c.b16 %v4050, %v4040
    %v4901 = vpack.c.b16 %v4051, %v4041
    %v4902 = vpack.c.b16 %v4052, %v4042
    %v4903 = vpack.c.b16 %v4053, %v4043
    %v4904 = vpack.c.b16 %v4054, %v4044
    %v4905 = vpack.c.b16 %v4055, %v4045
    %v4906 = vpack.c.b16 %v4056, %v4046
    %v4907 = vpack.c.b16 %v4057, %v4047
    %v4908 = vpack.c.b16 %v4068, %v4058
    %v4909 = vpack.c.b16 %v4069, %v4059
    %v4910 = vpack.c.b16 %v4070, %v4060
    %v4911 = vpack.c.b16 %v4071, %v4061
    %v4912 = vpack.c.b16 %v4072, %v4062
    %v4913 = vpack.c.b16 %v4073, %v4063
    %v4914 = vpack.c.b16 %v4074, %v4064
    %v4915 = vpack.c.b16 %v4075, %v4065
    %v4916 = vpack.c.b16 %v4076, %v4066
    %v4917 = vpack.c.b16 %v4077, %v4067
    %v4918 = vpack.c.b16 %v4088, %v4078
    %v4919 = vpack.c.b16 %v4089, %v4079
    %v4920 = vpack.c.b16 %v4090, %v4080
    %v4921 = vpack.c.b16 %v4091, %v4081
    %v4922 = vpack.c.b16 %v4092, %v4082
    %v4923 = vpack.c.b16 %v4093, %v4083
    %v4924 = vpack.c.b16 %v4094, %v4084
    %v4925 = vpack.c.b16 %v4095, %v4085
    %v4926 = vpack.c.b16 %v4096, %v4086
    %v4927 = vpack.c.b16 %v4097, %v4087
    %v4928 = vpack.c.b16 %v4108, %v4098
    %v4929 = vpack.c.b16 %v4109, %v4099
    %v4930 = vpack.c.b16 %v4110, %v4100
    %v4931 = vpack.c.b16 %v4111, %v4101
    %v4932 = vpack.c.b16 %v4112, %v4102
    %v4933 = vpack.c.b16 %v4113, %v4103
    %v4934 = vpack.c.b16 %v4114, %v4104
    %v4935 = vpack.c.b16 %v4115, %v4105
    %v4936 = vpack.c.b16 %v4116, %v4106
    %v4937 = vpack.c.b16 %v4117, %v4107
    %v4938 = vpack.c.b16 %v4128, %v4118
    %v4939 = vpack.c.b16 %v4129, %v4119
    %v4940 = vpack.c.b16 %v4130, %v4120
    %v4941 = vpack.c.b16 %v4131, %v4121
    %v4942 = vpack.c.b16 %v4132, %v4122
    %v4943 = vpack.c.b16 %v4133, %v4123
    %v4944 = vpack.c.b16 %v4134, %v4124
    %v4945 = vpack.c.b16 %v4135, %v4125
    %v4946 = vpack.c.b16 %v4136, %v4126
    %v4947 = vpack.c.b16 %v4137, %v4127
    %v4948 = vpack.c.b16 %v4148, %v4138
    %v4949 = vpack.c.b16 %v4149, %v4139
    %v4950 = vpack.c.b16 %v4150, %v4140
    %v4951 = vpack.c.b16 %v4151, %v4141
    %v4952 = vpack.c.b16 %v4152, %v4142
    %v4953 = vpack.c.b16 %v4153, %v4143
    %v4954 = vpack.c.b16 %v4154, %v4144
    %v4955 = vpack.c.b16 %v4155, %v4145
    %v4956 = vpack.c.b16 %v4156, %v4146
    %v4957 = vpack.c.b16 %v4157, %v4147
    %5758 = vmatprep.subr.bf16.mxu0 %v4229
    %5759 = vmatpush1.bf16.msra.mxu0 %v4228
    %5760 = vmatprep.subr.bf16.mxu0 %v4219
    %5761 = vmatpush1.bf16.msra.mxu0 %v4218
    %5762 = vmatprep.subr.bf16.mxu0 %v4209
    %5763 = vmatpush1.bf16.msra.mxu0 %v4208
    %5764 = vmatprep.subr.bf16.mxu0 %v4199
    %5765 = vmatpush1.bf16.msra.mxu0 %v4198
    %5766 = vmatprep.subr.bf16.mxu0 %v4189
    %5767 = vmatpush1.bf16.msra.mxu0 %v4188
    %5768 = vmatprep.subr.bf16.mxu0 %v4179
    %5769 = vmatpush1.bf16.msra.mxu0 %v4178
    %5770 = vmatprep.subr.bf16.mxu0 %v4169
    %5771 = vmatpush1.bf16.msra.mxu0 %v4168
    %5772 = vmatprep.subr.bf16.mxu0 %v4159
    %5773 = vmatpush1.bf16.msra.mxu0 %v4158
    %5774 = vmatprep.subr.bf16.mxu0 %v4309
    %5775 = vmatpush2.bf16.msra.mxu0 %v4308
    %5776 = vmatprep.subr.bf16.mxu0 %v4299
    %5777 = vmatpush2.bf16.msra.mxu0 %v4298
    %5778 = vmatprep.subr.bf16.mxu0 %v4289
    %5779 = vmatpush2.bf16.msra.mxu0 %v4288
    %5780 = vmatprep.subr.bf16.mxu0 %v4279
    %5781 = vmatpush2.bf16.msra.mxu0 %v4278
    %5782 = vmatprep.subr.bf16.mxu0 %v4269
    %5783 = vmatpush2.bf16.msra.mxu0 %v4268
    %5784 = vmatprep.subr.bf16.mxu0 %v4259
    %5785 = vmatpush2.bf16.msra.mxu0 %v4258
    %5786 = vmatprep.subr.bf16.mxu0 %v4249
    %5787 = vmatpush2.bf16.msra.mxu0 %v4248
    %5788 = vmatprep.subr.bf16.mxu0 %v4239
    %5789 = vmatpush2.bf16.msra.mxu0 %v4238
    %5790 = vmatprep.mubr.bf16.mxu0 %v895
    %5791 = vmatmul.mubr.bf16.gmra.mxu0 %v894
    %v5792 = vpop.f32.mrf.mxu0
    %v5793 = vadd.f32 %v1711, %v5792
    %v5794 = vpop.f32.mrf.mxu0
    %v5795 = vadd.f32 %v1715, %v5794
    %v5796 = vpop.f32.mrf.mxu0
    %v5797 = vadd.f32 %v1711, %v5796
    %v5798 = vpop.f32.mrf.mxu0
    %v5799 = vadd.f32 %v1715, %v5798
    %5800 = vdwg.mxu0
    %5801 = vmatprep.subr.bf16.mxu0 %v4389
    %5802 = vmatpush1.bf16.msra.mxu0 %v4388
    %5803 = vmatprep.subr.bf16.mxu0 %v4379
    %5804 = vmatpush1.bf16.msra.mxu0 %v4378
    %5805 = vmatprep.subr.bf16.mxu0 %v4369
    %5806 = vmatpush1.bf16.msra.mxu0 %v4368
    %5807 = vmatprep.subr.bf16.mxu0 %v4359
    %5808 = vmatpush1.bf16.msra.mxu0 %v4358
    %5809 = vmatprep.subr.bf16.mxu0 %v4349
    %5810 = vmatpush1.bf16.msra.mxu0 %v4348
    %5811 = vmatprep.subr.bf16.mxu0 %v4339
    %5812 = vmatpush1.bf16.msra.mxu0 %v4338
    %5813 = vmatprep.subr.bf16.mxu0 %v4329
    %5814 = vmatpush1.bf16.msra.mxu0 %v4328
    %5815 = vmatprep.subr.bf16.mxu0 %v4319
    %5816 = vmatpush1.bf16.msra.mxu0 %v4318
    %5817 = vmatprep.subr.bf16.mxu0 %v4469
    %5818 = vmatpush2.bf16.msra.mxu0 %v4468
    %5819 = vmatprep.subr.bf16.mxu0 %v4459
    %5820 = vmatpush2.bf16.msra.mxu0 %v4458
    %5821 = vmatprep.subr.bf16.mxu0 %v4449
    %5822 = vmatpush2.bf16.msra.mxu0 %v4448
    %5823 = vmatprep.subr.bf16.mxu0 %v4439
    %5824 = vmatpush2.bf16.msra.mxu0 %v4438
    %5825 = vmatprep.subr.bf16.mxu0 %v4429
    %5826 = vmatpush2.bf16.msra.mxu0 %v4428
    %5827 = vmatprep.subr.bf16.mxu0 %v4419
    %5828 = vmatpush2.bf16.msra.mxu0 %v4418
    %5829 = vmatprep.subr.bf16.mxu0 %v4409
    %5830 = vmatpush2.bf16.msra.mxu0 %v4408
    %5831 = vmatprep.subr.bf16.mxu0 %v4399
    %5832 = vmatpush2.bf16.msra.mxu0 %v4398
    %5833 = vmatprep.mubr.bf16.mxu0 %v897
    %5834 = vmatmul.mubr.bf16.gmra.mxu0 %v896
    %v5835 = vpop.f32.mrf.mxu0
    %v5836 = vadd.f32 %v5793, %v5835
    %v5837 = vpop.f32.mrf.mxu0
    %v5838 = vadd.f32 %v5795, %v5837
    %v5839 = vpop.f32.mrf.mxu0
    %v5840 = vadd.f32 %v5797, %v5839
    %v5841 = vpop.f32.mrf.mxu0
    %v5842 = vadd.f32 %v5799, %v5841
    %5843 = vdwg.mxu0
    %5844 = vmatprep.subr.bf16.mxu0 %v4549
    %5845 = vmatpush1.bf16.msra.mxu0 %v4548
    %5846 = vmatprep.subr.bf16.mxu0 %v4539
    %5847 = vmatpush1.bf16.msra.mxu0 %v4538
    %5848 = vmatprep.subr.bf16.mxu0 %v4529
    %5849 = vmatpush1.bf16.msra.mxu0 %v4528
    %5850 = vmatprep.subr.bf16.mxu0 %v4519
    %5851 = vmatpush1.bf16.msra.mxu0 %v4518
    %5852 = vmatprep.subr.bf16.mxu0 %v4509
    %5853 = vmatpush1.bf16.msra.mxu0 %v4508
    %5854 = vmatprep.subr.bf16.mxu0 %v4499
    %5855 = vmatpush1.bf16.msra.mxu0 %v4498
    %5856 = vmatprep.subr.bf16.mxu0 %v4489
    %5857 = vmatpush1.bf16.msra.mxu0 %v4488
    %5858 = vmatprep.subr.bf16.mxu0 %v4479
    %5859 = vmatpush1.bf16.msra.mxu0 %v4478
    %5860 = vmatprep.subr.bf16.mxu0 %v4629
    %5861 = vmatpush2.bf16.msra.mxu0 %v4628
    %5862 = vmatprep.subr.bf16.mxu0 %v4619
    %5863 = vmatpush2.bf16.msra.mxu0 %v4618
    %5864 = vmatprep.subr.bf16.mxu0 %v4609
    %5865 = vmatpush2.bf16.msra.mxu0 %v4608
    %5866 = vmatprep.subr.bf16.mxu0 %v4599
    %5867 = vmatpush2.bf16.msra.mxu0 %v4598
    %5868 = vmatprep.subr.bf16.mxu0 %v4589
    %5869 = vmatpush2.bf16.msra.mxu0 %v4588
    %5870 = vmatprep.subr.bf16.mxu0 %v4579
    %5871 = vmatpush2.bf16.msra.mxu0 %v4578
    %5872 = vmatprep.subr.bf16.mxu0 %v4569
    %5873 = vmatpush2.bf16.msra.mxu0 %v4568
    %5874 = vmatprep.subr.bf16.mxu0 %v4559
    %5875 = vmatpush2.bf16.msra.mxu0 %v4558
    %5876 = vmatprep.mubr.bf16.mxu0 %v899
    %5877 = vmatmul.mubr.bf16.gmra.mxu0 %v898
    %v5878 = vpop.f32.mrf.mxu0
    %v5879 = vadd.f32 %v5836, %v5878
    %v5880 = vpop.f32.mrf.mxu0
    %v5881 = vadd.f32 %v5838, %v5880
    %v5882 = vpop.f32.mrf.mxu0
    %v5883 = vadd.f32 %v5840, %v5882
    %v5884 = vpop.f32.mrf.mxu0
    %v5885 = vadd.f32 %v5842, %v5884
    %5886 = vdwg.mxu0
    %5887 = vmatprep.subr.bf16.mxu0 %v4709
    %5888 = vmatpush1.bf16.msra.mxu0 %v4708
    %5889 = vmatprep.subr.bf16.mxu0 %v4699
    %5890 = vmatpush1.bf16.msra.mxu0 %v4698
    %5891 = vmatprep.subr.bf16.mxu0 %v4689
    %5892 = vmatpush1.bf16.msra.mxu0 %v4688
    %5893 = vmatprep.subr.bf16.mxu0 %v4679
    %5894 = vmatpush1.bf16.msra.mxu0 %v4678
    %5895 = vmatprep.subr.bf16.mxu0 %v4669
    %5896 = vmatpush1.bf16.msra.mxu0 %v4668
    %5897 = vmatprep.subr.bf16.mxu0 %v4659
    %5898 = vmatpush1.bf16.msra.mxu0 %v4658
    %5899 = vmatprep.subr.bf16.mxu0 %v4649
    %5900 = vmatpush1.bf16.msra.mxu0 %v4648
    %5901 = vmatprep.subr.bf16.mxu0 %v4639
    %5902 = vmatpush1.bf16.msra.mxu0 %v4638
    %5903 = vmatprep.subr.bf16.mxu0 %v4789
    %5904 = vmatpush2.bf16.msra.mxu0 %v4788
    %5905 = vmatprep.subr.bf16.mxu0 %v4779
    %5906 = vmatpush2.bf16.msra.mxu0 %v4778
    %5907 = vmatprep.subr.bf16.mxu0 %v4769
    %5908 = vmatpush2.bf16.msra.mxu0 %v4768
    %5909 = vmatprep.subr.bf16.mxu0 %v4759
    %5910 = vmatpush2.bf16.msra.mxu0 %v4758
    %5911 = vmatprep.subr.bf16.mxu0 %v4749
    %5912 = vmatpush2.bf16.msra.mxu0 %v4748
    %5913 = vmatprep.subr.bf16.mxu0 %v4739
    %5914 = vmatpush2.bf16.msra.mxu0 %v4738
    %5915 = vmatprep.subr.bf16.mxu0 %v4729
    %5916 = vmatpush2.bf16.msra.mxu0 %v4728
    %5917 = vmatprep.subr.bf16.mxu0 %v4719
    %5918 = vmatpush2.bf16.msra.mxu0 %v4718
    %5919 = vmatprep.mubr.bf16.mxu0 %v901
    %5920 = vmatmul.mubr.bf16.gmra.mxu0 %v900
    %v5921 = vpop.f32.mrf.mxu0
    %v5922 = vadd.f32 %v5879, %v5921
    %v5923 = vpop.f32.mrf.mxu0
    %v5924 = vadd.f32 %v5881, %v5923
    %v5925 = vpop.f32.mrf.mxu0
    %v5926 = vadd.f32 %v5883, %v5925
    %v5927 = vpop.f32.mrf.mxu0
    %v5928 = vadd.f32 %v5885, %v5927
    %5929 = vdwg.mxu0
    %5930 = vmatprep.subr.bf16.mxu0 %v4869
    %5931 = vmatpush1.bf16.msra.mxu0 %v4868
    %5932 = vmatprep.subr.bf16.mxu0 %v4859
    %5933 = vmatpush1.bf16.msra.mxu0 %v4858
    %5934 = vmatprep.subr.bf16.mxu0 %v4849
    %5935 = vmatpush1.bf16.msra.mxu0 %v4848
    %5936 = vmatprep.subr.bf16.mxu0 %v4839
    %5937 = vmatpush1.bf16.msra.mxu0 %v4838
    %5938 = vmatprep.subr.bf16.mxu0 %v4829
    %5939 = vmatpush1.bf16.msra.mxu0 %v4828
    %5940 = vmatprep.subr.bf16.mxu0 %v4819
    %5941 = vmatpush1.bf16.msra.mxu0 %v4818
    %5942 = vmatprep.subr.bf16.mxu0 %v4809
    %5943 = vmatpush1.bf16.msra.mxu0 %v4808
    %5944 = vmatprep.subr.bf16.mxu0 %v4799
    %5945 = vmatpush1.bf16.msra.mxu0 %v4798
    %5946 = vmatprep.subr.bf16.mxu0 %v4949
    %5947 = vmatpush2.bf16.msra.mxu0 %v4948
    %5948 = vmatprep.subr.bf16.mxu0 %v4939
    %5949 = vmatpush2.bf16.msra.mxu0 %v4938
    %5950 = vmatprep.subr.bf16.mxu0 %v4929
    %5951 = vmatpush2.bf16.msra.mxu0 %v4928
    %5952 = vmatprep.subr.bf16.mxu0 %v4919
    %5953 = vmatpush2.bf16.msra.mxu0 %v4918
    %5954 = vmatprep.subr.bf16.mxu0 %v4909
    %5955 = vmatpush2.bf16.msra.mxu0 %v4908
    %5956 = vmatprep.subr.bf16.mxu0 %v4899
    %5957 = vmatpush2.bf16.msra.mxu0 %v4898
    %5958 = vmatprep.subr.bf16.mxu0 %v4889
    %5959 = vmatpush2.bf16.msra.mxu0 %v4888
    %5960 = vmatprep.subr.bf16.mxu0 %v4879
    %5961 = vmatpush2.bf16.msra.mxu0 %v4878
    %5962 = vmatprep.mubr.bf16.mxu0 %v903
    %5963 = vmatmul.mubr.bf16.gmra.mxu0 %v902
    %v5964 = vpop.f32.mrf.mxu0
    %v5965 = vadd.f32 %v5922, %v5964
    %v5966 = vpop.f32.mrf.mxu0
    %v5967 = vadd.f32 %v5924, %v5966
    %v5968 = vpop.f32.mrf.mxu0
    %v5969 = vadd.f32 %v5926, %v5968
    %v5970 = vpop.f32.mrf.mxu0
    %v5971 = vadd.f32 %v5928, %v5970
    %5972 = vdwg.mxu0
    %5973 = vmatprep.subr.bf16.mxu0 %v4231
    %5974 = vmatpush1.bf16.msra.mxu0 %v4230
    %5975 = vmatprep.subr.bf16.mxu0 %v4221
    %5976 = vmatpush1.bf16.msra.mxu0 %v4220
    %5977 = vmatprep.subr.bf16.mxu0 %v4211
    %5978 = vmatpush1.bf16.msra.mxu0 %v4210
    %5979 = vmatprep.subr.bf16.mxu0 %v4201
    %5980 = vmatpush1.bf16.msra.mxu0 %v4200
    %5981 = vmatprep.subr.bf16.mxu0 %v4191
    %5982 = vmatpush1.bf16.msra.mxu0 %v4190
    %5983 = vmatprep.subr.bf16.mxu0 %v4181
    %5984 = vmatpush1.bf16.msra.mxu0 %v4180
    %5985 = vmatprep.subr.bf16.mxu0 %v4171
    %5986 = vmatpush1.bf16.msra.mxu0 %v4170
    %5987 = vmatprep.subr.bf16.mxu0 %v4161
    %5988 = vmatpush1.bf16.msra.mxu0 %v4160
    %5989 = vmatprep.subr.bf16.mxu0 %v4311
    %5990 = vmatpush2.bf16.msra.mxu0 %v4310
    %5991 = vmatprep.subr.bf16.mxu0 %v4301
    %5992 = vmatpush2.bf16.msra.mxu0 %v4300
    %5993 = vmatprep.subr.bf16.mxu0 %v4291
    %5994 = vmatpush2.bf16.msra.mxu0 %v4290
    %5995 = vmatprep.subr.bf16.mxu0 %v4281
    %5996 = vmatpush2.bf16.msra.mxu0 %v4280
    %5997 = vmatprep.subr.bf16.mxu0 %v4271
    %5998 = vmatpush2.bf16.msra.mxu0 %v4270
    %5999 = vmatprep.subr.bf16.mxu0 %v4261
    %6000 = vmatpush2.bf16.msra.mxu0 %v4260
    %6001 = vmatprep.subr.bf16.mxu0 %v4251
    %6002 = vmatpush2.bf16.msra.mxu0 %v4250
    %6003 = vmatprep.subr.bf16.mxu0 %v4241
    %6004 = vmatpush2.bf16.msra.mxu0 %v4240
    %6005 = vmatprep.mubr.bf16.mxu0 %v895
    %6006 = vmatmul.mubr.bf16.gmra.mxu0 %v894
    %v6007 = vpop.f32.mrf.mxu0
    %v6008 = vadd.f32 %v1719, %v6007
    %v6009 = vpop.f32.mrf.mxu0
    %v6010 = vadd.f32 %v1723, %v6009
    %v6011 = vpop.f32.mrf.mxu0
    %v6012 = vadd.f32 %v1719, %v6011
    %v6013 = vpop.f32.mrf.mxu0
    %v6014 = vadd.f32 %v1723, %v6013
    %6015 = vdwg.mxu0
    %6016 = vmatprep.subr.bf16.mxu0 %v4391
    %6017 = vmatpush1.bf16.msra.mxu0 %v4390
    %6018 = vmatprep.subr.bf16.mxu0 %v4381
    %6019 = vmatpush1.bf16.msra.mxu0 %v4380
    %6020 = vmatprep.subr.bf16.mxu0 %v4371
    %6021 = vmatpush1.bf16.msra.mxu0 %v4370
    %6022 = vmatprep.subr.bf16.mxu0 %v4361
    %6023 = vmatpush1.bf16.msra.mxu0 %v4360
    %6024 = vmatprep.subr.bf16.mxu0 %v4351
    %6025 = vmatpush1.bf16.msra.mxu0 %v4350
    %6026 = vmatprep.subr.bf16.mxu0 %v4341
    %6027 = vmatpush1.bf16.msra.mxu0 %v4340
    %6028 = vmatprep.subr.bf16.mxu0 %v4331
    %6029 = vmatpush1.bf16.msra.mxu0 %v4330
    %6030 = vmatprep.subr.bf16.mxu0 %v4321
    %6031 = vmatpush1.bf16.msra.mxu0 %v4320
    %6032 = vmatprep.subr.bf16.mxu0 %v4471
    %6033 = vmatpush2.bf16.msra.mxu0 %v4470
    %6034 = vmatprep.subr.bf16.mxu0 %v4461
    %6035 = vmatpush2.bf16.msra.mxu0 %v4460
    %6036 = vmatprep.subr.bf16.mxu0 %v4451
    %6037 = vmatpush2.bf16.msra.mxu0 %v4450
    %6038 = vmatprep.subr.bf16.mxu0 %v4441
    %6039 = vmatpush2.bf16.msra.mxu0 %v4440
    %6040 = vmatprep.subr.bf16.mxu0 %v4431
    %6041 = vmatpush2.bf16.msra.mxu0 %v4430
    %6042 = vmatprep.subr.bf16.mxu0 %v4421
    %6043 = vmatpush2.bf16.msra.mxu0 %v4420
    %6044 = vmatprep.subr.bf16.mxu0 %v4411
    %6045 = vmatpush2.bf16.msra.mxu0 %v4410
    %6046 = vmatprep.subr.bf16.mxu0 %v4401
    %6047 = vmatpush2.bf16.msra.mxu0 %v4400
    %6048 = vmatprep.mubr.bf16.mxu0 %v897
    %6049 = vmatmul.mubr.bf16.gmra.mxu0 %v896
    %v6050 = vpop.f32.mrf.mxu0
    %v6051 = vadd.f32 %v6008, %v6050
    %v6052 = vpop.f32.mrf.mxu0
    %v6053 = vadd.f32 %v6010, %v6052
    %v6054 = vpop.f32.mrf.mxu0
    %v6055 = vadd.f32 %v6012, %v6054
    %v6056 = vpop.f32.mrf.mxu0
    %v6057 = vadd.f32 %v6014, %v6056
    %6058 = vdwg.mxu0
    %6059 = vmatprep.subr.bf16.mxu0 %v4551
    %6060 = vmatpush1.bf16.msra.mxu0 %v4550
    %6061 = vmatprep.subr.bf16.mxu0 %v4541
    %6062 = vmatpush1.bf16.msra.mxu0 %v4540
    %6063 = vmatprep.subr.bf16.mxu0 %v4531
    %6064 = vmatpush1.bf16.msra.mxu0 %v4530
    %6065 = vmatprep.subr.bf16.mxu0 %v4521
    %6066 = vmatpush1.bf16.msra.mxu0 %v4520
    %6067 = vmatprep.subr.bf16.mxu0 %v4511
    %6068 = vmatpush1.bf16.msra.mxu0 %v4510
    %6069 = vmatprep.subr.bf16.mxu0 %v4501
    %6070 = vmatpush1.bf16.msra.mxu0 %v4500
    %6071 = vmatprep.subr.bf16.mxu0 %v4491
    %6072 = vmatpush1.bf16.msra.mxu0 %v4490
    %6073 = vmatprep.subr.bf16.mxu0 %v4481
    %6074 = vmatpush1.bf16.msra.mxu0 %v4480
    %6075 = vmatprep.subr.bf16.mxu0 %v4631
    %6076 = vmatpush2.bf16.msra.mxu0 %v4630
    %6077 = vmatprep.subr.bf16.mxu0 %v4621
    %6078 = vmatpush2.bf16.msra.mxu0 %v4620
    %6079 = vmatprep.subr.bf16.mxu0 %v4611
    %6080 = vmatpush2.bf16.msra.mxu0 %v4610
    %6081 = vmatprep.subr.bf16.mxu0 %v4601
    %6082 = vmatpush2.bf16.msra.mxu0 %v4600
    %6083 = vmatprep.subr.bf16.mxu0 %v4591
    %6084 = vmatpush2.bf16.msra.mxu0 %v4590
    %6085 = vmatprep.subr.bf16.mxu0 %v4581
    %6086 = vmatpush2.bf16.msra.mxu0 %v4580
    %6087 = vmatprep.subr.bf16.mxu0 %v4571
    %6088 = vmatpush2.bf16.msra.mxu0 %v4570
    %6089 = vmatprep.subr.bf16.mxu0 %v4561
    %6090 = vmatpush2.bf16.msra.mxu0 %v4560
    %6091 = vmatprep.mubr.bf16.mxu0 %v899
    %6092 = vmatmul.mubr.bf16.gmra.mxu0 %v898
    %v6093 = vpop.f32.mrf.mxu0
    %v6094 = vadd.f32 %v6051, %v6093
    %v6095 = vpop.f32.mrf.mxu0
    %v6096 = vadd.f32 %v6053, %v6095
    %v6097 = vpop.f32.mrf.mxu0
    %v6098 = vadd.f32 %v6055, %v6097
    %v6099 = vpop.f32.mrf.mxu0
    %v6100 = vadd.f32 %v6057, %v6099
    %6101 = vdwg.mxu0
    %6102 = vmatprep.subr.bf16.mxu0 %v4711
    %6103 = vmatpush1.bf16.msra.mxu0 %v4710
    %6104 = vmatprep.subr.bf16.mxu0 %v4701
    %6105 = vmatpush1.bf16.msra.mxu0 %v4700
    %6106 = vmatprep.subr.bf16.mxu0 %v4691
    %6107 = vmatpush1.bf16.msra.mxu0 %v4690
    %6108 = vmatprep.subr.bf16.mxu0 %v4681
    %6109 = vmatpush1.bf16.msra.mxu0 %v4680
    %6110 = vmatprep.subr.bf16.mxu0 %v4671
    %6111 = vmatpush1.bf16.msra.mxu0 %v4670
    %6112 = vmatprep.subr.bf16.mxu0 %v4661
    %6113 = vmatpush1.bf16.msra.mxu0 %v4660
    %6114 = vmatprep.subr.bf16.mxu0 %v4651
    %6115 = vmatpush1.bf16.msra.mxu0 %v4650
    %6116 = vmatprep.subr.bf16.mxu0 %v4641
    %6117 = vmatpush1.bf16.msra.mxu0 %v4640
    %6118 = vmatprep.subr.bf16.mxu0 %v4791
    %6119 = vmatpush2.bf16.msra.mxu0 %v4790
    %6120 = vmatprep.subr.bf16.mxu0 %v4781
    %6121 = vmatpush2.bf16.msra.mxu0 %v4780
    %6122 = vmatprep.subr.bf16.mxu0 %v4771
    %6123 = vmatpush2.bf16.msra.mxu0 %v4770
    %6124 = vmatprep.subr.bf16.mxu0 %v4761
    %6125 = vmatpush2.bf16.msra.mxu0 %v4760
    %6126 = vmatprep.subr.bf16.mxu0 %v4751
    %6127 = vmatpush2.bf16.msra.mxu0 %v4750
    %6128 = vmatprep.subr.bf16.mxu0 %v4741
    %6129 = vmatpush2.bf16.msra.mxu0 %v4740
    %6130 = vmatprep.subr.bf16.mxu0 %v4731
    %6131 = vmatpush2.bf16.msra.mxu0 %v4730
    %6132 = vmatprep.subr.bf16.mxu0 %v4721
    %6133 = vmatpush2.bf16.msra.mxu0 %v4720
    %6134 = vmatprep.mubr.bf16.mxu0 %v901
    %6135 = vmatmul.mubr.bf16.gmra.mxu0 %v900
    %v6136 = vpop.f32.mrf.mxu0
    %v6137 = vadd.f32 %v6094, %v6136
    %v6138 = vpop.f32.mrf.mxu0
    %v6139 = vadd.f32 %v6096, %v6138
    %v6140 = vpop.f32.mrf.mxu0
    %v6141 = vadd.f32 %v6098, %v6140
    %v6142 = vpop.f32.mrf.mxu0
    %v6143 = vadd.f32 %v6100, %v6142
    %6144 = vdwg.mxu0
    %6145 = vmatprep.subr.bf16.mxu0 %v4871
    %6146 = vmatpush1.bf16.msra.mxu0 %v4870
    %6147 = vmatprep.subr.bf16.mxu0 %v4861
    %6148 = vmatpush1.bf16.msra.mxu0 %v4860
    %6149 = vmatprep.subr.bf16.mxu0 %v4851
    %6150 = vmatpush1.bf16.msra.mxu0 %v4850
    %6151 = vmatprep.subr.bf16.mxu0 %v4841
    %6152 = vmatpush1.bf16.msra.mxu0 %v4840
    %6153 = vmatprep.subr.bf16.mxu0 %v4831
    %6154 = vmatpush1.bf16.msra.mxu0 %v4830
    %6155 = vmatprep.subr.bf16.mxu0 %v4821
    %6156 = vmatpush1.bf16.msra.mxu0 %v4820
    %6157 = vmatprep.subr.bf16.mxu0 %v4811
    %6158 = vmatpush1.bf16.msra.mxu0 %v4810
    %6159 = vmatprep.subr.bf16.mxu0 %v4801
    %6160 = vmatpush1.bf16.msra.mxu0 %v4800
    %6161 = vmatprep.subr.bf16.mxu0 %v4951
    %6162 = vmatpush2.bf16.msra.mxu0 %v4950
    %6163 = vmatprep.subr.bf16.mxu0 %v4941
    %6164 = vmatpush2.bf16.msra.mxu0 %v4940
    %6165 = vmatprep.subr.bf16.mxu0 %v4931
    %6166 = vmatpush2.bf16.msra.mxu0 %v4930
    %6167 = vmatprep.subr.bf16.mxu0 %v4921
    %6168 = vmatpush2.bf16.msra.mxu0 %v4920
    %6169 = vmatprep.subr.bf16.mxu0 %v4911
    %6170 = vmatpush2.bf16.msra.mxu0 %v4910
    %6171 = vmatprep.subr.bf16.mxu0 %v4901
    %6172 = vmatpush2.bf16.msra.mxu0 %v4900
    %6173 = vmatprep.subr.bf16.mxu0 %v4891
    %6174 = vmatpush2.bf16.msra.mxu0 %v4890
    %6175 = vmatprep.subr.bf16.mxu0 %v4881
    %6176 = vmatpush2.bf16.msra.mxu0 %v4880
    %6177 = vmatprep.mubr.bf16.mxu0 %v903
    %6178 = vmatmul.mubr.bf16.gmra.mxu0 %v902
    %v6179 = vpop.f32.mrf.mxu0
    %v6180 = vadd.f32 %v6137, %v6179
    %v6181 = vpop.f32.mrf.mxu0
    %v6182 = vadd.f32 %v6139, %v6181
    %v6183 = vpop.f32.mrf.mxu0
    %v6184 = vadd.f32 %v6141, %v6183
    %v6185 = vpop.f32.mrf.mxu0
    %v6186 = vadd.f32 %v6143, %v6185
    %6187 = vdwg.mxu0
    %6188 = vmatprep.subr.bf16.mxu0 %v4233
    %6189 = vmatpush1.bf16.msra.mxu0 %v4232
    %6190 = vmatprep.subr.bf16.mxu0 %v4223
    %6191 = vmatpush1.bf16.msra.mxu0 %v4222
    %6192 = vmatprep.subr.bf16.mxu0 %v4213
    %6193 = vmatpush1.bf16.msra.mxu0 %v4212
    %6194 = vmatprep.subr.bf16.mxu0 %v4203
    %6195 = vmatpush1.bf16.msra.mxu0 %v4202
    %6196 = vmatprep.subr.bf16.mxu0 %v4193
    %6197 = vmatpush1.bf16.msra.mxu0 %v4192
    %6198 = vmatprep.subr.bf16.mxu0 %v4183
    %6199 = vmatpush1.bf16.msra.mxu0 %v4182
    %6200 = vmatprep.subr.bf16.mxu0 %v4173
    %6201 = vmatpush1.bf16.msra.mxu0 %v4172
    %6202 = vmatprep.subr.bf16.mxu0 %v4163
    %6203 = vmatpush1.bf16.msra.mxu0 %v4162
    %6204 = vmatprep.subr.bf16.mxu0 %v4313
    %6205 = vmatpush2.bf16.msra.mxu0 %v4312
    %6206 = vmatprep.subr.bf16.mxu0 %v4303
    %6207 = vmatpush2.bf16.msra.mxu0 %v4302
    %6208 = vmatprep.subr.bf16.mxu0 %v4293
    %6209 = vmatpush2.bf16.msra.mxu0 %v4292
    %6210 = vmatprep.subr.bf16.mxu0 %v4283
    %6211 = vmatpush2.bf16.msra.mxu0 %v4282
    %6212 = vmatprep.subr.bf16.mxu0 %v4273
    %6213 = vmatpush2.bf16.msra.mxu0 %v4272
    %6214 = vmatprep.subr.bf16.mxu0 %v4263
    %6215 = vmatpush2.bf16.msra.mxu0 %v4262
    %6216 = vmatprep.subr.bf16.mxu0 %v4253
    %6217 = vmatpush2.bf16.msra.mxu0 %v4252
    %6218 = vmatprep.subr.bf16.mxu0 %v4243
    %6219 = vmatpush2.bf16.msra.mxu0 %v4242
    %6220 = vmatprep.mubr.bf16.mxu0 %v895
    %6221 = vmatmul.mubr.bf16.gmra.mxu0 %v894
    %v6222 = vpop.f32.mrf.mxu0
    %v6223 = vadd.f32 %v1727, %v6222
    %v6224 = vpop.f32.mrf.mxu0
    %v6225 = vadd.f32 %v1731, %v6224
    %v6226 = vpop.f32.mrf.mxu0
    %v6227 = vadd.f32 %v1727, %v6226
    %v6228 = vpop.f32.mrf.mxu0
    %v6229 = vadd.f32 %v1731, %v6228
    %6230 = vdwg.mxu0
    %6231 = vmatprep.subr.bf16.mxu0 %v4393
    %6232 = vmatpush1.bf16.msra.mxu0 %v4392
    %6233 = vmatprep.subr.bf16.mxu0 %v4383
    %6234 = vmatpush1.bf16.msra.mxu0 %v4382
    %6235 = vmatprep.subr.bf16.mxu0 %v4373
    %6236 = vmatpush1.bf16.msra.mxu0 %v4372
    %6237 = vmatprep.subr.bf16.mxu0 %v4363
    %6238 = vmatpush1.bf16.msra.mxu0 %v4362
    %6239 = vmatprep.subr.bf16.mxu0 %v4353
    %6240 = vmatpush1.bf16.msra.mxu0 %v4352
    %6241 = vmatprep.subr.bf16.mxu0 %v4343
    %6242 = vmatpush1.bf16.msra.mxu0 %v4342
    %6243 = vmatprep.subr.bf16.mxu0 %v4333
    %6244 = vmatpush1.bf16.msra.mxu0 %v4332
    %6245 = vmatprep.subr.bf16.mxu0 %v4323
    %6246 = vmatpush1.bf16.msra.mxu0 %v4322
    %6247 = vmatprep.subr.bf16.mxu0 %v4473
    %6248 = vmatpush2.bf16.msra.mxu0 %v4472
    %6249 = vmatprep.subr.bf16.mxu0 %v4463
    %6250 = vmatpush2.bf16.msra.mxu0 %v4462
    %6251 = vmatprep.subr.bf16.mxu0 %v4453
    %6252 = vmatpush2.bf16.msra.mxu0 %v4452
    %6253 = vmatprep.subr.bf16.mxu0 %v4443
    %6254 = vmatpush2.bf16.msra.mxu0 %v4442
    %6255 = vmatprep.subr.bf16.mxu0 %v4433
    %6256 = vmatpush2.bf16.msra.mxu0 %v4432
    %6257 = vmatprep.subr.bf16.mxu0 %v4423
    %6258 = vmatpush2.bf16.msra.mxu0 %v4422
    %6259 = vmatprep.subr.bf16.mxu0 %v4413
    %6260 = vmatpush2.bf16.msra.mxu0 %v4412
    %6261 = vmatprep.subr.bf16.mxu0 %v4403
    %6262 = vmatpush2.bf16.msra.mxu0 %v4402
    %6263 = vmatprep.mubr.bf16.mxu0 %v897
    %6264 = vmatmul.mubr.bf16.gmra.mxu0 %v896
    %v6265 = vpop.f32.mrf.mxu0
    %v6266 = vadd.f32 %v6223, %v6265
    %v6267 = vpop.f32.mrf.mxu0
    %v6268 = vadd.f32 %v6225, %v6267
    %v6269 = vpop.f32.mrf.mxu0
    %v6270 = vadd.f32 %v6227, %v6269
    %v6271 = vpop.f32.mrf.mxu0
    %v6272 = vadd.f32 %v6229, %v6271
    %6273 = vdwg.mxu0
    %6274 = vmatprep.subr.bf16.mxu0 %v4553
    %6275 = vmatpush1.bf16.msra.mxu0 %v4552
    %6276 = vmatprep.subr.bf16.mxu0 %v4543
    %6277 = vmatpush1.bf16.msra.mxu0 %v4542
    %6278 = vmatprep.subr.bf16.mxu0 %v4533
    %6279 = vmatpush1.bf16.msra.mxu0 %v4532
    %6280 = vmatprep.subr.bf16.mxu0 %v4523
    %6281 = vmatpush1.bf16.msra.mxu0 %v4522
    %6282 = vmatprep.subr.bf16.mxu0 %v4513
    %6283 = vmatpush1.bf16.msra.mxu0 %v4512
    %6284 = vmatprep.subr.bf16.mxu0 %v4503
    %6285 = vmatpush1.bf16.msra.mxu0 %v4502
    %6286 = vmatprep.subr.bf16.mxu0 %v4493
    %6287 = vmatpush1.bf16.msra.mxu0 %v4492
    %6288 = vmatprep.subr.bf16.mxu0 %v4483
    %6289 = vmatpush1.bf16.msra.mxu0 %v4482
    %6290 = vmatprep.subr.bf16.mxu0 %v4633
    %6291 = vmatpush2.bf16.msra.mxu0 %v4632
    %6292 = vmatprep.subr.bf16.mxu0 %v4623
    %6293 = vmatpush2.bf16.msra.mxu0 %v4622
    %6294 = vmatprep.subr.bf16.mxu0 %v4613
    %6295 = vmatpush2.bf16.msra.mxu0 %v4612
    %6296 = vmatprep.subr.bf16.mxu0 %v4603
    %6297 = vmatpush2.bf16.msra.mxu0 %v4602
    %6298 = vmatprep.subr.bf16.mxu0 %v4593
    %6299 = vmatpush2.bf16.msra.mxu0 %v4592
    %6300 = vmatprep.subr.bf16.mxu0 %v4583
    %6301 = vmatpush2.bf16.msra.mxu0 %v4582
    %6302 = vmatprep.subr.bf16.mxu0 %v4573
    %6303 = vmatpush2.bf16.msra.mxu0 %v4572
    %6304 = vmatprep.subr.bf16.mxu0 %v4563
    %6305 = vmatpush2.bf16.msra.mxu0 %v4562
    %6306 = vmatprep.mubr.bf16.mxu0 %v899
    %6307 = vmatmul.mubr.bf16.gmra.mxu0 %v898
    %v6308 = vpop.f32.mrf.mxu0
    %v6309 = vadd.f32 %v6266, %v6308
    %v6310 = vpop.f32.mrf.mxu0
    %v6311 = vadd.f32 %v6268, %v6310
    %v6312 = vpop.f32.mrf.mxu0
    %v6313 = vadd.f32 %v6270, %v6312
    %v6314 = vpop.f32.mrf.mxu0
    %v6315 = vadd.f32 %v6272, %v6314
    %6316 = vdwg.mxu0
    %6317 = vmatprep.subr.bf16.mxu0 %v4713
    %6318 = vmatpush1.bf16.msra.mxu0 %v4712
    %6319 = vmatprep.subr.bf16.mxu0 %v4703
    %6320 = vmatpush1.bf16.msra.mxu0 %v4702
    %6321 = vmatprep.subr.bf16.mxu0 %v4693
    %6322 = vmatpush1.bf16.msra.mxu0 %v4692
    %6323 = vmatprep.subr.bf16.mxu0 %v4683
    %6324 = vmatpush1.bf16.msra.mxu0 %v4682
    %6325 = vmatprep.subr.bf16.mxu0 %v4673
    %6326 = vmatpush1.bf16.msra.mxu0 %v4672
    %6327 = vmatprep.subr.bf16.mxu0 %v4663
    %6328 = vmatpush1.bf16.msra.mxu0 %v4662
    %6329 = vmatprep.subr.bf16.mxu0 %v4653
    %6330 = vmatpush1.bf16.msra.mxu0 %v4652
    %6331 = vmatprep.subr.bf16.mxu0 %v4643
    %6332 = vmatpush1.bf16.msra.mxu0 %v4642
    %6333 = vmatprep.subr.bf16.mxu0 %v4793
    %6334 = vmatpush2.bf16.msra.mxu0 %v4792
    %6335 = vmatprep.subr.bf16.mxu0 %v4783
    %6336 = vmatpush2.bf16.msra.mxu0 %v4782
    %6337 = vmatprep.subr.bf16.mxu0 %v4773
    %6338 = vmatpush2.bf16.msra.mxu0 %v4772
    %6339 = vmatprep.subr.bf16.mxu0 %v4763
    %6340 = vmatpush2.bf16.msra.mxu0 %v4762
    %6341 = vmatprep.subr.bf16.mxu0 %v4753
    %6342 = vmatpush2.bf16.msra.mxu0 %v4752
    %6343 = vmatprep.subr.bf16.mxu0 %v4743
    %6344 = vmatpush2.bf16.msra.mxu0 %v4742
    %6345 = vmatprep.subr.bf16.mxu0 %v4733
    %6346 = vmatpush2.bf16.msra.mxu0 %v4732
    %6347 = vmatprep.subr.bf16.mxu0 %v4723
    %6348 = vmatpush2.bf16.msra.mxu0 %v4722
    %6349 = vmatprep.mubr.bf16.mxu0 %v901
    %6350 = vmatmul.mubr.bf16.gmra.mxu0 %v900
    %v6351 = vpop.f32.mrf.mxu0
    %v6352 = vadd.f32 %v6309, %v6351
    %v6353 = vpop.f32.mrf.mxu0
    %v6354 = vadd.f32 %v6311, %v6353
    %v6355 = vpop.f32.mrf.mxu0
    %v6356 = vadd.f32 %v6313, %v6355
    %v6357 = vpop.f32.mrf.mxu0
    %v6358 = vadd.f32 %v6315, %v6357
    %6359 = vdwg.mxu0
    %6360 = vmatprep.subr.bf16.mxu0 %v4873
    %6361 = vmatpush1.bf16.msra.mxu0 %v4872
    %6362 = vmatprep.subr.bf16.mxu0 %v4863
    %6363 = vmatpush1.bf16.msra.mxu0 %v4862
    %6364 = vmatprep.subr.bf16.mxu0 %v4853
    %6365 = vmatpush1.bf16.msra.mxu0 %v4852
    %6366 = vmatprep.subr.bf16.mxu0 %v4843
    %6367 = vmatpush1.bf16.msra.mxu0 %v4842
    %6368 = vmatprep.subr.bf16.mxu0 %v4833
    %6369 = vmatpush1.bf16.msra.mxu0 %v4832
    %6370 = vmatprep.subr.bf16.mxu0 %v4823
    %6371 = vmatpush1.bf16.msra.mxu0 %v4822
    %6372 = vmatprep.subr.bf16.mxu0 %v4813
    %6373 = vmatpush1.bf16.msra.mxu0 %v4812
    %6374 = vmatprep.subr.bf16.mxu0 %v4803
    %6375 = vmatpush1.bf16.msra.mxu0 %v4802
    %6376 = vmatprep.subr.bf16.mxu0 %v4953
    %6377 = vmatpush2.bf16.msra.mxu0 %v4952
    %6378 = vmatprep.subr.bf16.mxu0 %v4943
    %6379 = vmatpush2.bf16.msra.mxu0 %v4942
    %6380 = vmatprep.subr.bf16.mxu0 %v4933
    %6381 = vmatpush2.bf16.msra.mxu0 %v4932
    %6382 = vmatprep.subr.bf16.mxu0 %v4923
    %6383 = vmatpush2.bf16.msra.mxu0 %v4922
    %6384 = vmatprep.subr.bf16.mxu0 %v4913
    %6385 = vmatpush2.bf16.msra.mxu0 %v4912
    %6386 = vmatprep.subr.bf16.mxu0 %v4903
    %6387 = vmatpush2.bf16.msra.mxu0 %v4902
    %6388 = vmatprep.subr.bf16.mxu0 %v4893
    %6389 = vmatpush2.bf16.msra.mxu0 %v4892
    %6390 = vmatprep.subr.bf16.mxu0 %v4883
    %6391 = vmatpush2.bf16.msra.mxu0 %v4882
    %6392 = vmatprep.mubr.bf16.mxu0 %v903
    %6393 = vmatmul.mubr.bf16.gmra.mxu0 %v902
    %v6394 = vpop.f32.mrf.mxu0
    %v6395 = vadd.f32 %v6352, %v6394
    %v6396 = vpop.f32.mrf.mxu0
    %v6397 = vadd.f32 %v6354, %v6396
    %v6398 = vpop.f32.mrf.mxu0
    %v6399 = vadd.f32 %v6356, %v6398
    %v6400 = vpop.f32.mrf.mxu0
    %v6401 = vadd.f32 %v6358, %v6400
    %6402 = vdwg.mxu0
    %6403 = vmatprep.subr.bf16.mxu0 %v4235
    %6404 = vmatpush1.bf16.msra.mxu0 %v4234
    %6405 = vmatprep.subr.bf16.mxu0 %v4225
    %6406 = vmatpush1.bf16.msra.mxu0 %v4224
    %6407 = vmatprep.subr.bf16.mxu0 %v4215
    %6408 = vmatpush1.bf16.msra.mxu0 %v4214
    %6409 = vmatprep.subr.bf16.mxu0 %v4205
    %6410 = vmatpush1.bf16.msra.mxu0 %v4204
    %6411 = vmatprep.subr.bf16.mxu0 %v4195
    %6412 = vmatpush1.bf16.msra.mxu0 %v4194
    %6413 = vmatprep.subr.bf16.mxu0 %v4185
    %6414 = vmatpush1.bf16.msra.mxu0 %v4184
    %6415 = vmatprep.subr.bf16.mxu0 %v4175
    %6416 = vmatpush1.bf16.msra.mxu0 %v4174
    %6417 = vmatprep.subr.bf16.mxu0 %v4165
    %6418 = vmatpush1.bf16.msra.mxu0 %v4164
    %6419 = vmatprep.subr.bf16.mxu0 %v4315
    %6420 = vmatpush2.bf16.msra.mxu0 %v4314
    %6421 = vmatprep.subr.bf16.mxu0 %v4305
    %6422 = vmatpush2.bf16.msra.mxu0 %v4304
    %6423 = vmatprep.subr.bf16.mxu0 %v4295
    %6424 = vmatpush2.bf16.msra.mxu0 %v4294
    %6425 = vmatprep.subr.bf16.mxu0 %v4285
    %6426 = vmatpush2.bf16.msra.mxu0 %v4284
    %6427 = vmatprep.subr.bf16.mxu0 %v4275
    %6428 = vmatpush2.bf16.msra.mxu0 %v4274
    %6429 = vmatprep.subr.bf16.mxu0 %v4265
    %6430 = vmatpush2.bf16.msra.mxu0 %v4264
    %6431 = vmatprep.subr.bf16.mxu0 %v4255
    %6432 = vmatpush2.bf16.msra.mxu0 %v4254
    %6433 = vmatprep.subr.bf16.mxu0 %v4245
    %6434 = vmatpush2.bf16.msra.mxu0 %v4244
    %6435 = vmatprep.mubr.bf16.mxu0 %v895
    %6436 = vmatmul.mubr.bf16.gmra.mxu0 %v894
    %v6437 = vpop.f32.mrf.mxu0
    %v6438 = vadd.f32 %v1735, %v6437
    %v6439 = vpop.f32.mrf.mxu0
    %v6440 = vadd.f32 %v1739, %v6439
    %v6441 = vpop.f32.mrf.mxu0
    %v6442 = vadd.f32 %v1735, %v6441
    %v6443 = vpop.f32.mrf.mxu0
    %v6444 = vadd.f32 %v1739, %v6443
    %6445 = vdwg.mxu0
    %6446 = vmatprep.subr.bf16.mxu0 %v4395
    %6447 = vmatpush1.bf16.msra.mxu0 %v4394
    %6448 = vmatprep.subr.bf16.mxu0 %v4385
    %6449 = vmatpush1.bf16.msra.mxu0 %v4384
    %6450 = vmatprep.subr.bf16.mxu0 %v4375
    %6451 = vmatpush1.bf16.msra.mxu0 %v4374
    %6452 = vmatprep.subr.bf16.mxu0 %v4365
    %6453 = vmatpush1.bf16.msra.mxu0 %v4364
    %6454 = vmatprep.subr.bf16.mxu0 %v4355
    %6455 = vmatpush1.bf16.msra.mxu0 %v4354
    %6456 = vmatprep.subr.bf16.mxu0 %v4345
    %6457 = vmatpush1.bf16.msra.mxu0 %v4344
    %6458 = vmatprep.subr.bf16.mxu0 %v4335
    %6459 = vmatpush1.bf16.msra.mxu0 %v4334
    %6460 = vmatprep.subr.bf16.mxu0 %v4325
    %6461 = vmatpush1.bf16.msra.mxu0 %v4324
    %6462 = vmatprep.subr.bf16.mxu0 %v4475
    %6463 = vmatpush2.bf16.msra.mxu0 %v4474
    %6464 = vmatprep.subr.bf16.mxu0 %v4465
    %6465 = vmatpush2.bf16.msra.mxu0 %v4464
    %6466 = vmatprep.subr.bf16.mxu0 %v4455
    %6467 = vmatpush2.bf16.msra.mxu0 %v4454
    %6468 = vmatprep.subr.bf16.mxu0 %v4445
    %6469 = vmatpush2.bf16.msra.mxu0 %v4444
    %6470 = vmatprep.subr.bf16.mxu0 %v4435
    %6471 = vmatpush2.bf16.msra.mxu0 %v4434
    %6472 = vmatprep.subr.bf16.mxu0 %v4425
    %6473 = vmatpush2.bf16.msra.mxu0 %v4424
    %6474 = vmatprep.subr.bf16.mxu0 %v4415
    %6475 = vmatpush2.bf16.msra.mxu0 %v4414
    %6476 = vmatprep.subr.bf16.mxu0 %v4405
    %6477 = vmatpush2.bf16.msra.mxu0 %v4404
    %6478 = vmatprep.mubr.bf16.mxu0 %v897
    %6479 = vmatmul.mubr.bf16.gmra.mxu0 %v896
    %v6480 = vpop.f32.mrf.mxu0
    %v6481 = vadd.f32 %v6438, %v6480
    %v6482 = vpop.f32.mrf.mxu0
    %v6483 = vadd.f32 %v6440, %v6482
    %v6484 = vpop.f32.mrf.mxu0
    %v6485 = vadd.f32 %v6442, %v6484
    %v6486 = vpop.f32.mrf.mxu0
    %v6487 = vadd.f32 %v6444, %v6486
    %6488 = vdwg.mxu0
    %6489 = vmatprep.subr.bf16.mxu0 %v4555
    %6490 = vmatpush1.bf16.msra.mxu0 %v4554
    %6491 = vmatprep.subr.bf16.mxu0 %v4545
    %6492 = vmatpush1.bf16.msra.mxu0 %v4544
    %6493 = vmatprep.subr.bf16.mxu0 %v4535
    %6494 = vmatpush1.bf16.msra.mxu0 %v4534
    %6495 = vmatprep.subr.bf16.mxu0 %v4525
    %6496 = vmatpush1.bf16.msra.mxu0 %v4524
    %6497 = vmatprep.subr.bf16.mxu0 %v4515
    %6498 = vmatpush1.bf16.msra.mxu0 %v4514
    %6499 = vmatprep.subr.bf16.mxu0 %v4505
    %6500 = vmatpush1.bf16.msra.mxu0 %v4504
    %6501 = vmatprep.subr.bf16.mxu0 %v4495
    %6502 = vmatpush1.bf16.msra.mxu0 %v4494
    %6503 = vmatprep.subr.bf16.mxu0 %v4485
    %6504 = vmatpush1.bf16.msra.mxu0 %v4484
    %6505 = vmatprep.subr.bf16.mxu0 %v4635
    %6506 = vmatpush2.bf16.msra.mxu0 %v4634
    %6507 = vmatprep.subr.bf16.mxu0 %v4625
    %6508 = vmatpush2.bf16.msra.mxu0 %v4624
    %6509 = vmatprep.subr.bf16.mxu0 %v4615
    %6510 = vmatpush2.bf16.msra.mxu0 %v4614
    %6511 = vmatprep.subr.bf16.mxu0 %v4605
    %6512 = vmatpush2.bf16.msra.mxu0 %v4604
    %6513 = vmatprep.subr.bf16.mxu0 %v4595
    %6514 = vmatpush2.bf16.msra.mxu0 %v4594
    %6515 = vmatprep.subr.bf16.mxu0 %v4585
    %6516 = vmatpush2.bf16.msra.mxu0 %v4584
    %6517 = vmatprep.subr.bf16.mxu0 %v4575
    %6518 = vmatpush2.bf16.msra.mxu0 %v4574
    %6519 = vmatprep.subr.bf16.mxu0 %v4565
    %6520 = vmatpush2.bf16.msra.mxu0 %v4564
    %6521 = vmatprep.mubr.bf16.mxu0 %v899
    %6522 = vmatmul.mubr.bf16.gmra.mxu0 %v898
    %v6523 = vpop.f32.mrf.mxu0
    %v6524 = vadd.f32 %v6481, %v6523
    %v6525 = vpop.f32.mrf.mxu0
    %v6526 = vadd.f32 %v6483, %v6525
    %v6527 = vpop.f32.mrf.mxu0
    %v6528 = vadd.f32 %v6485, %v6527
    %v6529 = vpop.f32.mrf.mxu0
    %v6530 = vadd.f32 %v6487, %v6529
    %6531 = vdwg.mxu0
    %6532 = vmatprep.subr.bf16.mxu0 %v4715
    %6533 = vmatpush1.bf16.msra.mxu0 %v4714
    %6534 = vmatprep.subr.bf16.mxu0 %v4705
    %6535 = vmatpush1.bf16.msra.mxu0 %v4704
    %6536 = vmatprep.subr.bf16.mxu0 %v4695
    %6537 = vmatpush1.bf16.msra.mxu0 %v4694
    %6538 = vmatprep.subr.bf16.mxu0 %v4685
    %6539 = vmatpush1.bf16.msra.mxu0 %v4684
    %6540 = vmatprep.subr.bf16.mxu0 %v4675
    %6541 = vmatpush1.bf16.msra.mxu0 %v4674
    %6542 = vmatprep.subr.bf16.mxu0 %v4665
    %6543 = vmatpush1.bf16.msra.mxu0 %v4664
    %6544 = vmatprep.subr.bf16.mxu0 %v4655
    %6545 = vmatpush1.bf16.msra.mxu0 %v4654
    %6546 = vmatprep.subr.bf16.mxu0 %v4645
    %6547 = vmatpush1.bf16.msra.mxu0 %v4644
    %6548 = vmatprep.subr.bf16.mxu0 %v4795
    %6549 = vmatpush2.bf16.msra.mxu0 %v4794
    %6550 = vmatprep.subr.bf16.mxu0 %v4785
    %6551 = vmatpush2.bf16.msra.mxu0 %v4784
    %6552 = vmatprep.subr.bf16.mxu0 %v4775
    %6553 = vmatpush2.bf16.msra.mxu0 %v4774
    %6554 = vmatprep.subr.bf16.mxu0 %v4765
    %6555 = vmatpush2.bf16.msra.mxu0 %v4764
    %6556 = vmatprep.subr.bf16.mxu0 %v4755
    %6557 = vmatpush2.bf16.msra.mxu0 %v4754
    %6558 = vmatprep.subr.bf16.mxu0 %v4745
    %6559 = vmatpush2.bf16.msra.mxu0 %v4744
    %6560 = vmatprep.subr.bf16.mxu0 %v4735
    %6561 = vmatpush2.bf16.msra.mxu0 %v4734
    %6562 = vmatprep.subr.bf16.mxu0 %v4725
    %6563 = vmatpush2.bf16.msra.mxu0 %v4724
    %6564 = vmatprep.mubr.bf16.mxu0 %v901
    %6565 = vmatmul.mubr.bf16.gmra.mxu0 %v900
    %v6566 = vpop.f32.mrf.mxu0
    %v6567 = vadd.f32 %v6524, %v6566
    %v6568 = vpop.f32.mrf.mxu0
    %v6569 = vadd.f32 %v6526, %v6568
    %v6570 = vpop.f32.mrf.mxu0
    %v6571 = vadd.f32 %v6528, %v6570
    %v6572 = vpop.f32.mrf.mxu0
    %v6573 = vadd.f32 %v6530, %v6572
    %6574 = vdwg.mxu0
    %6575 = vmatprep.subr.bf16.mxu0 %v4875
    %6576 = vmatpush1.bf16.msra.mxu0 %v4874
    %6577 = vmatprep.subr.bf16.mxu0 %v4865
    %6578 = vmatpush1.bf16.msra.mxu0 %v4864
    %6579 = vmatprep.subr.bf16.mxu0 %v4855
    %6580 = vmatpush1.bf16.msra.mxu0 %v4854
    %6581 = vmatprep.subr.bf16.mxu0 %v4845
    %6582 = vmatpush1.bf16.msra.mxu0 %v4844
    %6583 = vmatprep.subr.bf16.mxu0 %v4835
    %6584 = vmatpush1.bf16.msra.mxu0 %v4834
    %6585 = vmatprep.subr.bf16.mxu0 %v4825
    %6586 = vmatpush1.bf16.msra.mxu0 %v4824
    %6587 = vmatprep.subr.bf16.mxu0 %v4815
    %6588 = vmatpush1.bf16.msra.mxu0 %v4814
    %6589 = vmatprep.subr.bf16.mxu0 %v4805
    %6590 = vmatpush1.bf16.msra.mxu0 %v4804
    %6591 = vmatprep.subr.bf16.mxu0 %v4955
    %6592 = vmatpush2.bf16.msra.mxu0 %v4954
    %6593 = vmatprep.subr.bf16.mxu0 %v4945
    %6594 = vmatpush2.bf16.msra.mxu0 %v4944
    %6595 = vmatprep.subr.bf16.mxu0 %v4935
    %6596 = vmatpush2.bf16.msra.mxu0 %v4934
    %6597 = vmatprep.subr.bf16.mxu0 %v4925
    %6598 = vmatpush2.bf16.msra.mxu0 %v4924
    %6599 = vmatprep.subr.bf16.mxu0 %v4915
    %6600 = vmatpush2.bf16.msra.mxu0 %v4914
    %6601 = vmatprep.subr.bf16.mxu0 %v4905
    %6602 = vmatpush2.bf16.msra.mxu0 %v4904
    %6603 = vmatprep.subr.bf16.mxu0 %v4895
    %6604 = vmatpush2.bf16.msra.mxu0 %v4894
    %6605 = vmatprep.subr.bf16.mxu0 %v4885
    %6606 = vmatpush2.bf16.msra.mxu0 %v4884
    %6607 = vmatprep.mubr.bf16.mxu0 %v903
    %6608 = vmatmul.mubr.bf16.gmra.mxu0 %v902
    %v6609 = vpop.f32.mrf.mxu0
    %v6610 = vadd.f32 %v6567, %v6609
    %v6611 = vpop.f32.mrf.mxu0
    %v6612 = vadd.f32 %v6569, %v6611
    %v6613 = vpop.f32.mrf.mxu0
    %v6614 = vadd.f32 %v6571, %v6613
    %v6615 = vpop.f32.mrf.mxu0
    %v6616 = vadd.f32 %v6573, %v6615
    %6617 = vdwg.mxu0
    %6618 = vmatprep.subr.bf16.mxu0 %v4237
    %6619 = vmatpush1.bf16.msra.mxu0 %v4236
    %6620 = vmatprep.subr.bf16.mxu0 %v4227
    %6621 = vmatpush1.bf16.msra.mxu0 %v4226
    %6622 = vmatprep.subr.bf16.mxu0 %v4217
    %6623 = vmatpush1.bf16.msra.mxu0 %v4216
    %6624 = vmatprep.subr.bf16.mxu0 %v4207
    %6625 = vmatpush1.bf16.msra.mxu0 %v4206
    %6626 = vmatprep.subr.bf16.mxu0 %v4197
    %6627 = vmatpush1.bf16.msra.mxu0 %v4196
    %6628 = vmatprep.subr.bf16.mxu0 %v4187
    %6629 = vmatpush1.bf16.msra.mxu0 %v4186
    %6630 = vmatprep.subr.bf16.mxu0 %v4177
    %6631 = vmatpush1.bf16.msra.mxu0 %v4176
    %6632 = vmatprep.subr.bf16.mxu0 %v4167
    %6633 = vmatpush1.bf16.msra.mxu0 %v4166
    %6634 = vmatprep.subr.bf16.mxu0 %v4317
    %6635 = vmatpush2.bf16.msra.mxu0 %v4316
    %6636 = vmatprep.subr.bf16.mxu0 %v4307
    %6637 = vmatpush2.bf16.msra.mxu0 %v4306
    %6638 = vmatprep.subr.bf16.mxu0 %v4297
    %6639 = vmatpush2.bf16.msra.mxu0 %v4296
    %6640 = vmatprep.subr.bf16.mxu0 %v4287
    %6641 = vmatpush2.bf16.msra.mxu0 %v4286
    %6642 = vmatprep.subr.bf16.mxu0 %v4277
    %6643 = vmatpush2.bf16.msra.mxu0 %v4276
    %6644 = vmatprep.subr.bf16.mxu0 %v4267
    %6645 = vmatpush2.bf16.msra.mxu0 %v4266
    %6646 = vmatprep.subr.bf16.mxu0 %v4257
    %6647 = vmatpush2.bf16.msra.mxu0 %v4256
    %6648 = vmatprep.subr.bf16.mxu0 %v4247
    %6649 = vmatpush2.bf16.msra.mxu0 %v4246
    %6650 = vmatprep.mubr.bf16.mxu0 %v895
    %6651 = vmatmul.mubr.bf16.gmra.mxu0 %v894
    %v6652 = vpop.f32.mrf.mxu0
    %v6653 = vadd.f32 %v1743, %v6652
    %v6654 = vpop.f32.mrf.mxu0
    %v6655 = vadd.f32 %v1747, %v6654
    %v6656 = vpop.f32.mrf.mxu0
    %v6657 = vadd.f32 %v1743, %v6656
    %v6658 = vpop.f32.mrf.mxu0
    %v6659 = vadd.f32 %v1747, %v6658
    %6660 = vdwg.mxu0
    %6661 = vmatprep.subr.bf16.mxu0 %v4397
    %6662 = vmatpush1.bf16.msra.mxu0 %v4396
    %6663 = vmatprep.subr.bf16.mxu0 %v4387
    %6664 = vmatpush1.bf16.msra.mxu0 %v4386
    %6665 = vmatprep.subr.bf16.mxu0 %v4377
    %6666 = vmatpush1.bf16.msra.mxu0 %v4376
    %6667 = vmatprep.subr.bf16.mxu0 %v4367
    %6668 = vmatpush1.bf16.msra.mxu0 %v4366
    %6669 = vmatprep.subr.bf16.mxu0 %v4357
    %6670 = vmatpush1.bf16.msra.mxu0 %v4356
    %6671 = vmatprep.subr.bf16.mxu0 %v4347
    %6672 = vmatpush1.bf16.msra.mxu0 %v4346
    %6673 = vmatprep.subr.bf16.mxu0 %v4337
    %6674 = vmatpush1.bf16.msra.mxu0 %v4336
    %6675 = vmatprep.subr.bf16.mxu0 %v4327
    %6676 = vmatpush1.bf16.msra.mxu0 %v4326
    %6677 = vmatprep.subr.bf16.mxu0 %v4477
    %6678 = vmatpush2.bf16.msra.mxu0 %v4476
    %6679 = vmatprep.subr.bf16.mxu0 %v4467
    %6680 = vmatpush2.bf16.msra.mxu0 %v4466
    %6681 = vmatprep.subr.bf16.mxu0 %v4457
    %6682 = vmatpush2.bf16.msra.mxu0 %v4456
    %6683 = vmatprep.subr.bf16.mxu0 %v4447
    %6684 = vmatpush2.bf16.msra.mxu0 %v4446
    %6685 = vmatprep.subr.bf16.mxu0 %v4437
    %6686 = vmatpush2.bf16.msra.mxu0 %v4436
    %6687 = vmatprep.subr.bf16.mxu0 %v4427
    %6688 = vmatpush2.bf16.msra.mxu0 %v4426
    %6689 = vmatprep.subr.bf16.mxu0 %v4417
    %6690 = vmatpush2.bf16.msra.mxu0 %v4416
    %6691 = vmatprep.subr.bf16.mxu0 %v4407
    %6692 = vmatpush2.bf16.msra.mxu0 %v4406
    %6693 = vmatprep.mubr.bf16.mxu0 %v897
    %6694 = vmatmul.mubr.bf16.gmra.mxu0 %v896
    %v6695 = vpop.f32.mrf.mxu0
    %v6696 = vadd.f32 %v6653, %v6695
    %v6697 = vpop.f32.mrf.mxu0
    %v6698 = vadd.f32 %v6655, %v6697
    %v6699 = vpop.f32.mrf.mxu0
    %v6700 = vadd.f32 %v6657, %v6699
    %v6701 = vpop.f32.mrf.mxu0
    %v6702 = vadd.f32 %v6659, %v6701
    %6703 = vdwg.mxu0
    %6704 = vmatprep.subr.bf16.mxu0 %v4557
    %6705 = vmatpush1.bf16.msra.mxu0 %v4556
    %6706 = vmatprep.subr.bf16.mxu0 %v4547
    %6707 = vmatpush1.bf16.msra.mxu0 %v4546
    %6708 = vmatprep.subr.bf16.mxu0 %v4537
    %6709 = vmatpush1.bf16.msra.mxu0 %v4536
    %6710 = vmatprep.subr.bf16.mxu0 %v4527
    %6711 = vmatpush1.bf16.msra.mxu0 %v4526
    %6712 = vmatprep.subr.bf16.mxu0 %v4517
    %6713 = vmatpush1.bf16.msra.mxu0 %v4516
    %6714 = vmatprep.subr.bf16.mxu0 %v4507
    %6715 = vmatpush1.bf16.msra.mxu0 %v4506
    %6716 = vmatprep.subr.bf16.mxu0 %v4497
    %6717 = vmatpush1.bf16.msra.mxu0 %v4496
    %6718 = vmatprep.subr.bf16.mxu0 %v4487
    %6719 = vmatpush1.bf16.msra.mxu0 %v4486
    %6720 = vmatprep.subr.bf16.mxu0 %v4637
    %6721 = vmatpush2.bf16.msra.mxu0 %v4636
    %6722 = vmatprep.subr.bf16.mxu0 %v4627
    %6723 = vmatpush2.bf16.msra.mxu0 %v4626
    %6724 = vmatprep.subr.bf16.mxu0 %v4617
    %6725 = vmatpush2.bf16.msra.mxu0 %v4616
    %6726 = vmatprep.subr.bf16.mxu0 %v4607
    %6727 = vmatpush2.bf16.msra.mxu0 %v4606
    %6728 = vmatprep.subr.bf16.mxu0 %v4597
    %6729 = vmatpush2.bf16.msra.mxu0 %v4596
    %6730 = vmatprep.subr.bf16.mxu0 %v4587
    %6731 = vmatpush2.bf16.msra.mxu0 %v4586
    %6732 = vmatprep.subr.bf16.mxu0 %v4577
    %6733 = vmatpush2.bf16.msra.mxu0 %v4576
    %6734 = vmatprep.subr.bf16.mxu0 %v4567
    %6735 = vmatpush2.bf16.msra.mxu0 %v4566
    %6736 = vmatprep.mubr.bf16.mxu0 %v899
    %6737 = vmatmul.mubr.bf16.gmra.mxu0 %v898
    %v6738 = vpop.f32.mrf.mxu0
    %v6739 = vadd.f32 %v6696, %v6738
    %v6740 = vpop.f32.mrf.mxu0
    %v6741 = vadd.f32 %v6698, %v6740
    %v6742 = vpop.f32.mrf.mxu0
    %v6743 = vadd.f32 %v6700, %v6742
    %v6744 = vpop.f32.mrf.mxu0
    %v6745 = vadd.f32 %v6702, %v6744
    %6746 = vdwg.mxu0
    %6747 = vmatprep.subr.bf16.mxu0 %v4717
    %6748 = vmatpush1.bf16.msra.mxu0 %v4716
    %6749 = vmatprep.subr.bf16.mxu0 %v4707
    %6750 = vmatpush1.bf16.msra.mxu0 %v4706
    %6751 = vmatprep.subr.bf16.mxu0 %v4697
    %6752 = vmatpush1.bf16.msra.mxu0 %v4696
    %6753 = vmatprep.subr.bf16.mxu0 %v4687
    %6754 = vmatpush1.bf16.msra.mxu0 %v4686
    %6755 = vmatprep.subr.bf16.mxu0 %v4677
    %6756 = vmatpush1.bf16.msra.mxu0 %v4676
    %6757 = vmatprep.subr.bf16.mxu0 %v4667
    %6758 = vmatpush1.bf16.msra.mxu0 %v4666
    %6759 = vmatprep.subr.bf16.mxu0 %v4657
    %6760 = vmatpush1.bf16.msra.mxu0 %v4656
    %6761 = vmatprep.subr.bf16.mxu0 %v4647
    %6762 = vmatpush1.bf16.msra.mxu0 %v4646
    %6763 = vmatprep.subr.bf16.mxu0 %v4797
    %6764 = vmatpush2.bf16.msra.mxu0 %v4796
    %6765 = vmatprep.subr.bf16.mxu0 %v4787
    %6766 = vmatpush2.bf16.msra.mxu0 %v4786
    %6767 = vmatprep.subr.bf16.mxu0 %v4777
    %6768 = vmatpush2.bf16.msra.mxu0 %v4776
    %6769 = vmatprep.subr.bf16.mxu0 %v4767
    %6770 = vmatpush2.bf16.msra.mxu0 %v4766
    %6771 = vmatprep.subr.bf16.mxu0 %v4757
    %6772 = vmatpush2.bf16.msra.mxu0 %v4756
    %6773 = vmatprep.subr.bf16.mxu0 %v4747
    %6774 = vmatpush2.bf16.msra.mxu0 %v4746
    %6775 = vmatprep.subr.bf16.mxu0 %v4737
    %6776 = vmatpush2.bf16.msra.mxu0 %v4736
    %6777 = vmatprep.subr.bf16.mxu0 %v4727
    %6778 = vmatpush2.bf16.msra.mxu0 %v4726
    %6779 = vmatprep.mubr.bf16.mxu0 %v901
    %6780 = vmatmul.mubr.bf16.gmra.mxu0 %v900
    %v6781 = vpop.f32.mrf.mxu0
    %v6782 = vadd.f32 %v6739, %v6781
    %v6783 = vpop.f32.mrf.mxu0
    %v6784 = vadd.f32 %v6741, %v6783
    %v6785 = vpop.f32.mrf.mxu0
    %v6786 = vadd.f32 %v6743, %v6785
    %v6787 = vpop.f32.mrf.mxu0
    %v6788 = vadd.f32 %v6745, %v6787
    %6789 = vdwg.mxu0
    %6790 = vmatprep.subr.bf16.mxu0 %v4877
    %6791 = vmatpush1.bf16.msra.mxu0 %v4876
    %6792 = vmatprep.subr.bf16.mxu0 %v4867
    %6793 = vmatpush1.bf16.msra.mxu0 %v4866
    %6794 = vmatprep.subr.bf16.mxu0 %v4857
    %6795 = vmatpush1.bf16.msra.mxu0 %v4856
    %6796 = vmatprep.subr.bf16.mxu0 %v4847
    %6797 = vmatpush1.bf16.msra.mxu0 %v4846
    %6798 = vmatprep.subr.bf16.mxu0 %v4837
    %6799 = vmatpush1.bf16.msra.mxu0 %v4836
    %6800 = vmatprep.subr.bf16.mxu0 %v4827
    %6801 = vmatpush1.bf16.msra.mxu0 %v4826
    %6802 = vmatprep.subr.bf16.mxu0 %v4817
    %6803 = vmatpush1.bf16.msra.mxu0 %v4816
    %6804 = vmatprep.subr.bf16.mxu0 %v4807
    %6805 = vmatpush1.bf16.msra.mxu0 %v4806
    %6806 = vmatprep.subr.bf16.mxu0 %v4957
    %6807 = vmatpush2.bf16.msra.mxu0 %v4956
    %6808 = vmatprep.subr.bf16.mxu0 %v4947
    %6809 = vmatpush2.bf16.msra.mxu0 %v4946
    %6810 = vmatprep.subr.bf16.mxu0 %v4937
    %6811 = vmatpush2.bf16.msra.mxu0 %v4936
    %6812 = vmatprep.subr.bf16.mxu0 %v4927
    %6813 = vmatpush2.bf16.msra.mxu0 %v4926
    %6814 = vmatprep.subr.bf16.mxu0 %v4917
    %6815 = vmatpush2.bf16.msra.mxu0 %v4916
    %6816 = vmatprep.subr.bf16.mxu0 %v4907
    %6817 = vmatpush2.bf16.msra.mxu0 %v4906
    %6818 = vmatprep.subr.bf16.mxu0 %v4897
    %6819 = vmatpush2.bf16.msra.mxu0 %v4896
    %6820 = vmatprep.subr.bf16.mxu0 %v4887
    %6821 = vmatpush2.bf16.msra.mxu0 %v4886
    %6822 = vmatprep.mubr.bf16.mxu0 %v903
    %6823 = vmatmul.mubr.bf16.gmra.mxu0 %v902
    %v6824 = vpop.f32.mrf.mxu0
    %v6825 = vadd.f32 %v6782, %v6824
    %v6826 = vpop.f32.mrf.mxu0
    %v6827 = vadd.f32 %v6784, %v6826
    %v6828 = vpop.f32.mrf.mxu0
    %v6829 = vadd.f32 %v6786, %v6828
    %v6830 = vpop.f32.mrf.mxu0
    %v6831 = vadd.f32 %v6788, %v6830
    %6832 = vdwg.mxu0
    %v6833 = vmax.f32 %v5965, 0.0
    %v6834 = vmax.f32 %v5967, 0.0
    %v6835 = vmax.f32 %v6180, 0.0
    %v6836 = vmax.f32 %v6182, 0.0
    %v6837 = vmax.f32 %v6395, 0.0
    %v6838 = vmax.f32 %v6397, 0.0
    %v6839 = vmax.f32 %v6610, 0.0
    %v6840 = vmax.f32 %v6612, 0.0
    %v6841 = vmax.f32 %v6825, 0.0
    %v6842 = vmax.f32 %v6827, 0.0
    %v6843 = vmax.f32 %v5969, 0.0
    %v6844 = vmax.f32 %v5971, 0.0
    %v6845 = vmax.f32 %v6184, 0.0
    %v6846 = vmax.f32 %v6186, 0.0
    %v6847 = vmax.f32 %v6399, 0.0
    %v6848 = vmax.f32 %v6401, 0.0
    %v6849 = vmax.f32 %v6614, 0.0
    %v6850 = vmax.f32 %v6616, 0.0
    %v6851 = vmax.f32 %v6829, 0.0
    %v6852 = vmax.f32 %v6831, 0.0
    %v6853 = vpack.c.bf16 %v6843, %v6833
    %v6854 = vpack.c.bf16 %v6844, %v6834
    %v6855 = vpack.c.bf16 %v6845, %v6835
    %v6856 = vpack.c.bf16 %v6846, %v6836
    %v6857 = vpack.c.bf16 %v6847, %v6837
    %v6858 = vpack.c.bf16 %v6848, %v6838
    %v6859 = vpack.c.bf16 %v6849, %v6839
    %v6860 = vpack.c.bf16 %v6850, %v6840
    %v6861 = vpack.c.bf16 %v6851, %v6841
    %v6862 = vpack.c.bf16 %v6852, %v6842
    %v6863 = vld [vmem:[#allocation11] sm:$0xf]
    %v6864 = vld [vmem:[#allocation11 + $0x4] sm:$0xf]
    %v6865 = vld [vmem:[#allocation11 + $0x8] sm:$0xf]
    %v6866 = vld [vmem:[#allocation11 + $0xc] sm:$0xf]
    %v6867 = vld [vmem:[#allocation11 + $0x10] sm:$0xf]
    %v6868 = vld [vmem:[#allocation11 + $0x14] sm:$0xf]
    %v6869 = vld [vmem:[#allocation11 + $0x18] sm:$0xf]
    %v6870 = vld [vmem:[#allocation11 + $0x1c] sm:$0xf]
    %v6871 = vld [vmem:[#allocation11 + $0x20] sm:$0xf]
    %v6872 = vld [vmem:[#allocation11 + $0x24] sm:$0xf]
    %v6873 = vld [vmem:[#allocation11 + $0x28] sm:$0xf]
    %v6874 = vld [vmem:[#allocation11 + $0x2c] sm:$0xf]
    %v6875 = vld [vmem:[#allocation11 + $0x30] sm:$0xf]
    %v6876 = vld [vmem:[#allocation11 + $0x34] sm:$0xf]
    %v6877 = vld [vmem:[#allocation11 + $0x38] sm:$0xf]
    %v6878 = vld [vmem:[#allocation11 + $0x3c] sm:$0xf]
    %v6879 = vld [vmem:[#allocation11 + $0x40] sm:$0xf]
    %v6880 = vld [vmem:[#allocation11 + $0x44] sm:$0xf]
    %v6881 = vld [vmem:[#allocation11 + $0x48] sm:$0xf]
    %v6882 = vld [vmem:[#allocation11 + $0x4c] sm:$0xf]
    %v6883 = vld [vmem:[#allocation11 + $0x50] sm:$0xf]
    %v6884 = vld [vmem:[#allocation11 + $0x54] sm:$0xf]
    %v6885 = vld [vmem:[#allocation11 + $0x58] sm:$0xf]
    %v6886 = vld [vmem:[#allocation11 + $0x5c] sm:$0xf]
    %v6887 = vld [vmem:[#allocation11 + $0x60] sm:$0xf]
    %v6888 = vld [vmem:[#allocation11 + $0x64] sm:$0xf]
    %v6889 = vld [vmem:[#allocation11 + $0x68] sm:$0xf]
    %v6890 = vld [vmem:[#allocation11 + $0x6c] sm:$0xf]
    %v6891 = vld [vmem:[#allocation11 + $0x70] sm:$0xf]
    %v6892 = vld [vmem:[#allocation11 + $0x74] sm:$0xf]
    %v6893 = vld [vmem:[#allocation11 + $0x78] sm:$0xf]
    %v6894 = vld [vmem:[#allocation11 + $0x7c] sm:$0xf]
    %v6895 = vld [vmem:[#allocation11 + $0x80] sm:$0xf]
    %v6896 = vld [vmem:[#allocation11 + $0x84] sm:$0xf]
    %v6897 = vld [vmem:[#allocation11 + $0x88] sm:$0xf]
    %v6898 = vld [vmem:[#allocation11 + $0x8c] sm:$0xf]
    %v6899 = vld [vmem:[#allocation11 + $0x90] sm:$0xf]
    %v6900 = vld [vmem:[#allocation11 + $0x94] sm:$0xf]
    %v6901 = vld [vmem:[#allocation11 + $0x98] sm:$0xf]
    %v6902 = vld [vmem:[#allocation11 + $0x9c] sm:$0xf]
    %v6903 = vld [vmem:[#allocation11 + $0xa0] sm:$0xf]
    %v6904 = vld [vmem:[#allocation11 + $0xa4] sm:$0xf]
    %v6905 = vld [vmem:[#allocation11 + $0xa8] sm:$0xf]
    %v6906 = vld [vmem:[#allocation11 + $0xac] sm:$0xf]
    %v6907 = vld [vmem:[#allocation11 + $0xb0] sm:$0xf]
    %v6908 = vld [vmem:[#allocation11 + $0xb4] sm:$0xf]
    %v6909 = vld [vmem:[#allocation11 + $0xb8] sm:$0xf]
    %v6910 = vld [vmem:[#allocation11 + $0xbc] sm:$0xf]
    %v6911 = vld [vmem:[#allocation11 + $0xc0] sm:$0xf]
    %v6912 = vld [vmem:[#allocation11 + $0xc4] sm:$0xf]
    %v6913 = vld [vmem:[#allocation11 + $0xc8] sm:$0xf]
    %v6914 = vld [vmem:[#allocation11 + $0xcc] sm:$0xf]
    %v6915 = vld [vmem:[#allocation11 + $0xd0] sm:$0xf]
    %v6916 = vld [vmem:[#allocation11 + $0xd4] sm:$0xf]
    %v6917 = vld [vmem:[#allocation11 + $0xd8] sm:$0xf]
    %v6918 = vld [vmem:[#allocation11 + $0xdc] sm:$0xf]
    %v6919 = vld [vmem:[#allocation11 + $0xe0] sm:$0xf]
    %v6920 = vld [vmem:[#allocation11 + $0xe4] sm:$0xf]
    %v6921 = vld [vmem:[#allocation11 + $0xe8] sm:$0xf]
    %v6922 = vld [vmem:[#allocation11 + $0xec] sm:$0xf]
    %v6923 = vld [vmem:[#allocation11 + $0xf0] sm:$0xf]
    %v6924 = vld [vmem:[#allocation11 + $0xf4] sm:$0xf]
    %v6925 = vld [vmem:[#allocation11 + $0xf8] sm:$0xf]
    %v6926 = vld [vmem:[#allocation11 + $0xfc] sm:$0xf]
    %v6927 = vld [vmem:[#allocation11 + $0x100] sm:$0xf]
    %v6928 = vld [vmem:[#allocation11 + $0x104] sm:$0xf]
    %v6929 = vld [vmem:[#allocation11 + $0x108] sm:$0xf]
    %v6930 = vld [vmem:[#allocation11 + $0x10c] sm:$0xf]
    %v6931 = vld [vmem:[#allocation11 + $0x110] sm:$0xf]
    %v6932 = vld [vmem:[#allocation11 + $0x114] sm:$0xf]
    %v6933 = vld [vmem:[#allocation11 + $0x118] sm:$0xf]
    %v6934 = vld [vmem:[#allocation11 + $0x11c] sm:$0xf]
    %v6935 = vld [vmem:[#allocation11 + $0x120] sm:$0xf]
    %v6936 = vld [vmem:[#allocation11 + $0x124] sm:$0xf]
    %v6937 = vld [vmem:[#allocation11 + $0x128] sm:$0xf]
    %v6938 = vld [vmem:[#allocation11 + $0x12c] sm:$0xf]
    %v6939 = vld [vmem:[#allocation11 + $0x130] sm:$0xf]
    %v6940 = vld [vmem:[#allocation11 + $0x134] sm:$0xf]
    %v6941 = vld [vmem:[#allocation11 + $0x138] sm:$0xf]
    %v6942 = vld [vmem:[#allocation11 + $0x13c] sm:$0xf]
    %v6943 = vld [vmem:[#allocation11 + $0x140] sm:$0xf]
    %v6944 = vld [vmem:[#allocation11 + $0x144] sm:$0xf]
    %v6945 = vld [vmem:[#allocation11 + $0x148] sm:$0xf]
    %v6946 = vld [vmem:[#allocation11 + $0x14c] sm:$0xf]
    %v6947 = vld [vmem:[#allocation11 + $0x150] sm:$0xf]
    %v6948 = vld [vmem:[#allocation11 + $0x154] sm:$0xf]
    %v6949 = vld [vmem:[#allocation11 + $0x158] sm:$0xf]
    %v6950 = vld [vmem:[#allocation11 + $0x15c] sm:$0xf]
    %v6951 = vld [vmem:[#allocation11 + $0x160] sm:$0xf]
    %v6952 = vld [vmem:[#allocation11 + $0x164] sm:$0xf]
    %v6953 = vld [vmem:[#allocation11 + $0x168] sm:$0xf]
    %v6954 = vld [vmem:[#allocation11 + $0x16c] sm:$0xf]
    %v6955 = vld [vmem:[#allocation11 + $0x170] sm:$0xf]
    %v6956 = vld [vmem:[#allocation11 + $0x174] sm:$0xf]
    %v6957 = vld [vmem:[#allocation11 + $0x178] sm:$0xf]
    %v6958 = vld [vmem:[#allocation11 + $0x17c] sm:$0xf]
    %v6959 = vld [vmem:[#allocation11 + $0x180] sm:$0xf]
    %v6960 = vld [vmem:[#allocation11 + $0x184] sm:$0xf]
    %v6961 = vld [vmem:[#allocation11 + $0x188] sm:$0xf]
    %v6962 = vld [vmem:[#allocation11 + $0x18c] sm:$0xf]
    %v6963 = vld [vmem:[#allocation11 + $0x190] sm:$0xf]
    %v6964 = vld [vmem:[#allocation11 + $0x194] sm:$0xf]
    %v6965 = vld [vmem:[#allocation11 + $0x198] sm:$0xf]
    %v6966 = vld [vmem:[#allocation11 + $0x19c] sm:$0xf]
    %v6967 = vld [vmem:[#allocation11 + $0x1a0] sm:$0xf]
    %v6968 = vld [vmem:[#allocation11 + $0x1a4] sm:$0xf]
    %v6969 = vld [vmem:[#allocation11 + $0x1a8] sm:$0xf]
    %v6970 = vld [vmem:[#allocation11 + $0x1ac] sm:$0xf]
    %v6971 = vld [vmem:[#allocation11 + $0x1b0] sm:$0xf]
    %v6972 = vld [vmem:[#allocation11 + $0x1b4] sm:$0xf]
    %v6973 = vld [vmem:[#allocation11 + $0x1b8] sm:$0xf]
    %v6974 = vld [vmem:[#allocation11 + $0x1bc] sm:$0xf]
    %v6975 = vld [vmem:[#allocation11 + $0x1c0] sm:$0xf]
    %v6976 = vld [vmem:[#allocation11 + $0x1c4] sm:$0xf]
    %v6977 = vld [vmem:[#allocation11 + $0x1c8] sm:$0xf]
    %v6978 = vld [vmem:[#allocation11 + $0x1cc] sm:$0xf]
    %v6979 = vld [vmem:[#allocation11 + $0x1d0] sm:$0xf]
    %v6980 = vld [vmem:[#allocation11 + $0x1d4] sm:$0xf]
    %v6981 = vld [vmem:[#allocation11 + $0x1d8] sm:$0xf]
    %v6982 = vld [vmem:[#allocation11 + $0x1dc] sm:$0xf]
    %v6983 = vld [vmem:[#allocation11 + $0x1e0] sm:$0xf]
    %v6984 = vld [vmem:[#allocation11 + $0x1e4] sm:$0xf]
    %v6985 = vld [vmem:[#allocation11 + $0x1e8] sm:$0xf]
    %v6986 = vld [vmem:[#allocation11 + $0x1ec] sm:$0xf]
    %v6987 = vld [vmem:[#allocation11 + $0x1f0] sm:$0xf]
    %v6988 = vld [vmem:[#allocation11 + $0x1f4] sm:$0xf]
    %v6989 = vld [vmem:[#allocation11 + $0x1f8] sm:$0xf]
    %v6990 = vld [vmem:[#allocation11 + $0x1fc] sm:$0xf]
    %v6991 = vld [vmem:[#allocation11 + $0x200] sm:$0xf]
    %v6992 = vld [vmem:[#allocation11 + $0x204] sm:$0xf]
    %v6993 = vld [vmem:[#allocation11 + $0x208] sm:$0xf]
    %v6994 = vld [vmem:[#allocation11 + $0x20c] sm:$0xf]
    %v6995 = vld [vmem:[#allocation11 + $0x210] sm:$0xf]
    %v6996 = vld [vmem:[#allocation11 + $0x214] sm:$0xf]
    %v6997 = vld [vmem:[#allocation11 + $0x218] sm:$0xf]
    %v6998 = vld [vmem:[#allocation11 + $0x21c] sm:$0xf]
    %v6999 = vld [vmem:[#allocation11 + $0x220] sm:$0xf]
    %v7000 = vld [vmem:[#allocation11 + $0x224] sm:$0xf]
    %v7001 = vld [vmem:[#allocation11 + $0x228] sm:$0xf]
    %v7002 = vld [vmem:[#allocation11 + $0x22c] sm:$0xf]
    %v7003 = vld [vmem:[#allocation11 + $0x230] sm:$0xf]
    %v7004 = vld [vmem:[#allocation11 + $0x234] sm:$0xf]
    %v7005 = vld [vmem:[#allocation11 + $0x238] sm:$0xf]
    %v7006 = vld [vmem:[#allocation11 + $0x23c] sm:$0xf]
    %v7007 = vld [vmem:[#allocation11 + $0x240] sm:$0xf]
    %v7008 = vld [vmem:[#allocation11 + $0x244] sm:$0xf]
    %v7009 = vld [vmem:[#allocation11 + $0x248] sm:$0xf]
    %v7010 = vld [vmem:[#allocation11 + $0x24c] sm:$0xf]
    %v7011 = vld [vmem:[#allocation11 + $0x250] sm:$0xf]
    %v7012 = vld [vmem:[#allocation11 + $0x254] sm:$0xf]
    %v7013 = vld [vmem:[#allocation11 + $0x258] sm:$0xf]
    %v7014 = vld [vmem:[#allocation11 + $0x25c] sm:$0xf]
    %v7015 = vld [vmem:[#allocation11 + $0x260] sm:$0xf]
    %v7016 = vld [vmem:[#allocation11 + $0x264] sm:$0xf]
    %v7017 = vld [vmem:[#allocation11 + $0x268] sm:$0xf]
    %v7018 = vld [vmem:[#allocation11 + $0x26c] sm:$0xf]
    %v7019 = vld [vmem:[#allocation11 + $0x270] sm:$0xf]
    %v7020 = vld [vmem:[#allocation11 + $0x274] sm:$0xf]
    %v7021 = vld [vmem:[#allocation11 + $0x278] sm:$0xf]
    %v7022 = vld [vmem:[#allocation11 + $0x27c] sm:$0xf]
    %v7023 = vld [vmem:[#allocation13] sm:$0x1]
    %v7025 = vlaneseq
    %v7026 = vshrl.u32 %v7025, 7
    %v7027 = vsub.s32 0, %v7026
    %v7028 = vrot.slane %v7023, %v7027
    %v7190 = vunpack.c.l.b16 %v6863
    %v7191 = vunpack.c.l.b16 %v6864
    %v7192 = vunpack.c.l.b16 %v6865
    %v7193 = vunpack.c.l.b16 %v6866
    %v7194 = vunpack.c.l.b16 %v6867
    %v7195 = vunpack.c.l.b16 %v6868
    %v7196 = vunpack.c.l.b16 %v6869
    %v7197 = vunpack.c.l.b16 %v6870
    %v7198 = vunpack.c.l.b16 %v6871
    %v7199 = vunpack.c.l.b16 %v6872
    %v7200 = vunpack.c.l.b16 %v6873
    %v7201 = vunpack.c.l.b16 %v6874
    %v7202 = vunpack.c.l.b16 %v6875
    %v7203 = vunpack.c.l.b16 %v6876
    %v7204 = vunpack.c.l.b16 %v6877
    %v7205 = vunpack.c.l.b16 %v6878
    %v7206 = vunpack.c.l.b16 %v6879
    %v7207 = vunpack.c.l.b16 %v6880
    %v7208 = vunpack.c.l.b16 %v6881
    %v7209 = vunpack.c.l.b16 %v6882
    %v7210 = vunpack.c.l.b16 %v6883
    %v7211 = vunpack.c.l.b16 %v6884
    %v7212 = vunpack.c.l.b16 %v6885
    %v7213 = vunpack.c.l.b16 %v6886
    %v7214 = vunpack.c.l.b16 %v6887
    %v7215 = vunpack.c.l.b16 %v6888
    %v7216 = vunpack.c.l.b16 %v6889
    %v7217 = vunpack.c.l.b16 %v6890
    %v7218 = vunpack.c.l.b16 %v6891
    %v7219 = vunpack.c.l.b16 %v6892
    %v7220 = vunpack.c.l.b16 %v6893
    %v7221 = vunpack.c.l.b16 %v6894
    %v7222 = vunpack.c.l.b16 %v6895
    %v7223 = vunpack.c.l.b16 %v6896
    %v7224 = vunpack.c.l.b16 %v6897
    %v7225 = vunpack.c.l.b16 %v6898
    %v7226 = vunpack.c.l.b16 %v6899
    %v7227 = vunpack.c.l.b16 %v6900
    %v7228 = vunpack.c.l.b16 %v6901
    %v7229 = vunpack.c.l.b16 %v6902
    %v7230 = vunpack.c.l.b16 %v6903
    %v7231 = vunpack.c.l.b16 %v6904
    %v7232 = vunpack.c.l.b16 %v6905
    %v7233 = vunpack.c.l.b16 %v6906
    %v7234 = vunpack.c.l.b16 %v6907
    %v7235 = vunpack.c.l.b16 %v6908
    %v7236 = vunpack.c.l.b16 %v6909
    %v7237 = vunpack.c.l.b16 %v6910
    %v7238 = vunpack.c.l.b16 %v6911
    %v7239 = vunpack.c.l.b16 %v6912
    %v7240 = vunpack.c.l.b16 %v6913
    %v7241 = vunpack.c.l.b16 %v6914
    %v7242 = vunpack.c.l.b16 %v6915
    %v7243 = vunpack.c.l.b16 %v6916
    %v7244 = vunpack.c.l.b16 %v6917
    %v7245 = vunpack.c.l.b16 %v6918
    %v7246 = vunpack.c.l.b16 %v6919
    %v7247 = vunpack.c.l.b16 %v6920
    %v7248 = vunpack.c.l.b16 %v6921
    %v7249 = vunpack.c.l.b16 %v6922
    %v7250 = vunpack.c.l.b16 %v6923
    %v7251 = vunpack.c.l.b16 %v6924
    %v7252 = vunpack.c.l.b16 %v6925
    %v7253 = vunpack.c.l.b16 %v6926
    %v7254 = vunpack.c.l.b16 %v6927
    %v7255 = vunpack.c.l.b16 %v6928
    %v7256 = vunpack.c.l.b16 %v6929
    %v7257 = vunpack.c.l.b16 %v6930
    %v7258 = vunpack.c.l.b16 %v6931
    %v7259 = vunpack.c.l.b16 %v6932
    %v7260 = vunpack.c.l.b16 %v6933
    %v7261 = vunpack.c.l.b16 %v6934
    %v7262 = vunpack.c.l.b16 %v6935
    %v7263 = vunpack.c.l.b16 %v6936
    %v7264 = vunpack.c.l.b16 %v6937
    %v7265 = vunpack.c.l.b16 %v6938
    %v7266 = vunpack.c.l.b16 %v6939
    %v7267 = vunpack.c.l.b16 %v6940
    %v7268 = vunpack.c.l.b16 %v6941
    %v7269 = vunpack.c.l.b16 %v6942
    %v7270 = vunpack.c.l.b16 %v6943
    %v7271 = vunpack.c.l.b16 %v6944
    %v7272 = vunpack.c.l.b16 %v6945
    %v7273 = vunpack.c.l.b16 %v6946
    %v7274 = vunpack.c.l.b16 %v6947
    %v7275 = vunpack.c.l.b16 %v6948
    %v7276 = vunpack.c.l.b16 %v6949
    %v7277 = vunpack.c.l.b16 %v6950
    %v7278 = vunpack.c.l.b16 %v6951
    %v7279 = vunpack.c.l.b16 %v6952
    %v7280 = vunpack.c.l.b16 %v6953
    %v7281 = vunpack.c.l.b16 %v6954
    %v7282 = vunpack.c.l.b16 %v6955
    %v7283 = vunpack.c.l.b16 %v6956
    %v7284 = vunpack.c.l.b16 %v6957
    %v7285 = vunpack.c.l.b16 %v6958
    %v7286 = vunpack.c.l.b16 %v6959
    %v7287 = vunpack.c.l.b16 %v6960
    %v7288 = vunpack.c.l.b16 %v6961
    %v7289 = vunpack.c.l.b16 %v6962
    %v7290 = vunpack.c.l.b16 %v6963
    %v7291 = vunpack.c.l.b16 %v6964
    %v7292 = vunpack.c.l.b16 %v6965
    %v7293 = vunpack.c.l.b16 %v6966
    %v7294 = vunpack.c.l.b16 %v6967
    %v7295 = vunpack.c.l.b16 %v6968
    %v7296 = vunpack.c.l.b16 %v6969
    %v7297 = vunpack.c.l.b16 %v6970
    %v7298 = vunpack.c.l.b16 %v6971
    %v7299 = vunpack.c.l.b16 %v6972
    %v7300 = vunpack.c.l.b16 %v6973
    %v7301 = vunpack.c.l.b16 %v6974
    %v7302 = vunpack.c.l.b16 %v6975
    %v7303 = vunpack.c.l.b16 %v6976
    %v7304 = vunpack.c.l.b16 %v6977
    %v7305 = vunpack.c.l.b16 %v6978
    %v7306 = vunpack.c.l.b16 %v6979
    %v7307 = vunpack.c.l.b16 %v6980
    %v7308 = vunpack.c.l.b16 %v6981
    %v7309 = vunpack.c.l.b16 %v6982
    %v7310 = vunpack.c.l.b16 %v6983
    %v7311 = vunpack.c.l.b16 %v6984
    %v7312 = vunpack.c.l.b16 %v6985
    %v7313 = vunpack.c.l.b16 %v6986
    %v7314 = vunpack.c.l.b16 %v6987
    %v7315 = vunpack.c.l.b16 %v6988
    %v7316 = vunpack.c.l.b16 %v6989
    %v7317 = vunpack.c.l.b16 %v6990
    %v7318 = vunpack.c.l.b16 %v6991
    %v7319 = vunpack.c.l.b16 %v6992
    %v7320 = vunpack.c.l.b16 %v6993
    %v7321 = vunpack.c.l.b16 %v6994
    %v7322 = vunpack.c.l.b16 %v6995
    %v7323 = vunpack.c.l.b16 %v6996
    %v7324 = vunpack.c.l.b16 %v6997
    %v7325 = vunpack.c.l.b16 %v6998
    %v7326 = vunpack.c.l.b16 %v6999
    %v7327 = vunpack.c.l.b16 %v7000
    %v7328 = vunpack.c.l.b16 %v7001
    %v7329 = vunpack.c.l.b16 %v7002
    %v7330 = vunpack.c.l.b16 %v7003
    %v7331 = vunpack.c.l.b16 %v7004
    %v7332 = vunpack.c.l.b16 %v7005
    %v7333 = vunpack.c.l.b16 %v7006
    %v7334 = vunpack.c.l.b16 %v7007
    %v7335 = vunpack.c.l.b16 %v7008
    %v7336 = vunpack.c.l.b16 %v7009
    %v7337 = vunpack.c.l.b16 %v7010
    %v7338 = vunpack.c.l.b16 %v7011
    %v7339 = vunpack.c.l.b16 %v7012
    %v7340 = vunpack.c.l.b16 %v7013
    %v7341 = vunpack.c.l.b16 %v7014
    %v7342 = vunpack.c.l.b16 %v7015
    %v7343 = vunpack.c.l.b16 %v7016
    %v7344 = vunpack.c.l.b16 %v7017
    %v7345 = vunpack.c.l.b16 %v7018
    %v7346 = vunpack.c.l.b16 %v7019
    %v7347 = vunpack.c.l.b16 %v7020
    %v7348 = vunpack.c.l.b16 %v7021
    %v7349 = vunpack.c.l.b16 %v7022
    %v7350 = vpack.c.b16 %v7191, %v7190
    %v7351 = vpack.c.b16 %v7193, %v7192
    %v7352 = vpack.c.b16 %v7195, %v7194
    %v7353 = vpack.c.b16 %v7197, %v7196
    %v7354 = vpack.c.b16 %v7199, %v7198
    %v7355 = vpack.c.b16 %v7201, %v7200
    %v7356 = vpack.c.b16 %v7203, %v7202
    %v7357 = vpack.c.b16 %v7205, %v7204
    %v7358 = vpack.c.b16 %v7207, %v7206
    %v7359 = vpack.c.b16 %v7209, %v7208
    %v7360 = vpack.c.b16 %v7211, %v7210
    %v7361 = vpack.c.b16 %v7213, %v7212
    %v7362 = vpack.c.b16 %v7215, %v7214
    %v7363 = vpack.c.b16 %v7217, %v7216
    %v7364 = vpack.c.b16 %v7219, %v7218
    %v7365 = vpack.c.b16 %v7221, %v7220
    %v7366 = vpack.c.b16 %v7223, %v7222
    %v7367 = vpack.c.b16 %v7225, %v7224
    %v7368 = vpack.c.b16 %v7227, %v7226
    %v7369 = vpack.c.b16 %v7229, %v7228
    %v7370 = vpack.c.b16 %v7231, %v7230
    %v7371 = vpack.c.b16 %v7233, %v7232
    %v7372 = vpack.c.b16 %v7235, %v7234
    %v7373 = vpack.c.b16 %v7237, %v7236
    %v7374 = vpack.c.b16 %v7239, %v7238
    %v7375 = vpack.c.b16 %v7241, %v7240
    %v7376 = vpack.c.b16 %v7243, %v7242
    %v7377 = vpack.c.b16 %v7245, %v7244
    %v7378 = vpack.c.b16 %v7247, %v7246
    %v7379 = vpack.c.b16 %v7249, %v7248
    %v7380 = vpack.c.b16 %v7251, %v7250
    %v7381 = vpack.c.b16 %v7253, %v7252
    %v7382 = vpack.c.b16 %v7255, %v7254
    %v7383 = vpack.c.b16 %v7257, %v7256
    %v7384 = vpack.c.b16 %v7259, %v7258
    %v7385 = vpack.c.b16 %v7261, %v7260
    %v7386 = vpack.c.b16 %v7263, %v7262
    %v7387 = vpack.c.b16 %v7265, %v7264
    %v7388 = vpack.c.b16 %v7267, %v7266
    %v7389 = vpack.c.b16 %v7269, %v7268
    %v7390 = vpack.c.b16 %v7271, %v7270
    %v7391 = vpack.c.b16 %v7273, %v7272
    %v7392 = vpack.c.b16 %v7275, %v7274
    %v7393 = vpack.c.b16 %v7277, %v7276
    %v7394 = vpack.c.b16 %v7279, %v7278
    %v7395 = vpack.c.b16 %v7281, %v7280
    %v7396 = vpack.c.b16 %v7283, %v7282
    %v7397 = vpack.c.b16 %v7285, %v7284
    %v7398 = vpack.c.b16 %v7287, %v7286
    %v7399 = vpack.c.b16 %v7289, %v7288
    %v7400 = vpack.c.b16 %v7291, %v7290
    %v7401 = vpack.c.b16 %v7293, %v7292
    %v7402 = vpack.c.b16 %v7295, %v7294
    %v7403 = vpack.c.b16 %v7297, %v7296
    %v7404 = vpack.c.b16 %v7299, %v7298
    %v7405 = vpack.c.b16 %v7301, %v7300
    %v7406 = vpack.c.b16 %v7303, %v7302
    %v7407 = vpack.c.b16 %v7305, %v7304
    %v7408 = vpack.c.b16 %v7307, %v7306
    %v7409 = vpack.c.b16 %v7309, %v7308
    %v7410 = vpack.c.b16 %v7311, %v7310
    %v7411 = vpack.c.b16 %v7313, %v7312
    %v7412 = vpack.c.b16 %v7315, %v7314
    %v7413 = vpack.c.b16 %v7317, %v7316
    %v7414 = vpack.c.b16 %v7319, %v7318
    %v7415 = vpack.c.b16 %v7321, %v7320
    %v7416 = vpack.c.b16 %v7323, %v7322
    %v7417 = vpack.c.b16 %v7325, %v7324
    %v7418 = vpack.c.b16 %v7327, %v7326
    %v7419 = vpack.c.b16 %v7329, %v7328
    %v7420 = vpack.c.b16 %v7331, %v7330
    %v7421 = vpack.c.b16 %v7333, %v7332
    %v7422 = vpack.c.b16 %v7335, %v7334
    %v7423 = vpack.c.b16 %v7337, %v7336
    %v7424 = vpack.c.b16 %v7339, %v7338
    %v7425 = vpack.c.b16 %v7341, %v7340
    %v7426 = vpack.c.b16 %v7343, %v7342
    %v7427 = vpack.c.b16 %v7345, %v7344
    %v7428 = vpack.c.b16 %v7347, %v7346
    %v7429 = vpack.c.b16 %v7349, %v7348
    %7510 = vmatprep.subr.bf16.mxu0 0
    %7511 = vmatpush1.bf16.msra.mxu0 %v7357
    %7512 = vmatprep.subr.bf16.mxu0 0
    %7513 = vmatpush1.bf16.msra.mxu0 %v7356
    %7514 = vmatprep.subr.bf16.mxu0 0
    %7515 = vmatpush1.bf16.msra.mxu0 %v7355
    %7516 = vmatprep.subr.bf16.mxu0 0
    %7517 = vmatpush1.bf16.msra.mxu0 %v7354
    %7518 = vmatprep.subr.bf16.mxu0 0
    %7519 = vmatpush1.bf16.msra.mxu0 %v7353
    %7520 = vmatprep.subr.bf16.mxu0 0
    %7521 = vmatpush1.bf16.msra.mxu0 %v7352
    %7522 = vmatprep.subr.bf16.mxu0 0
    %7523 = vmatpush1.bf16.msra.mxu0 %v7351
    %7524 = vmatprep.subr.bf16.mxu0 0
    %7525 = vmatpush1.bf16.msra.mxu0 %v7350
    %7526 = vmatprep.subr.bf16.mxu0 0
    %7527 = vmatpush2.bf16.msra.mxu0 %v7365
    %7528 = vmatprep.subr.bf16.mxu0 0
    %7529 = vmatpush2.bf16.msra.mxu0 %v7364
    %7530 = vmatprep.subr.bf16.mxu0 0
    %7531 = vmatpush2.bf16.msra.mxu0 %v7363
    %7532 = vmatprep.subr.bf16.mxu0 0
    %7533 = vmatpush2.bf16.msra.mxu0 %v7362
    %7534 = vmatprep.subr.bf16.mxu0 0
    %7535 = vmatpush2.bf16.msra.mxu0 %v7361
    %7536 = vmatprep.subr.bf16.mxu0 0
    %7537 = vmatpush2.bf16.msra.mxu0 %v7360
    %7538 = vmatprep.subr.bf16.mxu0 0
    %7539 = vmatpush2.bf16.msra.mxu0 %v7359
    %7540 = vmatprep.subr.bf16.mxu0 0
    %7541 = vmatpush2.bf16.msra.mxu0 %v7358
    %7542 = vmatprep.mubr.bf16.mxu0 %v6854
    %7543 = vmatmul.mubr.bf16.gmra.mxu0 %v6853
    %v7544 = vpop.f32.mrf.mxu0
    %v7545 = vadd.f32 %v7028, %v7544
    %v7546 = vpop.f32.mrf.mxu0
    %v7547 = vpop.f32.mrf.mxu0
    %v7548 = vadd.f32 %v7028, %v7547
    %v7549 = vpop.f32.mrf.mxu0
    %7550 = vdwg.mxu0
    %7551 = vmatprep.subr.bf16.mxu0 0
    %7552 = vmatpush1.bf16.msra.mxu0 %v7373
    %7553 = vmatprep.subr.bf16.mxu0 0
    %7554 = vmatpush1.bf16.msra.mxu0 %v7372
    %7555 = vmatprep.subr.bf16.mxu0 0
    %7556 = vmatpush1.bf16.msra.mxu0 %v7371
    %7557 = vmatprep.subr.bf16.mxu0 0
    %7558 = vmatpush1.bf16.msra.mxu0 %v7370
    %7559 = vmatprep.subr.bf16.mxu0 0
    %7560 = vmatpush1.bf16.msra.mxu0 %v7369
    %7561 = vmatprep.subr.bf16.mxu0 0
    %7562 = vmatpush1.bf16.msra.mxu0 %v7368
    %7563 = vmatprep.subr.bf16.mxu0 0
    %7564 = vmatpush1.bf16.msra.mxu0 %v7367
    %7565 = vmatprep.subr.bf16.mxu0 0
    %7566 = vmatpush1.bf16.msra.mxu0 %v7366
    %7567 = vmatprep.subr.bf16.mxu0 0
    %7568 = vmatpush2.bf16.msra.mxu0 %v7381
    %7569 = vmatprep.subr.bf16.mxu0 0
    %7570 = vmatpush2.bf16.msra.mxu0 %v7380
    %7571 = vmatprep.subr.bf16.mxu0 0
    %7572 = vmatpush2.bf16.msra.mxu0 %v7379
    %7573 = vmatprep.subr.bf16.mxu0 0
    %7574 = vmatpush2.bf16.msra.mxu0 %v7378
    %7575 = vmatprep.subr.bf16.mxu0 0
    %7576 = vmatpush2.bf16.msra.mxu0 %v7377
    %7577 = vmatprep.subr.bf16.mxu0 0
    %7578 = vmatpush2.bf16.msra.mxu0 %v7376
    %7579 = vmatprep.subr.bf16.mxu0 0
    %7580 = vmatpush2.bf16.msra.mxu0 %v7375
    %7581 = vmatprep.subr.bf16.mxu0 0
    %7582 = vmatpush2.bf16.msra.mxu0 %v7374
    %7583 = vmatprep.mubr.bf16.mxu0 %v6856
    %7584 = vmatmul.mubr.bf16.gmra.mxu0 %v6855
    %v7585 = vpop.f32.mrf.mxu0
    %v7586 = vadd.f32 %v7545, %v7585
    %v7587 = vpop.f32.mrf.mxu0
    %v7588 = vpop.f32.mrf.mxu0
    %v7589 = vadd.f32 %v7548, %v7588
    %v7590 = vpop.f32.mrf.mxu0
    %7591 = vdwg.mxu0
    %7592 = vmatprep.subr.bf16.mxu0 0
    %7593 = vmatpush1.bf16.msra.mxu0 %v7389
    %7594 = vmatprep.subr.bf16.mxu0 0
    %7595 = vmatpush1.bf16.msra.mxu0 %v7388
    %7596 = vmatprep.subr.bf16.mxu0 0
    %7597 = vmatpush1.bf16.msra.mxu0 %v7387
    %7598 = vmatprep.subr.bf16.mxu0 0
    %7599 = vmatpush1.bf16.msra.mxu0 %v7386
    %7600 = vmatprep.subr.bf16.mxu0 0
    %7601 = vmatpush1.bf16.msra.mxu0 %v7385
    %7602 = vmatprep.subr.bf16.mxu0 0
    %7603 = vmatpush1.bf16.msra.mxu0 %v7384
    %7604 = vmatprep.subr.bf16.mxu0 0
    %7605 = vmatpush1.bf16.msra.mxu0 %v7383
    %7606 = vmatprep.subr.bf16.mxu0 0
    %7607 = vmatpush1.bf16.msra.mxu0 %v7382
    %7608 = vmatprep.subr.bf16.mxu0 0
    %7609 = vmatpush2.bf16.msra.mxu0 %v7397
    %7610 = vmatprep.subr.bf16.mxu0 0
    %7611 = vmatpush2.bf16.msra.mxu0 %v7396
    %7612 = vmatprep.subr.bf16.mxu0 0
    %7613 = vmatpush2.bf16.msra.mxu0 %v7395
    %7614 = vmatprep.subr.bf16.mxu0 0
    %7615 = vmatpush2.bf16.msra.mxu0 %v7394
    %7616 = vmatprep.subr.bf16.mxu0 0
    %7617 = vmatpush2.bf16.msra.mxu0 %v7393
    %7618 = vmatprep.subr.bf16.mxu0 0
    %7619 = vmatpush2.bf16.msra.mxu0 %v7392
    %7620 = vmatprep.subr.bf16.mxu0 0
    %7621 = vmatpush2.bf16.msra.mxu0 %v7391
    %7622 = vmatprep.subr.bf16.mxu0 0
    %7623 = vmatpush2.bf16.msra.mxu0 %v7390
    %7624 = vmatprep.mubr.bf16.mxu0 %v6858
    %7625 = vmatmul.mubr.bf16.gmra.mxu0 %v6857
    %v7626 = vpop.f32.mrf.mxu0
    %v7627 = vadd.f32 %v7586, %v7626
    %v7628 = vpop.f32.mrf.mxu0
    %v7629 = vpop.f32.mrf.mxu0
    %v7630 = vadd.f32 %v7589, %v7629
    %v7631 = vpop.f32.mrf.mxu0
    %7632 = vdwg.mxu0
    %7633 = vmatprep.subr.bf16.mxu0 0
    %7634 = vmatpush1.bf16.msra.mxu0 %v7405
    %7635 = vmatprep.subr.bf16.mxu0 0
    %7636 = vmatpush1.bf16.msra.mxu0 %v7404
    %7637 = vmatprep.subr.bf16.mxu0 0
    %7638 = vmatpush1.bf16.msra.mxu0 %v7403
    %7639 = vmatprep.subr.bf16.mxu0 0
    %7640 = vmatpush1.bf16.msra.mxu0 %v7402
    %7641 = vmatprep.subr.bf16.mxu0 0
    %7642 = vmatpush1.bf16.msra.mxu0 %v7401
    %7643 = vmatprep.subr.bf16.mxu0 0
    %7644 = vmatpush1.bf16.msra.mxu0 %v7400
    %7645 = vmatprep.subr.bf16.mxu0 0
    %7646 = vmatpush1.bf16.msra.mxu0 %v7399
    %7647 = vmatprep.subr.bf16.mxu0 0
    %7648 = vmatpush1.bf16.msra.mxu0 %v7398
    %7649 = vmatprep.subr.bf16.mxu0 0
    %7650 = vmatpush2.bf16.msra.mxu0 %v7413
    %7651 = vmatprep.subr.bf16.mxu0 0
    %7652 = vmatpush2.bf16.msra.mxu0 %v7412
    %7653 = vmatprep.subr.bf16.mxu0 0
    %7654 = vmatpush2.bf16.msra.mxu0 %v7411
    %7655 = vmatprep.subr.bf16.mxu0 0
    %7656 = vmatpush2.bf16.msra.mxu0 %v7410
    %7657 = vmatprep.subr.bf16.mxu0 0
    %7658 = vmatpush2.bf16.msra.mxu0 %v7409
    %7659 = vmatprep.subr.bf16.mxu0 0
    %7660 = vmatpush2.bf16.msra.mxu0 %v7408
    %7661 = vmatprep.subr.bf16.mxu0 0
    %7662 = vmatpush2.bf16.msra.mxu0 %v7407
    %7663 = vmatprep.subr.bf16.mxu0 0
    %7664 = vmatpush2.bf16.msra.mxu0 %v7406
    %7665 = vmatprep.mubr.bf16.mxu0 %v6860
    %7666 = vmatmul.mubr.bf16.gmra.mxu0 %v6859
    %v7667 = vpop.f32.mrf.mxu0
    %v7668 = vadd.f32 %v7627, %v7667
    %v7669 = vpop.f32.mrf.mxu0
    %v7670 = vpop.f32.mrf.mxu0
    %v7671 = vadd.f32 %v7630, %v7670
    %v7672 = vpop.f32.mrf.mxu0
    %7673 = vdwg.mxu0
    %7674 = vmatprep.subr.bf16.mxu0 0
    %7675 = vmatpush1.bf16.msra.mxu0 %v7421
    %7676 = vmatprep.subr.bf16.mxu0 0
    %7677 = vmatpush1.bf16.msra.mxu0 %v7420
    %7678 = vmatprep.subr.bf16.mxu0 0
    %7679 = vmatpush1.bf16.msra.mxu0 %v7419
    %7680 = vmatprep.subr.bf16.mxu0 0
    %7681 = vmatpush1.bf16.msra.mxu0 %v7418
    %7682 = vmatprep.subr.bf16.mxu0 0
    %7683 = vmatpush1.bf16.msra.mxu0 %v7417
    %7684 = vmatprep.subr.bf16.mxu0 0
    %7685 = vmatpush1.bf16.msra.mxu0 %v7416
    %7686 = vmatprep.subr.bf16.mxu0 0
    %7687 = vmatpush1.bf16.msra.mxu0 %v7415
    %7688 = vmatprep.subr.bf16.mxu0 0
    %7689 = vmatpush1.bf16.msra.mxu0 %v7414
    %7690 = vmatprep.subr.bf16.mxu0 0
    %7691 = vmatpush2.bf16.msra.mxu0 %v7429
    %7692 = vmatprep.subr.bf16.mxu0 0
    %7693 = vmatpush2.bf16.msra.mxu0 %v7428
    %7694 = vmatprep.subr.bf16.mxu0 0
    %7695 = vmatpush2.bf16.msra.mxu0 %v7427
    %7696 = vmatprep.subr.bf16.mxu0 0
    %7697 = vmatpush2.bf16.msra.mxu0 %v7426
    %7698 = vmatprep.subr.bf16.mxu0 0
    %7699 = vmatpush2.bf16.msra.mxu0 %v7425
    %7700 = vmatprep.subr.bf16.mxu0 0
    %7701 = vmatpush2.bf16.msra.mxu0 %v7424
    %7702 = vmatprep.subr.bf16.mxu0 0
    %7703 = vmatpush2.bf16.msra.mxu0 %v7423
    %7704 = vmatprep.subr.bf16.mxu0 0
    %7705 = vmatpush2.bf16.msra.mxu0 %v7422
    %7706 = vmatprep.mubr.bf16.mxu0 %v6862
    %7707 = vmatmul.mubr.bf16.gmra.mxu0 %v6861
    %v7708 = vpop.f32.mrf.mxu0
    %v7709 = vadd.f32 %v7668, %v7708
    %v7710 = vpop.f32.mrf.mxu0
    %v7711 = vpop.f32.mrf.mxu0
    %v7712 = vadd.f32 %v7671, %v7711
    %v7713 = vpop.f32.mrf.mxu0
    %7714 = vdwg.mxu0
    %v7715 = vmax.f32 %v7709, 0.0
    %v7716 = vmax.f32 %v7712, 0.0
    %7717 = vst [vmem:[#allocation14] sm:$0xff] %v7715
    %7718 = vst [vmem:[#allocation14 + $0x8] sm:$0xff] %v7716
    // Predicated region
    $region58: #{tpu_custom_call.1} parent=1 // pred_check
      _
    $region59: #{tpu_custom_call.1} parent=1 // pred_check_branch
      %7720 = sbr.rel (0) target = $region61
    $region60: #{tpu_custom_call.1} parent=1 // pred_region
      %s7722 = ssub.s32 256, 256
      %7723 = vsyncadd [#allocation4], %s7722
      %s7724 = sshll.u32 [#allocation14], 4
      %s7725 = int_to_ptr.vmem [resolvable:$true] %s7724
      %7730 = dma.vmem_to_hbm [thread:$0]  %s7725, 256, %s7, [#allocation4], 128, 128, 8
    $region61: #{tpu_custom_call.1} parent=1 // pred_fallthru
      _
    // Predicated region
    $region62: #{tpu_custom_call.1} parent=1 // pred_check
      _
    $region63: #{tpu_custom_call.1} parent=1 // pred_check_branch
      %7732 = sbr.rel (0) target = $region65
    $region64: #{tpu_custom_call.1} parent=1 // pred_region
      %7733 = dma.done [#allocation4], 256
    $region65: #{tpu_custom_call.1} parent=1 // pred_fallthru
      _
    %7734 = vsyncpa [#allocation3], 1
    %7735 = vsyncpa [#allocation6], 1
    %7736 = vsyncpa [#allocation9], 1
    %7737 = vsyncpa [#allocation12], 1
    %7738 = vsyncpa [#allocation4], 1

</llo_original>
